<compile_context>
chip_gen: v5e
topology: v5e:2x2
jax: 0.10.0
libtpu: 0.0.40
codegen_flags: <defaults>
</compile_context>

<pallas_src>
import jax
import jax.numpy as jnp
from jax.experimental import pallas as pl
from jax.experimental.pallas import tpu as pltpu

# ---- problem sizes (small, consistent with the module) ----------------------
B = 2            # batch (number of image pairs)
C, H, W = 4, 16, 16
IN_DIM = C * H * W          # 1024 = flattened image
FEAT = 512                  # encoder feature dim (module concatenates 2*512)
HID1 = 512
HID2 = 64
NCLS = 2


def _round_up(n, m):
    return ((n + m - 1) // m) * m


# Packed-bias layout (segment starts 128-lane aligned so in-kernel slices are
# plain aligned lane windows).
ENC_B_OFF = 0
B1_OFF = FEAT                               # 512
B2_OFF = FEAT + HID1                        # 1024
B3_OFF = _round_up(B2_OFF + HID2, 128)      # 1152
BIAS_TOTAL = _round_up(B3_OFF + NCLS, 128)  # 1280


def _ae_net_kernel(x_ref,                    # [2*TR, IN_DIM] bf16 (tile: img1 rows then img2 rows)
                   enc_w_ref,                # [IN_DIM, FEAT] bf16   (resident)
                   w1t_ref, w1b_ref,         # [FEAT, HID1] bf16 x2  (resident, pre-split fc1)
                   w2_ref,                   # [HID1, HID2] bf16     (resident)
                   w3_ref,                   # [HID2, NCLS] bf16     (resident)
                   bias_ref,                 # [1, BIAS_TOTAL] f32   (resident, packed biases)
                   out_ref):                 # [TR, NCLS] f32
    # TODO(synk): encoder.extract_feature is external to AE_Net; modeled here as
    # a deterministic flatten + Linear(IN_DIM -> 512) shared by both images.
    tr = out_ref.shape[0]                    # image pairs in this row tile

    # Fused encoder pass: one MXU sweep over enc_w for both images of the tile.
    feats = jnp.dot(x_ref[...], enc_w_ref[...],
                    preferred_element_type=jnp.float32)
    feats = feats + bias_ref[:, ENC_B_OFF:ENC_B_OFF + FEAT]

    # Tile-aligned row split (tr is a multiple of 8 -> no sublane relayout).
    f1 = feats[0:tr, :].astype(jnp.bfloat16)        # features of image1
    f2 = feats[tr:2 * tr, :].astype(jnp.bfloat16)   # features of image2

    # feature = concat([f1, f2], dim=1); fc1 applied as split matmul:
    #   concat(f1, f2) @ W1 = f1 @ W1[:512] + f2 @ W1[512:]
    h1 = (jnp.dot(f1, w1t_ref[...], preferred_element_type=jnp.float32)
          + jnp.dot(f2, w1b_ref[...], preferred_element_type=jnp.float32)
          + bias_ref[:, B1_OFF:B1_OFF + HID1])
    h1 = jnp.maximum(h1, 0.0)                        # ReLU (f32)

    h2 = (jnp.dot(h1.astype(jnp.bfloat16), w2_ref[...],
                  preferred_element_type=jnp.float32)
          + bias_ref[:, B2_OFF:B2_OFF + HID2])
    h2 = jnp.maximum(h2, 0.0)                        # ReLU (f32)

    logits = (jnp.dot(h2.astype(jnp.bfloat16), w3_ref[...],
                      preferred_element_type=jnp.float32)
              + bias_ref[:, B3_OFF:B3_OFF + NCLS])

    # Softmax over dim=1 (classes), in f32.
    m = jnp.max(logits, axis=1, keepdims=True)
    e = jnp.exp(logits - m)
    out_ref[...] = (e / jnp.sum(e, axis=1, keepdims=True)).astype(out_ref.dtype)


def prepare_params(params):
    """One-time weight preparation, hoisted out of the per-call hot path:
    bf16 casts for all MXU weights, fc1 weight pre-split, biases packed into a
    single f32 vector. Call once and reuse the result for every forward."""
    bias = jnp.zeros((1, BIAS_TOTAL), jnp.float32)
    bias = bias.at[:, ENC_B_OFF:ENC_B_OFF + FEAT].set(params["enc_b"])
    bias = bias.at[:, B1_OFF:B1_OFF + HID1].set(params["b1"])
    bias = bias.at[:, B2_OFF:B2_OFF + HID2].set(params["b2"])
    bias = bias.at[:, B3_OFF:B3_OFF + NCLS].set(params["b3"])
    return {
        "enc_w": params["enc_w"].astype(jnp.bfloat16),
        "w1_top": params["w1"][:FEAT, :].astype(jnp.bfloat16),
        "w1_bot": params["w1"][FEAT:, :].astype(jnp.bfloat16),
        "w2": params["w2"].astype(jnp.bfloat16),
        "w3": params["w3"].astype(jnp.bfloat16),
        "bias": bias,
    }


def ae_net_forward(image1, image2, prepped):
    """image1/image2: [B, C, H, W] float32 (NCHW). `prepped` = prepare_params(...).
    Returns softmax probs [B, 2]."""
    b = image1.shape[0]
    # Row tile of image pairs: degenerates to one step at tiny B, streams
    # 256-pair tiles (with the weights resident) at large B.
    tile_rows = min(256, _round_up(b, 8))
    b_pad = _round_up(b, tile_rows)
    nt = b_pad // tile_rows

    x1 = image1.reshape(b, -1).astype(jnp.bfloat16)     # [B, IN_DIM]  (glue)
    x2 = image2.reshape(b, -1).astype(jnp.bfloat16)
    if b_pad != b:
        pad = ((0, b_pad - b), (0, 0))
        x1 = jnp.pad(x1, pad)
        x2 = jnp.pad(x2, pad)
    # Per-tile layout [img1 rows of tile t ; img2 rows of tile t]: enc_w is
    # swept once per tile and the in-kernel f1/f2 split stays tile-aligned.
    x = jnp.concatenate(
        [x1.reshape(nt, tile_rows, IN_DIM), x2.reshape(nt, tile_rows, IN_DIM)],
        axis=1).reshape(nt * 2 * tile_rows, IN_DIM)

    args = (x, prepped["enc_w"], prepped["w1_top"], prepped["w1_bot"],
            prepped["w2"], prepped["w3"], prepped["bias"])

    def resident(shape):                 # weights: constant block index -> fetched once
        return pl.BlockSpec(shape, lambda t: (0, 0))

    flops = 2 * b_pad * (2 * IN_DIM * FEAT + 2 * FEAT * HID1
                         + HID1 * HID2 + HID2 * NCLS)
    bytes_accessed = (sum(int(a.size) * a.dtype.itemsize for a in args)
                      + b_pad * NCLS * 4)

    out = pl.pallas_call(
        _ae_net_kernel,
        out_shape=jax.ShapeDtypeStruct((b_pad, NCLS), jnp.float32),
        grid=(nt,),
        in_specs=[
            pl.BlockSpec((2 * tile_rows, IN_DIM), lambda t: (t, 0)),  # x streamed
            resident((IN_DIM, FEAT)),
            resident((FEAT, HID1)),
            resident((FEAT, HID1)),
            resident((HID1, HID2)),
            resident((HID2, NCLS)),
            resident((1, BIAS_TOTAL)),
        ],
        out_specs=pl.BlockSpec((tile_rows, NCLS), lambda t: (t, 0)),
        compiler_params=pltpu.CompilerParams(
            dimension_semantics=("parallel",)),
        cost_estimate=pl.CostEstimate(
            flops=flops, transcendentals=b_pad * NCLS,
            bytes_accessed=bytes_accessed),
    )(*args)
    return out[:b]


def init_params(key):
    ks = jax.random.split(key, 8)
    s = 0.02
    return {
        # encoder stub: Linear(IN_DIM -> FEAT), weights stored [in, out]
        "enc_w": s * jax.random.normal(ks[0], (IN_DIM, FEAT), jnp.float32),
        "enc_b": s * jax.random.normal(ks[1], (1, FEAT), jnp.float32),
        # fc1: Linear(2*512 -> 512)
        "w1": s * jax.random.normal(ks[2], (2 * FEAT, HID1), jnp.float32),
        "b1": s * jax.random.normal(ks[3], (1, HID1), jnp.float32),
        # fc2: Linear(512 -> 64)
        "w2": s * jax.random.normal(ks[4], (HID1, HID2), jnp.float32),
        "b2": s * jax.random.normal(ks[5], (1, HID2), jnp.float32),
        # fc3: Linear(64 -> 2)
        "w3": s * jax.random.normal(ks[6], (HID2, NCLS), jnp.float32),
        "b3": s * jax.random.normal(ks[7], (1, NCLS), jnp.float32),
    }


def _reference_forward(image1, image2, p):
    # Pure-f32 reference (matches the PyTorch module semantics).
    x1 = image1.reshape(image1.shape[0], -1)
    x2 = image2.reshape(image2.shape[0], -1)
    f1 = x1 @ p["enc_w"] + p["enc_b"]
    f2 = x2 @ p["enc_w"] + p["enc_b"]
    feat = jnp.concatenate([f1, f2], axis=1)
    h1 = jax.nn.relu(feat @ p["w1"] + p["b1"])
    h2 = jax.nn.relu(h1 @ p["w2"] + p["b2"])
    logits = h2 @ p["w3"] + p["b3"]
    return jax.nn.softmax(logits, axis=1)


if __name__ == "__main__":
    key = jax.random.PRNGKey(0)
    k_img1, k_img2, k_par = jax.random.split(key, 3)

    image1 = jax.random.normal(k_img1, (B, C, H, W), jnp.float32)
    image2 = jax.random.normal(k_img2, (B, C, H, W), jnp.float32)
    params = init_params(k_par)

    # One-time weight prep (hoisted out of the per-call hot path).
    prepped = jax.block_until_ready(prepare_params(params))

    out = ae_net_forward(image1, image2, prepped)
    out = jax.block_until_ready(out)

    ref = _reference_forward(image1, image2, params)
    assert out.shape == (B, NCLS)
    # bf16 weights/activations => looser tolerance than the f32 reference.
    assert jnp.allclose(out, ref, atol=2e-2, rtol=2e-2), "mismatch vs reference"
    assert jnp.allclose(jnp.sum(out, axis=1), 1.0, atol=1e-5)

    print("KERNEL_OK")
</pallas_src>

<mosaic_0001>
module attributes {stable_mosaic.version = 11 : i64} {
  func.func @_ae_net_kernel(%arg0: i32, %arg1: memref<16x1024xbf16, #tpu.memory_space<vmem>>, %arg2: memref<1024x512xbf16, #tpu.memory_space<vmem>>, %arg3: memref<512x512xbf16, #tpu.memory_space<vmem>>, %arg4: memref<512x512xbf16, #tpu.memory_space<vmem>>, %arg5: memref<512x64xbf16, #tpu.memory_space<vmem>>, %arg6: memref<64x2xbf16, #tpu.memory_space<vmem>>, %arg7: memref<1x1280xf32, #tpu.memory_space<vmem>>, %arg8: memref<8x2xf32, #tpu.memory_space<vmem>>) attributes {dimension_semantics = [#tpu.dimension_semantics<parallel>], iteration_bounds = array<i64: 1>, scalar_prefetch = 0 : i64, scratch_operands = 0 : i64, tpu.core_type = #tpu.core_type<tc>, window_params = [{transform_indices = @transform_0, window_bounds = array<i64: 16, 1024>}, {pipeline_mode = #tpu.pipeline_mode<synchronous>, transform_indices = @transform_1, window_bounds = array<i64: 1024, 512>}, {pipeline_mode = #tpu.pipeline_mode<synchronous>, transform_indices = @transform_2, window_bounds = array<i64: 512, 512>}, {pipeline_mode = #tpu.pipeline_mode<synchronous>, transform_indices = @transform_3, window_bounds = array<i64: 512, 512>}, {pipeline_mode = #tpu.pipeline_mode<synchronous>, transform_indices = @transform_4, window_bounds = array<i64: 512, 64>}, {pipeline_mode = #tpu.pipeline_mode<synchronous>, transform_indices = @transform_5, window_bounds = array<i64: 64, 2>}, {pipeline_mode = #tpu.pipeline_mode<synchronous>, transform_indices = @transform_6, window_bounds = array<i64: 1, 1280>}, {transform_indices = @transform_7, window_bounds = array<i64: 8, 2>}]} {
    %c0 = arith.constant 0 : index
    %c0_0 = arith.constant 0 : index
    %0 = vector.load %arg1[%c0, %c0_0] : memref<16x1024xbf16, #tpu.memory_space<vmem>>, vector<16x1024xbf16>
    %c0_1 = arith.constant 0 : index
    %c0_2 = arith.constant 0 : index
    %1 = vector.load %arg2[%c0_1, %c0_2] : memref<1024x512xbf16, #tpu.memory_space<vmem>>, vector<1024x512xbf16>
    %cst = arith.constant dense<0.000000e+00> : vector<16x512xf32>
    %2 = tpu.matmul %0, %1, %cst {dimension_numbers = #tpu.dot_dimension_numbers<[1], [0], [0], [1], [0, 0, 1, 1], [], []>} : vector<16x1024xbf16>, vector<1024x512xbf16>, vector<16x512xf32> -> vector<16x512xf32>
    %c0_3 = arith.constant 0 : index
    %c0_4 = arith.constant 0 : index
    %3 = vector.load %arg7[%c0_3, %c0_4] : memref<1x1280xf32, #tpu.memory_space<vmem>>, vector<1x512xf32>
    %4 = vector.broadcast %3 : vector<1x512xf32> to vector<16x512xf32>
    %5 = arith.addf %2, %4 : vector<16x512xf32>
    %6 = vector.extract_strided_slice %5 {offsets = [0, 0], sizes = [8, 512], strides = [1, 1]} : vector<16x512xf32> to vector<8x512xf32>
    %7 = arith.truncf %6 : vector<8x512xf32> to vector<8x512xbf16>
    %8 = vector.extract_strided_slice %5 {offsets = [8, 0], sizes = [8, 512], strides = [1, 1]} : vector<16x512xf32> to vector<8x512xf32>
    %9 = arith.truncf %8 : vector<8x512xf32> to vector<8x512xbf16>
    %c0_5 = arith.constant 0 : index
    %c0_6 = arith.constant 0 : index
    %10 = vector.load %arg3[%c0_5, %c0_6] : memref<512x512xbf16, #tpu.memory_space<vmem>>, vector<512x512xbf16>
    %cst_7 = arith.constant dense<0.000000e+00> : vector<8x512xf32>
    %11 = tpu.matmul %7, %10, %cst_7 {dimension_numbers = #tpu.dot_dimension_numbers<[1], [0], [0], [1], [0, 0, 1, 1], [], []>} : vector<8x512xbf16>, vector<512x512xbf16>, vector<8x512xf32> -> vector<8x512xf32>
    %c0_8 = arith.constant 0 : index
    %c0_9 = arith.constant 0 : index
    %12 = vector.load %arg4[%c0_8, %c0_9] : memref<512x512xbf16, #tpu.memory_space<vmem>>, vector<512x512xbf16>
    %cst_10 = arith.constant dense<0.000000e+00> : vector<8x512xf32>
    %13 = tpu.matmul %9, %12, %cst_10 {dimension_numbers = #tpu.dot_dimension_numbers<[1], [0], [0], [1], [0, 0, 1, 1], [], []>} : vector<8x512xbf16>, vector<512x512xbf16>, vector<8x512xf32> -> vector<8x512xf32>
    %14 = arith.addf %11, %13 : vector<8x512xf32>
    %c0_11 = arith.constant 0 : index
    %c512 = arith.constant 512 : index
    %15 = vector.load %arg7[%c0_11, %c512] : memref<1x1280xf32, #tpu.memory_space<vmem>>, vector<1x512xf32>
    %16 = vector.broadcast %15 : vector<1x512xf32> to vector<8x512xf32>
    %17 = arith.addf %14, %16 : vector<8x512xf32>
    %cst_12 = arith.constant 0.000000e+00 : f32
    %18 = vector.broadcast %cst_12 : f32 to vector<8x512xf32>
    %19 = arith.maximumf %17, %18 : vector<8x512xf32>
    %20 = arith.truncf %19 : vector<8x512xf32> to vector<8x512xbf16>
    %c0_13 = arith.constant 0 : index
    %c0_14 = arith.constant 0 : index
    %21 = vector.load %arg5[%c0_13, %c0_14] : memref<512x64xbf16, #tpu.memory_space<vmem>>, vector<512x64xbf16>
    %cst_15 = arith.constant dense<0.000000e+00> : vector<8x64xf32>
    %22 = tpu.matmul %20, %21, %cst_15 {dimension_numbers = #tpu.dot_dimension_numbers<[1], [0], [0], [1], [0, 0, 1, 1], [], []>} : vector<8x512xbf16>, vector<512x64xbf16>, vector<8x64xf32> -> vector<8x64xf32>
    %c0_16 = arith.constant 0 : index
    %c1024 = arith.constant 1024 : index
    %23 = vector.load %arg7[%c0_16, %c1024] : memref<1x1280xf32, #tpu.memory_space<vmem>>, vector<1x64xf32>
    %24 = vector.broadcast %23 : vector<1x64xf32> to vector<8x64xf32>
    %25 = arith.addf %22, %24 : vector<8x64xf32>
    %cst_17 = arith.constant 0.000000e+00 : f32
    %26 = vector.broadcast %cst_17 : f32 to vector<8x64xf32>
    %27 = arith.maximumf %25, %26 : vector<8x64xf32>
    %28 = arith.truncf %27 : vector<8x64xf32> to vector<8x64xbf16>
    %c0_18 = arith.constant 0 : index
    %c0_19 = arith.constant 0 : index
    %29 = vector.load %arg6[%c0_18, %c0_19] : memref<64x2xbf16, #tpu.memory_space<vmem>>, vector<64x2xbf16>
    %cst_20 = arith.constant dense<0.000000e+00> : vector<8x2xf32>
    %30 = tpu.matmul %28, %29, %cst_20 {dimension_numbers = #tpu.dot_dimension_numbers<[1], [0], [0], [1], [0, 0, 1, 1], [], []>} : vector<8x64xbf16>, vector<64x2xbf16>, vector<8x2xf32> -> vector<8x2xf32>
    %c0_21 = arith.constant 0 : index
    %c1152 = arith.constant 1152 : index
    %31 = vector.load %arg7[%c0_21, %c1152] : memref<1x1280xf32, #tpu.memory_space<vmem>>, vector<1x2xf32>
    %32 = vector.broadcast %31 : vector<1x2xf32> to vector<8x2xf32>
    %33 = arith.addf %30, %32 : vector<8x2xf32>
    %cst_22 = arith.constant dense<0xFF800000> : vector<8xf32>
    %34 = vector.multi_reduction <maximumf>, %33, %cst_22 [1] : vector<8x2xf32> to vector<8xf32>
    %35 = vector.shape_cast %34 : vector<8xf32> to vector<8x1xf32>
    %36 = vector.broadcast %35 : vector<8x1xf32> to vector<8x2xf32>
    %37 = arith.subf %33, %36 : vector<8x2xf32>
    %38 = math.exp %37 : vector<8x2xf32>
    %cst_23 = arith.constant dense<0.000000e+00> : vector<8xf32>
    %39 = vector.multi_reduction <add>, %38, %cst_23 [1] : vector<8x2xf32> to vector<8xf32>
    %40 = vector.shape_cast %39 : vector<8xf32> to vector<8x1xf32>
    %41 = vector.broadcast %40 : vector<8x1xf32> to vector<8x2xf32>
    %42 = arith.divf %38, %41 : vector<8x2xf32>
    %c0_24 = arith.constant 0 : index
    %c0_25 = arith.constant 0 : index
    %43 = vector.load %arg8[%c0_24, %c0_25] : memref<8x2xf32, #tpu.memory_space<vmem>>, vector<8x2xf32>
    tpu.vector_store %arg8[%c0_24, %c0_25], %42 {strides = array<i32>} : memref<8x2xf32, #tpu.memory_space<vmem>>, vector<8x2xf32>,
    return
  }
  func.func @transform_0(%arg0: i32) -> (i32, i32) {
    %c0_i32 = arith.constant 0 : i32
    %c0_i32_0 = arith.constant 0 : i32
    return %arg0, %c0_i32 : i32, i32
  }
  func.func @transform_1(%arg0: i32) -> (i32, i32) {
    %c0_i32 = arith.constant 0 : i32
    %c0_i32_0 = arith.constant 0 : i32
    %c0_i32_1 = arith.constant 0 : i32
    return %c0_i32, %c0_i32_0 : i32, i32
  }
  func.func @transform_2(%arg0: i32) -> (i32, i32) {
    %c0_i32 = arith.constant 0 : i32
    %c0_i32_0 = arith.constant 0 : i32
    %c0_i32_1 = arith.constant 0 : i32
    return %c0_i32, %c0_i32_0 : i32, i32
  }
  func.func @transform_3(%arg0: i32) -> (i32, i32) {
    %c0_i32 = arith.constant 0 : i32
    %c0_i32_0 = arith.constant 0 : i32
    %c0_i32_1 = arith.constant 0 : i32
    return %c0_i32, %c0_i32_0 : i32, i32
  }
  func.func @transform_4(%arg0: i32) -> (i32, i32) {
    %c0_i32 = arith.constant 0 : i32
    %c0_i32_0 = arith.constant 0 : i32
    %c0_i32_1 = arith.constant 0 : i32
    return %c0_i32, %c0_i32_0 : i32, i32
  }
  func.func @transform_5(%arg0: i32) -> (i32, i32) {
    %c0_i32 = arith.constant 0 : i32
    %c0_i32_0 = arith.constant 0 : i32
    %c0_i32_1 = arith.constant 0 : i32
    return %c0_i32, %c0_i32_0 : i32, i32
  }
  func.func @transform_6(%arg0: i32) -> (i32, i32) {
    %c0_i32 = arith.constant 0 : i32
    %c0_i32_0 = arith.constant 0 : i32
    %c0_i32_1 = arith.constant 0 : i32
    return %c0_i32, %c0_i32_0 : i32, i32
  }
  func.func @transform_7(%arg0: i32) -> (i32, i32) {
    %c0_i32 = arith.constant 0 : i32
    %c0_i32_0 = arith.constant 0 : i32
    return %arg0, %c0_i32 : i32, i32
  }
}

</mosaic_0001>

<llo_original>
// kernel: tpu_custom_call.1
$region0: #{tpu_custom_call.1}
  #allocation0 [shape = 'u32[]', space=smem, size = 0x4, offset = 0x4, fixed_abs, tag = 'smem constant byte address 0x4 - core index']
  #allocation1 [shape = 'u32[72,128]{1,0:T(1,128)}', space=vmem, size = 0x9000, scoped, tag = 'internal scratch']
  %s0 = inlined_call_operand.vmem [shape: bf16[16,1024], index: 0, kind: input, shape index: {}]
  %s1 = inlined_call_operand.hbm [shape: bf16[1024,512], index: 1, kind: input, shape index: {}]
  %s2 = inlined_call_operand.hbm [shape: bf16[512,512], index: 2, kind: input, shape index: {}]
  %s3 = inlined_call_operand.hbm [shape: bf16[512,512], index: 3, kind: input, shape index: {}]
  %s4 = inlined_call_operand.vmem [shape: bf16[512,64], index: 4, kind: input, shape index: {}]
  %s5 = inlined_call_operand.vmem [shape: bf16[64,2], index: 5, kind: input, shape index: {}]
  %s6 = inlined_call_operand.vmem [shape: f32[1,1280], index: 6, kind: input, shape index: {}]
  %s7 = inlined_call_operand.vmem [shape: f32[8,2], index: 7, kind: output, shape index: {}]
  %s8 = sld [smem:[#allocation0]]
  $region50: #{tpu_custom_call.1} parent=0
    _
  %s10 = ssub.s32 1, %s8
  %s11 = scalar_select 0, %s10, %s8
  $region1: #{tpu_custom_call.1} parent=0
    #allocation2 [shape = 'u8[1048576]{0}', space=vmem, size = 0x100000, scoped, tag = 'input window, operand 1, single buffered']
    #allocation3 [shape = 's32[1]{0}', space=sflag, size = 0x4, scoped, tag = 'scoped memory for tpu_custom_call.1']
    #allocation4 [shape = 'u8[524288]{0}', space=vmem, size = 0x80000, scoped, tag = 'input window, operand 2, single buffered']
    #allocation5 [shape = 's32[1]{0}', space=sflag, size = 0x4, scoped, tag = 'scoped memory for tpu_custom_call.1']
    #allocation6 [shape = 'u8[524288]{0}', space=vmem, size = 0x80000, scoped, tag = 'input window, operand 3, single buffered']
    %12 = vsyncpa [#allocation3], 0
    %13 = vsyncpa [#allocation5], 0
    // Predicated region
    $region2: #{tpu_custom_call.1} parent=1 // pred_check
      _
    $region3: #{tpu_custom_call.1} parent=1 // pred_check_branch
      %15 = sbr.rel (0) target = $region5
    $region4: #{tpu_custom_call.1} parent=1 // pred_region
      _
    $region5: #{tpu_custom_call.1} parent=1 // pred_fallthru
      _
    // Predicated region
    $region6: #{tpu_custom_call.1} parent=1 // pred_check
      _
    $region7: #{tpu_custom_call.1} parent=1 // pred_check_branch
      %17 = sbr.rel (0) target = $region9
    $region8: #{tpu_custom_call.1} parent=1 // pred_region
      %19 = vsyncadd [#allocation3], 0
      %s20 = sshll.u32 %s1, 4
      %s21 = int_to_ptr.hbm [resolvable:$true] %s20
      %s22 = sshll.u32 [#allocation2], 4
      %s23 = int_to_ptr.vmem [resolvable:$true] %s22
      %28 = dma.hbm_to_vmem [thread:$0]  %s21, 32768, %s23, [#allocation3], 256, 256, 16
    $region9: #{tpu_custom_call.1} parent=1 // pred_fallthru
      _
    // Predicated region
    $region10: #{tpu_custom_call.1} parent=1 // pred_check
      _
    $region11: #{tpu_custom_call.1} parent=1 // pred_check_branch
      %30 = sbr.rel (0) target = $region13
    $region12: #{tpu_custom_call.1} parent=1 // pred_region
      %32 = vsyncadd [#allocation5], 0
      %s33 = sshll.u32 %s2, 4
      %s34 = int_to_ptr.hbm [resolvable:$true] %s33
      %s35 = sshll.u32 [#allocation4], 4
      %s36 = int_to_ptr.vmem [resolvable:$true] %s35
      %41 = dma.hbm_to_vmem [thread:$0]  %s34, 16384, %s36, [#allocation5], 256, 256, 16
    $region13: #{tpu_custom_call.1} parent=1 // pred_fallthru
      _
    // Predicated region
    $region14: #{tpu_custom_call.1} parent=1 // pred_check
      _
    $region15: #{tpu_custom_call.1} parent=1 // pred_check_branch
      %43 = sbr.rel (0) target = $region17
    $region16: #{tpu_custom_call.1} parent=1 // pred_region
      %45 = vsyncadd [#allocation5], 0
      %s46 = sshll.u32 %s3, 4
      %s47 = int_to_ptr.hbm [resolvable:$true] %s46
      %s48 = sshll.u32 [#allocation6], 4
      %s49 = int_to_ptr.vmem [resolvable:$true] %s48
      %54 = dma.hbm_to_vmem [thread:$0]  %s47, 16384, %s49, [#allocation5], 256, 256, 16
    $region17: #{tpu_custom_call.1} parent=1 // pred_fallthru
      _
    // Predicated region
    $region18: #{tpu_custom_call.1} parent=1 // pred_check
      _
    $region19: #{tpu_custom_call.1} parent=1 // pred_check_branch
      %56 = sbr.rel (0) target = $region21
    $region20: #{tpu_custom_call.1} parent=1 // pred_region
      _
    $region21: #{tpu_custom_call.1} parent=1 // pred_fallthru
      _
    // Predicated region
    $region22: #{tpu_custom_call.1} parent=1 // pred_check
      _
    $region23: #{tpu_custom_call.1} parent=1 // pred_check_branch
      %58 = sbr.rel (0) target = $region25
    $region24: #{tpu_custom_call.1} parent=1 // pred_region
      _
    $region25: #{tpu_custom_call.1} parent=1 // pred_fallthru
      _
    // Predicated region
    $region26: #{tpu_custom_call.1} parent=1 // pred_check
      _
    $region27: #{tpu_custom_call.1} parent=1 // pred_check_branch
      %60 = sbr.rel (0) target = $region29
    $region28: #{tpu_custom_call.1} parent=1 // pred_region
      _
    $region29: #{tpu_custom_call.1} parent=1 // pred_fallthru
      _
    // Predicated region
    $region30: #{tpu_custom_call.1} parent=1 // pred_check
      _
    $region31: #{tpu_custom_call.1} parent=1 // pred_check_branch
      %62 = sbr.rel (0) target = $region33
    $region32: #{tpu_custom_call.1} parent=1 // pred_region
      %64 = dma.done [#allocation3], 32768
    $region33: #{tpu_custom_call.1} parent=1 // pred_fallthru
      _
    // Predicated region
    $region34: #{tpu_custom_call.1} parent=1 // pred_check
      _
    $region35: #{tpu_custom_call.1} parent=1 // pred_check_branch
      %66 = sbr.rel (0) target = $region37
    $region36: #{tpu_custom_call.1} parent=1 // pred_region
      %68 = dma.done [#allocation5], 16384
    $region37: #{tpu_custom_call.1} parent=1 // pred_fallthru
      _
    // Predicated region
    $region38: #{tpu_custom_call.1} parent=1 // pred_check
      _
    $region39: #{tpu_custom_call.1} parent=1 // pred_check_branch
      %70 = sbr.rel (0) target = $region41
    $region40: #{tpu_custom_call.1} parent=1 // pred_region
      %72 = dma.done [#allocation5], 16384
    $region41: #{tpu_custom_call.1} parent=1 // pred_fallthru
      _
    %v74 = vld [vmem:[%s0] sm:$0xff]
    %v75 = vld [vmem:[%s0 + $0x8] sm:$0xff]
    %v76 = vld [vmem:[%s0 + $0x10] sm:$0xff]
    %v77 = vld [vmem:[%s0 + $0x18] sm:$0xff]
    %v78 = vld [vmem:[%s0 + $0x20] sm:$0xff]
    %v79 = vld [vmem:[%s0 + $0x28] sm:$0xff]
    %v80 = vld [vmem:[%s0 + $0x30] sm:$0xff]
    %v81 = vld [vmem:[%s0 + $0x38] sm:$0xff]
    %v82 = vld [vmem:[#allocation2] sm:$0xff]
    %v83 = vld [vmem:[#allocation2 + $0x8] sm:$0xff]
    %v84 = vld [vmem:[#allocation2 + $0x10] sm:$0xff]
    %v85 = vld [vmem:[#allocation2 + $0x18] sm:$0xff]
    %v86 = vld [vmem:[#allocation2 + $0x20] sm:$0xff]
    %v87 = vld [vmem:[#allocation2 + $0x28] sm:$0xff]
    %v88 = vld [vmem:[#allocation2 + $0x30] sm:$0xff]
    %v89 = vld [vmem:[#allocation2 + $0x38] sm:$0xff]
    %v90 = vld [vmem:[#allocation2 + $0x40] sm:$0xff]
    %v91 = vld [vmem:[#allocation2 + $0x48] sm:$0xff]
    %v92 = vld [vmem:[#allocation2 + $0x50] sm:$0xff]
    %v93 = vld [vmem:[#allocation2 + $0x58] sm:$0xff]
    %v94 = vld [vmem:[#allocation2 + $0x60] sm:$0xff]
    %v95 = vld [vmem:[#allocation2 + $0x68] sm:$0xff]
    %v96 = vld [vmem:[#allocation2 + $0x70] sm:$0xff]
    %v97 = vld [vmem:[#allocation2 + $0x78] sm:$0xff]
    %v98 = vld [vmem:[#allocation2 + $0x80] sm:$0xff]
    %v99 = vld [vmem:[#allocation2 + $0x88] sm:$0xff]
    %v100 = vld [vmem:[#allocation2 + $0x90] sm:$0xff]
    %v101 = vld [vmem:[#allocation2 + $0x98] sm:$0xff]
    %v102 = vld [vmem:[#allocation2 + $0xa0] sm:$0xff]
    %v103 = vld [vmem:[#allocation2 + $0xa8] sm:$0xff]
    %v104 = vld [vmem:[#allocation2 + $0xb0] sm:$0xff]
    %v105 = vld [vmem:[#allocation2 + $0xb8] sm:$0xff]
    %v106 = vld [vmem:[#allocation2 + $0xc0] sm:$0xff]
    %v107 = vld [vmem:[#allocation2 + $0xc8] sm:$0xff]
    %v108 = vld [vmem:[#allocation2 + $0xd0] sm:$0xff]
    %v109 = vld [vmem:[#allocation2 + $0xd8] sm:$0xff]
    %v110 = vld [vmem:[#allocation2 + $0xe0] sm:$0xff]
    %v111 = vld [vmem:[#allocation2 + $0xe8] sm:$0xff]
    %v112 = vld [vmem:[#allocation2 + $0xf0] sm:$0xff]
    %v113 = vld [vmem:[#allocation2 + $0xf8] sm:$0xff]
    %v114 = vld [vmem:[#allocation2 + $0x100] sm:$0xff]
    %v115 = vld [vmem:[#allocation2 + $0x108] sm:$0xff]
    %v116 = vld [vmem:[#allocation2 + $0x110] sm:$0xff]
    %v117 = vld [vmem:[#allocation2 + $0x118] sm:$0xff]
    %v118 = vld [vmem:[#allocation2 + $0x120] sm:$0xff]
    %v119 = vld [vmem:[#allocation2 + $0x128] sm:$0xff]
    %v120 = vld [vmem:[#allocation2 + $0x130] sm:$0xff]
    %v121 = vld [vmem:[#allocation2 + $0x138] sm:$0xff]
    %v122 = vld [vmem:[#allocation2 + $0x140] sm:$0xff]
    %v123 = vld [vmem:[#allocation2 + $0x148] sm:$0xff]
    %v124 = vld [vmem:[#allocation2 + $0x150] sm:$0xff]
    %v125 = vld [vmem:[#allocation2 + $0x158] sm:$0xff]
    %v126 = vld [vmem:[#allocation2 + $0x160] sm:$0xff]
    %v127 = vld [vmem:[#allocation2 + $0x168] sm:$0xff]
    %v128 = vld [vmem:[#allocation2 + $0x170] sm:$0xff]
    %v129 = vld [vmem:[#allocation2 + $0x178] sm:$0xff]
    %v130 = vld [vmem:[#allocation2 + $0x180] sm:$0xff]
    %v131 = vld [vmem:[#allocation2 + $0x188] sm:$0xff]
    %v132 = vld [vmem:[#allocation2 + $0x190] sm:$0xff]
    %v133 = vld [vmem:[#allocation2 + $0x198] sm:$0xff]
    %v134 = vld [vmem:[#allocation2 + $0x1a0] sm:$0xff]
    %v135 = vld [vmem:[#allocation2 + $0x1a8] sm:$0xff]
    %v136 = vld [vmem:[#allocation2 + $0x1b0] sm:$0xff]
    %v137 = vld [vmem:[#allocation2 + $0x1b8] sm:$0xff]
    %v138 = vld [vmem:[#allocation2 + $0x1c0] sm:$0xff]
    %v139 = vld [vmem:[#allocation2 + $0x1c8] sm:$0xff]
    %v140 = vld [vmem:[#allocation2 + $0x1d0] sm:$0xff]
    %v141 = vld [vmem:[#allocation2 + $0x1d8] sm:$0xff]
    %v142 = vld [vmem:[#allocation2 + $0x1e0] sm:$0xff]
    %v143 = vld [vmem:[#allocation2 + $0x1e8] sm:$0xff]
    %v144 = vld [vmem:[#allocation2 + $0x1f0] sm:$0xff]
    %v145 = vld [vmem:[#allocation2 + $0x1f8] sm:$0xff]
    %v146 = vld [vmem:[#allocation2 + $0x200] sm:$0xff]
    %v147 = vld [vmem:[#allocation2 + $0x208] sm:$0xff]
    %v148 = vld [vmem:[#allocation2 + $0x210] sm:$0xff]
    %v149 = vld [vmem:[#allocation2 + $0x218] sm:$0xff]
    %v150 = vld [vmem:[#allocation2 + $0x220] sm:$0xff]
    %v151 = vld [vmem:[#allocation2 + $0x228] sm:$0xff]
    %v152 = vld [vmem:[#allocation2 + $0x230] sm:$0xff]
    %v153 = vld [vmem:[#allocation2 + $0x238] sm:$0xff]
    %v154 = vld [vmem:[#allocation2 + $0x240] sm:$0xff]
    %v155 = vld [vmem:[#allocation2 + $0x248] sm:$0xff]
    %v156 = vld [vmem:[#allocation2 + $0x250] sm:$0xff]
    %v157 = vld [vmem:[#allocation2 + $0x258] sm:$0xff]
    %v158 = vld [vmem:[#allocation2 + $0x260] sm:$0xff]
    %v159 = vld [vmem:[#allocation2 + $0x268] sm:$0xff]
    %v160 = vld [vmem:[#allocation2 + $0x270] sm:$0xff]
    %v161 = vld [vmem:[#allocation2 + $0x278] sm:$0xff]
    %v162 = vld [vmem:[#allocation2 + $0x280] sm:$0xff]
    %v163 = vld [vmem:[#allocation2 + $0x288] sm:$0xff]
    %v164 = vld [vmem:[#allocation2 + $0x290] sm:$0xff]
    %v165 = vld [vmem:[#allocation2 + $0x298] sm:$0xff]
    %v166 = vld [vmem:[#allocation2 + $0x2a0] sm:$0xff]
    %v167 = vld [vmem:[#allocation2 + $0x2a8] sm:$0xff]
    %v168 = vld [vmem:[#allocation2 + $0x2b0] sm:$0xff]
    %v169 = vld [vmem:[#allocation2 + $0x2b8] sm:$0xff]
    %v170 = vld [vmem:[#allocation2 + $0x2c0] sm:$0xff]
    %v171 = vld [vmem:[#allocation2 + $0x2c8] sm:$0xff]
    %v172 = vld [vmem:[#allocation2 + $0x2d0] sm:$0xff]
    %v173 = vld [vmem:[#allocation2 + $0x2d8] sm:$0xff]
    %v174 = vld [vmem:[#allocation2 + $0x2e0] sm:$0xff]
    %v175 = vld [vmem:[#allocation2 + $0x2e8] sm:$0xff]
    %v176 = vld [vmem:[#allocation2 + $0x2f0] sm:$0xff]
    %v177 = vld [vmem:[#allocation2 + $0x2f8] sm:$0xff]
    %v178 = vld [vmem:[#allocation2 + $0x300] sm:$0xff]
    %v179 = vld [vmem:[#allocation2 + $0x308] sm:$0xff]
    %v180 = vld [vmem:[#allocation2 + $0x310] sm:$0xff]
    %v181 = vld [vmem:[#allocation2 + $0x318] sm:$0xff]
    %v182 = vld [vmem:[#allocation2 + $0x320] sm:$0xff]
    %v183 = vld [vmem:[#allocation2 + $0x328] sm:$0xff]
    %v184 = vld [vmem:[#allocation2 + $0x330] sm:$0xff]
    %v185 = vld [vmem:[#allocation2 + $0x338] sm:$0xff]
    %v186 = vld [vmem:[#allocation2 + $0x340] sm:$0xff]
    %v187 = vld [vmem:[#allocation2 + $0x348] sm:$0xff]
    %v188 = vld [vmem:[#allocation2 + $0x350] sm:$0xff]
    %v189 = vld [vmem:[#allocation2 + $0x358] sm:$0xff]
    %v190 = vld [vmem:[#allocation2 + $0x360] sm:$0xff]
    %v191 = vld [vmem:[#allocation2 + $0x368] sm:$0xff]
    %v192 = vld [vmem:[#allocation2 + $0x370] sm:$0xff]
    %v193 = vld [vmem:[#allocation2 + $0x378] sm:$0xff]
    %v194 = vld [vmem:[#allocation2 + $0x380] sm:$0xff]
    %v195 = vld [vmem:[#allocation2 + $0x388] sm:$0xff]
    %v196 = vld [vmem:[#allocation2 + $0x390] sm:$0xff]
    %v197 = vld [vmem:[#allocation2 + $0x398] sm:$0xff]
    %v198 = vld [vmem:[#allocation2 + $0x3a0] sm:$0xff]
    %v199 = vld [vmem:[#allocation2 + $0x3a8] sm:$0xff]
    %v200 = vld [vmem:[#allocation2 + $0x3b0] sm:$0xff]
    %v201 = vld [vmem:[#allocation2 + $0x3b8] sm:$0xff]
    %v202 = vld [vmem:[#allocation2 + $0x3c0] sm:$0xff]
    %v203 = vld [vmem:[#allocation2 + $0x3c8] sm:$0xff]
    %v204 = vld [vmem:[#allocation2 + $0x3d0] sm:$0xff]
    %v205 = vld [vmem:[#allocation2 + $0x3d8] sm:$0xff]
    %v206 = vld [vmem:[#allocation2 + $0x3e0] sm:$0xff]
    %v207 = vld [vmem:[#allocation2 + $0x3e8] sm:$0xff]
    %v208 = vld [vmem:[#allocation2 + $0x3f0] sm:$0xff]
    %v209 = vld [vmem:[#allocation2 + $0x3f8] sm:$0xff]
    %v210 = vld [vmem:[#allocation2 + $0x400] sm:$0xff]
    %v211 = vld [vmem:[#allocation2 + $0x408] sm:$0xff]
    %v212 = vld [vmem:[#allocation2 + $0x410] sm:$0xff]
    %v213 = vld [vmem:[#allocation2 + $0x418] sm:$0xff]
    %v214 = vld [vmem:[#allocation2 + $0x420] sm:$0xff]
    %v215 = vld [vmem:[#allocation2 + $0x428] sm:$0xff]
    %v216 = vld [vmem:[#allocation2 + $0x430] sm:$0xff]
    %v217 = vld [vmem:[#allocation2 + $0x438] sm:$0xff]
    %v218 = vld [vmem:[#allocation2 + $0x440] sm:$0xff]
    %v219 = vld [vmem:[#allocation2 + $0x448] sm:$0xff]
    %v220 = vld [vmem:[#allocation2 + $0x450] sm:$0xff]
    %v221 = vld [vmem:[#allocation2 + $0x458] sm:$0xff]
    %v222 = vld [vmem:[#allocation2 + $0x460] sm:$0xff]
    %v223 = vld [vmem:[#allocation2 + $0x468] sm:$0xff]
    %v224 = vld [vmem:[#allocation2 + $0x470] sm:$0xff]
    %v225 = vld [vmem:[#allocation2 + $0x478] sm:$0xff]
    %v226 = vld [vmem:[#allocation2 + $0x480] sm:$0xff]
    %v227 = vld [vmem:[#allocation2 + $0x488] sm:$0xff]
    %v228 = vld [vmem:[#allocation2 + $0x490] sm:$0xff]
    %v229 = vld [vmem:[#allocation2 + $0x498] sm:$0xff]
    %v230 = vld [vmem:[#allocation2 + $0x4a0] sm:$0xff]
    %v231 = vld [vmem:[#allocation2 + $0x4a8] sm:$0xff]
    %v232 = vld [vmem:[#allocation2 + $0x4b0] sm:$0xff]
    %v233 = vld [vmem:[#allocation2 + $0x4b8] sm:$0xff]
    %v234 = vld [vmem:[#allocation2 + $0x4c0] sm:$0xff]
    %v235 = vld [vmem:[#allocation2 + $0x4c8] sm:$0xff]
    %v236 = vld [vmem:[#allocation2 + $0x4d0] sm:$0xff]
    %v237 = vld [vmem:[#allocation2 + $0x4d8] sm:$0xff]
    %v238 = vld [vmem:[#allocation2 + $0x4e0] sm:$0xff]
    %v239 = vld [vmem:[#allocation2 + $0x4e8] sm:$0xff]
    %v240 = vld [vmem:[#allocation2 + $0x4f0] sm:$0xff]
    %v241 = vld [vmem:[#allocation2 + $0x4f8] sm:$0xff]
    %v242 = vld [vmem:[#allocation2 + $0x500] sm:$0xff]
    %v243 = vld [vmem:[#allocation2 + $0x508] sm:$0xff]
    %v244 = vld [vmem:[#allocation2 + $0x510] sm:$0xff]
    %v245 = vld [vmem:[#allocation2 + $0x518] sm:$0xff]
    %v246 = vld [vmem:[#allocation2 + $0x520] sm:$0xff]
    %v247 = vld [vmem:[#allocation2 + $0x528] sm:$0xff]
    %v248 = vld [vmem:[#allocation2 + $0x530] sm:$0xff]
    %v249 = vld [vmem:[#allocation2 + $0x538] sm:$0xff]
    %v250 = vld [vmem:[#allocation2 + $0x540] sm:$0xff]
    %v251 = vld [vmem:[#allocation2 + $0x548] sm:$0xff]
    %v252 = vld [vmem:[#allocation2 + $0x550] sm:$0xff]
    %v253 = vld [vmem:[#allocation2 + $0x558] sm:$0xff]
    %v254 = vld [vmem:[#allocation2 + $0x560] sm:$0xff]
    %v255 = vld [vmem:[#allocation2 + $0x568] sm:$0xff]
    %v256 = vld [vmem:[#allocation2 + $0x570] sm:$0xff]
    %v257 = vld [vmem:[#allocation2 + $0x578] sm:$0xff]
    %v258 = vld [vmem:[#allocation2 + $0x580] sm:$0xff]
    %v259 = vld [vmem:[#allocation2 + $0x588] sm:$0xff]
    %v260 = vld [vmem:[#allocation2 + $0x590] sm:$0xff]
    %v261 = vld [vmem:[#allocation2 + $0x598] sm:$0xff]
    %v262 = vld [vmem:[#allocation2 + $0x5a0] sm:$0xff]
    %v263 = vld [vmem:[#allocation2 + $0x5a8] sm:$0xff]
    %v264 = vld [vmem:[#allocation2 + $0x5b0] sm:$0xff]
    %v265 = vld [vmem:[#allocation2 + $0x5b8] sm:$0xff]
    %v266 = vld [vmem:[#allocation2 + $0x5c0] sm:$0xff]
    %v267 = vld [vmem:[#allocation2 + $0x5c8] sm:$0xff]
    %v268 = vld [vmem:[#allocation2 + $0x5d0] sm:$0xff]
    %v269 = vld [vmem:[#allocation2 + $0x5d8] sm:$0xff]
    %v270 = vld [vmem:[#allocation2 + $0x5e0] sm:$0xff]
    %v271 = vld [vmem:[#allocation2 + $0x5e8] sm:$0xff]
    %v272 = vld [vmem:[#allocation2 + $0x5f0] sm:$0xff]
    %v273 = vld [vmem:[#allocation2 + $0x5f8] sm:$0xff]
    %v274 = vld [vmem:[#allocation2 + $0x600] sm:$0xff]
    %v275 = vld [vmem:[#allocation2 + $0x608] sm:$0xff]
    %v276 = vld [vmem:[#allocation2 + $0x610] sm:$0xff]
    %v277 = vld [vmem:[#allocation2 + $0x618] sm:$0xff]
    %v278 = vld [vmem:[#allocation2 + $0x620] sm:$0xff]
    %v279 = vld [vmem:[#allocation2 + $0x628] sm:$0xff]
    %v280 = vld [vmem:[#allocation2 + $0x630] sm:$0xff]
    %v281 = vld [vmem:[#allocation2 + $0x638] sm:$0xff]
    %v282 = vld [vmem:[#allocation2 + $0x640] sm:$0xff]
    %v283 = vld [vmem:[#allocation2 + $0x648] sm:$0xff]
    %v284 = vld [vmem:[#allocation2 + $0x650] sm:$0xff]
    %v285 = vld [vmem:[#allocation2 + $0x658] sm:$0xff]
    %v286 = vld [vmem:[#allocation2 + $0x660] sm:$0xff]
    %v287 = vld [vmem:[#allocation2 + $0x668] sm:$0xff]
    %v288 = vld [vmem:[#allocation2 + $0x670] sm:$0xff]
    %v289 = vld [vmem:[#allocation2 + $0x678] sm:$0xff]
    %v290 = vld [vmem:[#allocation2 + $0x680] sm:$0xff]
    %v291 = vld [vmem:[#allocation2 + $0x688] sm:$0xff]
    %v292 = vld [vmem:[#allocation2 + $0x690] sm:$0xff]
    %v293 = vld [vmem:[#allocation2 + $0x698] sm:$0xff]
    %v294 = vld [vmem:[#allocation2 + $0x6a0] sm:$0xff]
    %v295 = vld [vmem:[#allocation2 + $0x6a8] sm:$0xff]
    %v296 = vld [vmem:[#allocation2 + $0x6b0] sm:$0xff]
    %v297 = vld [vmem:[#allocation2 + $0x6b8] sm:$0xff]
    %v298 = vld [vmem:[#allocation2 + $0x6c0] sm:$0xff]
    %v299 = vld [vmem:[#allocation2 + $0x6c8] sm:$0xff]
    %v300 = vld [vmem:[#allocation2 + $0x6d0] sm:$0xff]
    %v301 = vld [vmem:[#allocation2 + $0x6d8] sm:$0xff]
    %v302 = vld [vmem:[#allocation2 + $0x6e0] sm:$0xff]
    %v303 = vld [vmem:[#allocation2 + $0x6e8] sm:$0xff]
    %v304 = vld [vmem:[#allocation2 + $0x6f0] sm:$0xff]
    %v305 = vld [vmem:[#allocation2 + $0x6f8] sm:$0xff]
    %v306 = vld [vmem:[#allocation2 + $0x700] sm:$0xff]
    %v307 = vld [vmem:[#allocation2 + $0x708] sm:$0xff]
    %v308 = vld [vmem:[#allocation2 + $0x710] sm:$0xff]
    %v309 = vld [vmem:[#allocation2 + $0x718] sm:$0xff]
    %v310 = vld [vmem:[#allocation2 + $0x720] sm:$0xff]
    %v311 = vld [vmem:[#allocation2 + $0x728] sm:$0xff]
    %v312 = vld [vmem:[#allocation2 + $0x730] sm:$0xff]
    %v313 = vld [vmem:[#allocation2 + $0x738] sm:$0xff]
    %v314 = vld [vmem:[#allocation2 + $0x740] sm:$0xff]
    %v315 = vld [vmem:[#allocation2 + $0x748] sm:$0xff]
    %v316 = vld [vmem:[#allocation2 + $0x750] sm:$0xff]
    %v317 = vld [vmem:[#allocation2 + $0x758] sm:$0xff]
    %v318 = vld [vmem:[#allocation2 + $0x760] sm:$0xff]
    %v319 = vld [vmem:[#allocation2 + $0x768] sm:$0xff]
    %v320 = vld [vmem:[#allocation2 + $0x770] sm:$0xff]
    %v321 = vld [vmem:[#allocation2 + $0x778] sm:$0xff]
    %v322 = vld [vmem:[#allocation2 + $0x780] sm:$0xff]
    %v323 = vld [vmem:[#allocation2 + $0x788] sm:$0xff]
    %v324 = vld [vmem:[#allocation2 + $0x790] sm:$0xff]
    %v325 = vld [vmem:[#allocation2 + $0x798] sm:$0xff]
    %v326 = vld [vmem:[#allocation2 + $0x7a0] sm:$0xff]
    %v327 = vld [vmem:[#allocation2 + $0x7a8] sm:$0xff]
    %v328 = vld [vmem:[#allocation2 + $0x7b0] sm:$0xff]
    %v329 = vld [vmem:[#allocation2 + $0x7b8] sm:$0xff]
    %v330 = vld [vmem:[#allocation2 + $0x7c0] sm:$0xff]
    %v331 = vld [vmem:[#allocation2 + $0x7c8] sm:$0xff]
    %v332 = vld [vmem:[#allocation2 + $0x7d0] sm:$0xff]
    %v333 = vld [vmem:[#allocation2 + $0x7d8] sm:$0xff]
    %v334 = vld [vmem:[#allocation2 + $0x7e0] sm:$0xff]
    %v335 = vld [vmem:[#allocation2 + $0x7e8] sm:$0xff]
    %v336 = vld [vmem:[#allocation2 + $0x7f0] sm:$0xff]
    %v337 = vld [vmem:[#allocation2 + $0x7f8] sm:$0xff]
    %v338 = vld [vmem:[%s6] sm:$0xf]
    %v340 = vperm.slane %v338, 0
    %v341 = vperm.slane %v338, 1
    %v342 = vperm.slane %v338, 2
    %v343 = vperm.slane %v338, 3
    %v356 = vunpack.c.l.b16 %v74
    %v357 = vunpack.c.h.b16 %v74
    %v358 = vunpack.c.l.b16 %v75
    %v359 = vunpack.c.h.b16 %v75
    %v360 = vunpack.c.l.b16 %v76
    %v361 = vunpack.c.h.b16 %v76
    %v362 = vunpack.c.l.b16 %v77
    %v363 = vunpack.c.h.b16 %v77
    %v364 = vunpack.c.l.b16 %v78
    %v365 = vunpack.c.h.b16 %v78
    %v366 = vunpack.c.l.b16 %v79
    %v367 = vunpack.c.h.b16 %v79
    %v368 = vunpack.c.l.b16 %v80
    %v369 = vunpack.c.h.b16 %v80
    %v370 = vunpack.c.l.b16 %v81
    %v371 = vunpack.c.h.b16 %v81
    %v372 = vpack.c.b16 %v364, %v356
    %v373 = vpack.c.b16 %v365, %v357
    %v374 = vpack.c.b16 %v366, %v358
    %v375 = vpack.c.b16 %v367, %v359
    %v376 = vpack.c.b16 %v368, %v360
    %v377 = vpack.c.b16 %v369, %v361
    %v378 = vpack.c.b16 %v370, %v362
    %v379 = vpack.c.b16 %v371, %v363
    %v644 = vunpack.c.l.b16 %v82
    %v645 = vunpack.c.h.b16 %v82
    %v646 = vunpack.c.l.b16 %v83
    %v647 = vunpack.c.h.b16 %v83
    %v648 = vunpack.c.l.b16 %v84
    %v649 = vunpack.c.h.b16 %v84
    %v650 = vunpack.c.l.b16 %v85
    %v651 = vunpack.c.h.b16 %v85
    %v652 = vunpack.c.l.b16 %v86
    %v653 = vunpack.c.h.b16 %v86
    %v654 = vunpack.c.l.b16 %v87
    %v655 = vunpack.c.h.b16 %v87
    %v656 = vunpack.c.l.b16 %v88
    %v657 = vunpack.c.h.b16 %v88
    %v658 = vunpack.c.l.b16 %v89
    %v659 = vunpack.c.h.b16 %v89
    %v660 = vunpack.c.l.b16 %v90
    %v661 = vunpack.c.h.b16 %v90
    %v662 = vunpack.c.l.b16 %v91
    %v663 = vunpack.c.h.b16 %v91
    %v664 = vunpack.c.l.b16 %v92
    %v665 = vunpack.c.h.b16 %v92
    %v666 = vunpack.c.l.b16 %v93
    %v667 = vunpack.c.h.b16 %v93
    %v668 = vunpack.c.l.b16 %v94
    %v669 = vunpack.c.h.b16 %v94
    %v670 = vunpack.c.l.b16 %v95
    %v671 = vunpack.c.h.b16 %v95
    %v672 = vunpack.c.l.b16 %v96
    %v673 = vunpack.c.h.b16 %v96
    %v674 = vunpack.c.l.b16 %v97
    %v675 = vunpack.c.h.b16 %v97
    %v676 = vunpack.c.l.b16 %v98
    %v677 = vunpack.c.h.b16 %v98
    %v678 = vunpack.c.l.b16 %v99
    %v679 = vunpack.c.h.b16 %v99
    %v680 = vunpack.c.l.b16 %v100
    %v681 = vunpack.c.h.b16 %v100
    %v682 = vunpack.c.l.b16 %v101
    %v683 = vunpack.c.h.b16 %v101
    %v684 = vunpack.c.l.b16 %v102
    %v685 = vunpack.c.h.b16 %v102
    %v686 = vunpack.c.l.b16 %v103
    %v687 = vunpack.c.h.b16 %v103
    %v688 = vunpack.c.l.b16 %v104
    %v689 = vunpack.c.h.b16 %v104
    %v690 = vunpack.c.l.b16 %v105
    %v691 = vunpack.c.h.b16 %v105
    %v692 = vunpack.c.l.b16 %v106
    %v693 = vunpack.c.h.b16 %v106
    %v694 = vunpack.c.l.b16 %v107
    %v695 = vunpack.c.h.b16 %v107
    %v696 = vunpack.c.l.b16 %v108
    %v697 = vunpack.c.h.b16 %v108
    %v698 = vunpack.c.l.b16 %v109
    %v699 = vunpack.c.h.b16 %v109
    %v700 = vunpack.c.l.b16 %v110
    %v701 = vunpack.c.h.b16 %v110
    %v702 = vunpack.c.l.b16 %v111
    %v703 = vunpack.c.h.b16 %v111
    %v704 = vunpack.c.l.b16 %v112
    %v705 = vunpack.c.h.b16 %v112
    %v706 = vunpack.c.l.b16 %v113
    %v707 = vunpack.c.h.b16 %v113
    %v708 = vunpack.c.l.b16 %v114
    %v709 = vunpack.c.h.b16 %v114
    %v710 = vunpack.c.l.b16 %v115
    %v711 = vunpack.c.h.b16 %v115
    %v712 = vunpack.c.l.b16 %v116
    %v713 = vunpack.c.h.b16 %v116
    %v714 = vunpack.c.l.b16 %v117
    %v715 = vunpack.c.h.b16 %v117
    %v716 = vunpack.c.l.b16 %v118
    %v717 = vunpack.c.h.b16 %v118
    %v718 = vunpack.c.l.b16 %v119
    %v719 = vunpack.c.h.b16 %v119
    %v720 = vunpack.c.l.b16 %v120
    %v721 = vunpack.c.h.b16 %v120
    %v722 = vunpack.c.l.b16 %v121
    %v723 = vunpack.c.h.b16 %v121
    %v724 = vunpack.c.l.b16 %v122
    %v725 = vunpack.c.h.b16 %v122
    %v726 = vunpack.c.l.b16 %v123
    %v727 = vunpack.c.h.b16 %v123
    %v728 = vunpack.c.l.b16 %v124
    %v729 = vunpack.c.h.b16 %v124
    %v730 = vunpack.c.l.b16 %v125
    %v731 = vunpack.c.h.b16 %v125
    %v732 = vunpack.c.l.b16 %v126
    %v733 = vunpack.c.h.b16 %v126
    %v734 = vunpack.c.l.b16 %v127
    %v735 = vunpack.c.h.b16 %v127
    %v736 = vunpack.c.l.b16 %v128
    %v737 = vunpack.c.h.b16 %v128
    %v738 = vunpack.c.l.b16 %v129
    %v739 = vunpack.c.h.b16 %v129
    %v740 = vunpack.c.l.b16 %v130
    %v741 = vunpack.c.h.b16 %v130
    %v742 = vunpack.c.l.b16 %v131
    %v743 = vunpack.c.h.b16 %v131
    %v744 = vunpack.c.l.b16 %v132
    %v745 = vunpack.c.h.b16 %v132
    %v746 = vunpack.c.l.b16 %v133
    %v747 = vunpack.c.h.b16 %v133
    %v748 = vunpack.c.l.b16 %v134
    %v749 = vunpack.c.h.b16 %v134
    %v750 = vunpack.c.l.b16 %v135
    %v751 = vunpack.c.h.b16 %v135
    %v752 = vunpack.c.l.b16 %v136
    %v753 = vunpack.c.h.b16 %v136
    %v754 = vunpack.c.l.b16 %v137
    %v755 = vunpack.c.h.b16 %v137
    %v756 = vunpack.c.l.b16 %v138
    %v757 = vunpack.c.h.b16 %v138
    %v758 = vunpack.c.l.b16 %v139
    %v759 = vunpack.c.h.b16 %v139
    %v760 = vunpack.c.l.b16 %v140
    %v761 = vunpack.c.h.b16 %v140
    %v762 = vunpack.c.l.b16 %v141
    %v763 = vunpack.c.h.b16 %v141
    %v764 = vunpack.c.l.b16 %v142
    %v765 = vunpack.c.h.b16 %v142
    %v766 = vunpack.c.l.b16 %v143
    %v767 = vunpack.c.h.b16 %v143
    %v768 = vunpack.c.l.b16 %v144
    %v769 = vunpack.c.h.b16 %v144
    %v770 = vunpack.c.l.b16 %v145
    %v771 = vunpack.c.h.b16 %v145
    %v772 = vunpack.c.l.b16 %v146
    %v773 = vunpack.c.h.b16 %v146
    %v774 = vunpack.c.l.b16 %v147
    %v775 = vunpack.c.h.b16 %v147
    %v776 = vunpack.c.l.b16 %v148
    %v777 = vunpack.c.h.b16 %v148
    %v778 = vunpack.c.l.b16 %v149
    %v779 = vunpack.c.h.b16 %v149
    %v780 = vunpack.c.l.b16 %v150
    %v781 = vunpack.c.h.b16 %v150
    %v782 = vunpack.c.l.b16 %v151
    %v783 = vunpack.c.h.b16 %v151
    %v784 = vunpack.c.l.b16 %v152
    %v785 = vunpack.c.h.b16 %v152
    %v786 = vunpack.c.l.b16 %v153
    %v787 = vunpack.c.h.b16 %v153
    %v788 = vunpack.c.l.b16 %v154
    %v789 = vunpack.c.h.b16 %v154
    %v790 = vunpack.c.l.b16 %v155
    %v791 = vunpack.c.h.b16 %v155
    %v792 = vunpack.c.l.b16 %v156
    %v793 = vunpack.c.h.b16 %v156
    %v794 = vunpack.c.l.b16 %v157
    %v795 = vunpack.c.h.b16 %v157
    %v796 = vunpack.c.l.b16 %v158
    %v797 = vunpack.c.h.b16 %v158
    %v798 = vunpack.c.l.b16 %v159
    %v799 = vunpack.c.h.b16 %v159
    %v800 = vunpack.c.l.b16 %v160
    %v801 = vunpack.c.h.b16 %v160
    %v802 = vunpack.c.l.b16 %v161
    %v803 = vunpack.c.h.b16 %v161
    %v804 = vunpack.c.l.b16 %v162
    %v805 = vunpack.c.h.b16 %v162
    %v806 = vunpack.c.l.b16 %v163
    %v807 = vunpack.c.h.b16 %v163
    %v808 = vunpack.c.l.b16 %v164
    %v809 = vunpack.c.h.b16 %v164
    %v810 = vunpack.c.l.b16 %v165
    %v811 = vunpack.c.h.b16 %v165
    %v812 = vunpack.c.l.b16 %v166
    %v813 = vunpack.c.h.b16 %v166
    %v814 = vunpack.c.l.b16 %v167
    %v815 = vunpack.c.h.b16 %v167
    %v816 = vunpack.c.l.b16 %v168
    %v817 = vunpack.c.h.b16 %v168
    %v818 = vunpack.c.l.b16 %v169
    %v819 = vunpack.c.h.b16 %v169
    %v820 = vunpack.c.l.b16 %v170
    %v821 = vunpack.c.h.b16 %v170
    %v822 = vunpack.c.l.b16 %v171
    %v823 = vunpack.c.h.b16 %v171
    %v824 = vunpack.c.l.b16 %v172
    %v825 = vunpack.c.h.b16 %v172
    %v826 = vunpack.c.l.b16 %v173
    %v827 = vunpack.c.h.b16 %v173
    %v828 = vunpack.c.l.b16 %v174
    %v829 = vunpack.c.h.b16 %v174
    %v830 = vunpack.c.l.b16 %v175
    %v831 = vunpack.c.h.b16 %v175
    %v832 = vunpack.c.l.b16 %v176
    %v833 = vunpack.c.h.b16 %v176
    %v834 = vunpack.c.l.b16 %v177
    %v835 = vunpack.c.h.b16 %v177
    %v836 = vunpack.c.l.b16 %v178
    %v837 = vunpack.c.h.b16 %v178
    %v838 = vunpack.c.l.b16 %v179
    %v839 = vunpack.c.h.b16 %v179
    %v840 = vunpack.c.l.b16 %v180
    %v841 = vunpack.c.h.b16 %v180
    %v842 = vunpack.c.l.b16 %v181
    %v843 = vunpack.c.h.b16 %v181
    %v844 = vunpack.c.l.b16 %v182
    %v845 = vunpack.c.h.b16 %v182
    %v846 = vunpack.c.l.b16 %v183
    %v847 = vunpack.c.h.b16 %v183
    %v848 = vunpack.c.l.b16 %v184
    %v849 = vunpack.c.h.b16 %v184
    %v850 = vunpack.c.l.b16 %v185
    %v851 = vunpack.c.h.b16 %v185
    %v852 = vunpack.c.l.b16 %v186
    %v853 = vunpack.c.h.b16 %v186
    %v854 = vunpack.c.l.b16 %v187
    %v855 = vunpack.c.h.b16 %v187
    %v856 = vunpack.c.l.b16 %v188
    %v857 = vunpack.c.h.b16 %v188
    %v858 = vunpack.c.l.b16 %v189
    %v859 = vunpack.c.h.b16 %v189
    %v860 = vunpack.c.l.b16 %v190
    %v861 = vunpack.c.h.b16 %v190
    %v862 = vunpack.c.l.b16 %v191
    %v863 = vunpack.c.h.b16 %v191
    %v864 = vunpack.c.l.b16 %v192
    %v865 = vunpack.c.h.b16 %v192
    %v866 = vunpack.c.l.b16 %v193
    %v867 = vunpack.c.h.b16 %v193
    %v868 = vunpack.c.l.b16 %v194
    %v869 = vunpack.c.h.b16 %v194
    %v870 = vunpack.c.l.b16 %v195
    %v871 = vunpack.c.h.b16 %v195
    %v872 = vunpack.c.l.b16 %v196
    %v873 = vunpack.c.h.b16 %v196
    %v874 = vunpack.c.l.b16 %v197
    %v875 = vunpack.c.h.b16 %v197
    %v876 = vunpack.c.l.b16 %v198
    %v877 = vunpack.c.h.b16 %v198
    %v878 = vunpack.c.l.b16 %v199
    %v879 = vunpack.c.h.b16 %v199
    %v880 = vunpack.c.l.b16 %v200
    %v881 = vunpack.c.h.b16 %v200
    %v882 = vunpack.c.l.b16 %v201
    %v883 = vunpack.c.h.b16 %v201
    %v884 = vunpack.c.l.b16 %v202
    %v885 = vunpack.c.h.b16 %v202
    %v886 = vunpack.c.l.b16 %v203
    %v887 = vunpack.c.h.b16 %v203
    %v888 = vunpack.c.l.b16 %v204
    %v889 = vunpack.c.h.b16 %v204
    %v890 = vunpack.c.l.b16 %v205
    %v891 = vunpack.c.h.b16 %v205
    %v892 = vunpack.c.l.b16 %v206
    %v893 = vunpack.c.h.b16 %v206
    %v894 = vunpack.c.l.b16 %v207
    %v895 = vunpack.c.h.b16 %v207
    %v896 = vunpack.c.l.b16 %v208
    %v897 = vunpack.c.h.b16 %v208
    %v898 = vunpack.c.l.b16 %v209
    %v899 = vunpack.c.h.b16 %v209
    %v900 = vunpack.c.l.b16 %v210
    %v901 = vunpack.c.h.b16 %v210
    %v902 = vunpack.c.l.b16 %v211
    %v903 = vunpack.c.h.b16 %v211
    %v904 = vunpack.c.l.b16 %v212
    %v905 = vunpack.c.h.b16 %v212
    %v906 = vunpack.c.l.b16 %v213
    %v907 = vunpack.c.h.b16 %v213
    %v908 = vunpack.c.l.b16 %v214
    %v909 = vunpack.c.h.b16 %v214
    %v910 = vunpack.c.l.b16 %v215
    %v911 = vunpack.c.h.b16 %v215
    %v912 = vunpack.c.l.b16 %v216
    %v913 = vunpack.c.h.b16 %v216
    %v914 = vunpack.c.l.b16 %v217
    %v915 = vunpack.c.h.b16 %v217
    %v916 = vunpack.c.l.b16 %v218
    %v917 = vunpack.c.h.b16 %v218
    %v918 = vunpack.c.l.b16 %v219
    %v919 = vunpack.c.h.b16 %v219
    %v920 = vunpack.c.l.b16 %v220
    %v921 = vunpack.c.h.b16 %v220
    %v922 = vunpack.c.l.b16 %v221
    %v923 = vunpack.c.h.b16 %v221
    %v924 = vunpack.c.l.b16 %v222
    %v925 = vunpack.c.h.b16 %v222
    %v926 = vunpack.c.l.b16 %v223
    %v927 = vunpack.c.h.b16 %v223
    %v928 = vunpack.c.l.b16 %v224
    %v929 = vunpack.c.h.b16 %v224
    %v930 = vunpack.c.l.b16 %v225
    %v931 = vunpack.c.h.b16 %v225
    %v932 = vunpack.c.l.b16 %v226
    %v933 = vunpack.c.h.b16 %v226
    %v934 = vunpack.c.l.b16 %v227
    %v935 = vunpack.c.h.b16 %v227
    %v936 = vunpack.c.l.b16 %v228
    %v937 = vunpack.c.h.b16 %v228
    %v938 = vunpack.c.l.b16 %v229
    %v939 = vunpack.c.h.b16 %v229
    %v940 = vunpack.c.l.b16 %v230
    %v941 = vunpack.c.h.b16 %v230
    %v942 = vunpack.c.l.b16 %v231
    %v943 = vunpack.c.h.b16 %v231
    %v944 = vunpack.c.l.b16 %v232
    %v945 = vunpack.c.h.b16 %v232
    %v946 = vunpack.c.l.b16 %v233
    %v947 = vunpack.c.h.b16 %v233
    %v948 = vunpack.c.l.b16 %v234
    %v949 = vunpack.c.h.b16 %v234
    %v950 = vunpack.c.l.b16 %v235
    %v951 = vunpack.c.h.b16 %v235
    %v952 = vunpack.c.l.b16 %v236
    %v953 = vunpack.c.h.b16 %v236
    %v954 = vunpack.c.l.b16 %v237
    %v955 = vunpack.c.h.b16 %v237
    %v956 = vunpack.c.l.b16 %v238
    %v957 = vunpack.c.h.b16 %v238
    %v958 = vunpack.c.l.b16 %v239
    %v959 = vunpack.c.h.b16 %v239
    %v960 = vunpack.c.l.b16 %v240
    %v961 = vunpack.c.h.b16 %v240
    %v962 = vunpack.c.l.b16 %v241
    %v963 = vunpack.c.h.b16 %v241
    %v964 = vunpack.c.l.b16 %v242
    %v965 = vunpack.c.h.b16 %v242
    %v966 = vunpack.c.l.b16 %v243
    %v967 = vunpack.c.h.b16 %v243
    %v968 = vunpack.c.l.b16 %v244
    %v969 = vunpack.c.h.b16 %v244
    %v970 = vunpack.c.l.b16 %v245
    %v971 = vunpack.c.h.b16 %v245
    %v972 = vunpack.c.l.b16 %v246
    %v973 = vunpack.c.h.b16 %v246
    %v974 = vunpack.c.l.b16 %v247
    %v975 = vunpack.c.h.b16 %v247
    %v976 = vunpack.c.l.b16 %v248
    %v977 = vunpack.c.h.b16 %v248
    %v978 = vunpack.c.l.b16 %v249
    %v979 = vunpack.c.h.b16 %v249
    %v980 = vunpack.c.l.b16 %v250
    %v981 = vunpack.c.h.b16 %v250
    %v982 = vunpack.c.l.b16 %v251
    %v983 = vunpack.c.h.b16 %v251
    %v984 = vunpack.c.l.b16 %v252
    %v985 = vunpack.c.h.b16 %v252
    %v986 = vunpack.c.l.b16 %v253
    %v987 = vunpack.c.h.b16 %v253
    %v988 = vunpack.c.l.b16 %v254
    %v989 = vunpack.c.h.b16 %v254
    %v990 = vunpack.c.l.b16 %v255
    %v991 = vunpack.c.h.b16 %v255
    %v992 = vunpack.c.l.b16 %v256
    %v993 = vunpack.c.h.b16 %v256
    %v994 = vunpack.c.l.b16 %v257
    %v995 = vunpack.c.h.b16 %v257
    %v996 = vunpack.c.l.b16 %v258
    %v997 = vunpack.c.h.b16 %v258
    %v998 = vunpack.c.l.b16 %v259
    %v999 = vunpack.c.h.b16 %v259
    %v1000 = vunpack.c.l.b16 %v260
    %v1001 = vunpack.c.h.b16 %v260
    %v1002 = vunpack.c.l.b16 %v261
    %v1003 = vunpack.c.h.b16 %v261
    %v1004 = vunpack.c.l.b16 %v262
    %v1005 = vunpack.c.h.b16 %v262
    %v1006 = vunpack.c.l.b16 %v263
    %v1007 = vunpack.c.h.b16 %v263
    %v1008 = vunpack.c.l.b16 %v264
    %v1009 = vunpack.c.h.b16 %v264
    %v1010 = vunpack.c.l.b16 %v265
    %v1011 = vunpack.c.h.b16 %v265
    %v1012 = vunpack.c.l.b16 %v266
    %v1013 = vunpack.c.h.b16 %v266
    %v1014 = vunpack.c.l.b16 %v267
    %v1015 = vunpack.c.h.b16 %v267
    %v1016 = vunpack.c.l.b16 %v268
    %v1017 = vunpack.c.h.b16 %v268
    %v1018 = vunpack.c.l.b16 %v269
    %v1019 = vunpack.c.h.b16 %v269
    %v1020 = vunpack.c.l.b16 %v270
    %v1021 = vunpack.c.h.b16 %v270
    %v1022 = vunpack.c.l.b16 %v271
    %v1023 = vunpack.c.h.b16 %v271
    %v1024 = vunpack.c.l.b16 %v272
    %v1025 = vunpack.c.h.b16 %v272
    %v1026 = vunpack.c.l.b16 %v273
    %v1027 = vunpack.c.h.b16 %v273
    %v1028 = vunpack.c.l.b16 %v274
    %v1029 = vunpack.c.h.b16 %v274
    %v1030 = vunpack.c.l.b16 %v275
    %v1031 = vunpack.c.h.b16 %v275
    %v1032 = vunpack.c.l.b16 %v276
    %v1033 = vunpack.c.h.b16 %v276
    %v1034 = vunpack.c.l.b16 %v277
    %v1035 = vunpack.c.h.b16 %v277
    %v1036 = vunpack.c.l.b16 %v278
    %v1037 = vunpack.c.h.b16 %v278
    %v1038 = vunpack.c.l.b16 %v279
    %v1039 = vunpack.c.h.b16 %v279
    %v1040 = vunpack.c.l.b16 %v280
    %v1041 = vunpack.c.h.b16 %v280
    %v1042 = vunpack.c.l.b16 %v281
    %v1043 = vunpack.c.h.b16 %v281
    %v1044 = vunpack.c.l.b16 %v282
    %v1045 = vunpack.c.h.b16 %v282
    %v1046 = vunpack.c.l.b16 %v283
    %v1047 = vunpack.c.h.b16 %v283
    %v1048 = vunpack.c.l.b16 %v284
    %v1049 = vunpack.c.h.b16 %v284
    %v1050 = vunpack.c.l.b16 %v285
    %v1051 = vunpack.c.h.b16 %v285
    %v1052 = vunpack.c.l.b16 %v286
    %v1053 = vunpack.c.h.b16 %v286
    %v1054 = vunpack.c.l.b16 %v287
    %v1055 = vunpack.c.h.b16 %v287
    %v1056 = vunpack.c.l.b16 %v288
    %v1057 = vunpack.c.h.b16 %v288
    %v1058 = vunpack.c.l.b16 %v289
    %v1059 = vunpack.c.h.b16 %v289
    %v1060 = vunpack.c.l.b16 %v290
    %v1061 = vunpack.c.h.b16 %v290
    %v1062 = vunpack.c.l.b16 %v291
    %v1063 = vunpack.c.h.b16 %v291
    %v1064 = vunpack.c.l.b16 %v292
    %v1065 = vunpack.c.h.b16 %v292
    %v1066 = vunpack.c.l.b16 %v293
    %v1067 = vunpack.c.h.b16 %v293
    %v1068 = vunpack.c.l.b16 %v294
    %v1069 = vunpack.c.h.b16 %v294
    %v1070 = vunpack.c.l.b16 %v295
    %v1071 = vunpack.c.h.b16 %v295
    %v1072 = vunpack.c.l.b16 %v296
    %v1073 = vunpack.c.h.b16 %v296
    %v1074 = vunpack.c.l.b16 %v297
    %v1075 = vunpack.c.h.b16 %v297
    %v1076 = vunpack.c.l.b16 %v298
    %v1077 = vunpack.c.h.b16 %v298
    %v1078 = vunpack.c.l.b16 %v299
    %v1079 = vunpack.c.h.b16 %v299
    %v1080 = vunpack.c.l.b16 %v300
    %v1081 = vunpack.c.h.b16 %v300
    %v1082 = vunpack.c.l.b16 %v301
    %v1083 = vunpack.c.h.b16 %v301
    %v1084 = vunpack.c.l.b16 %v302
    %v1085 = vunpack.c.h.b16 %v302
    %v1086 = vunpack.c.l.b16 %v303
    %v1087 = vunpack.c.h.b16 %v303
    %v1088 = vunpack.c.l.b16 %v304
    %v1089 = vunpack.c.h.b16 %v304
    %v1090 = vunpack.c.l.b16 %v305
    %v1091 = vunpack.c.h.b16 %v305
    %v1092 = vunpack.c.l.b16 %v306
    %v1093 = vunpack.c.h.b16 %v306
    %v1094 = vunpack.c.l.b16 %v307
    %v1095 = vunpack.c.h.b16 %v307
    %v1096 = vunpack.c.l.b16 %v308
    %v1097 = vunpack.c.h.b16 %v308
    %v1098 = vunpack.c.l.b16 %v309
    %v1099 = vunpack.c.h.b16 %v309
    %v1100 = vunpack.c.l.b16 %v310
    %v1101 = vunpack.c.h.b16 %v310
    %v1102 = vunpack.c.l.b16 %v311
    %v1103 = vunpack.c.h.b16 %v311
    %v1104 = vunpack.c.l.b16 %v312
    %v1105 = vunpack.c.h.b16 %v312
    %v1106 = vunpack.c.l.b16 %v313
    %v1107 = vunpack.c.h.b16 %v313
    %v1108 = vunpack.c.l.b16 %v314
    %v1109 = vunpack.c.h.b16 %v314
    %v1110 = vunpack.c.l.b16 %v315
    %v1111 = vunpack.c.h.b16 %v315
    %v1112 = vunpack.c.l.b16 %v316
    %v1113 = vunpack.c.h.b16 %v316
    %v1114 = vunpack.c.l.b16 %v317
    %v1115 = vunpack.c.h.b16 %v317
    %v1116 = vunpack.c.l.b16 %v318
    %v1117 = vunpack.c.h.b16 %v318
    %v1118 = vunpack.c.l.b16 %v319
    %v1119 = vunpack.c.h.b16 %v319
    %v1120 = vunpack.c.l.b16 %v320
    %v1121 = vunpack.c.h.b16 %v320
    %v1122 = vunpack.c.l.b16 %v321
    %v1123 = vunpack.c.h.b16 %v321
    %v1124 = vunpack.c.l.b16 %v322
    %v1125 = vunpack.c.h.b16 %v322
    %v1126 = vunpack.c.l.b16 %v323
    %v1127 = vunpack.c.h.b16 %v323
    %v1128 = vunpack.c.l.b16 %v324
    %v1129 = vunpack.c.h.b16 %v324
    %v1130 = vunpack.c.l.b16 %v325
    %v1131 = vunpack.c.h.b16 %v325
    %v1132 = vunpack.c.l.b16 %v326
    %v1133 = vunpack.c.h.b16 %v326
    %v1134 = vunpack.c.l.b16 %v327
    %v1135 = vunpack.c.h.b16 %v327
    %v1136 = vunpack.c.l.b16 %v328
    %v1137 = vunpack.c.h.b16 %v328
    %v1138 = vunpack.c.l.b16 %v329
    %v1139 = vunpack.c.h.b16 %v329
    %v1140 = vunpack.c.l.b16 %v330
    %v1141 = vunpack.c.h.b16 %v330
    %v1142 = vunpack.c.l.b16 %v331
    %v1143 = vunpack.c.h.b16 %v331
    %v1144 = vunpack.c.l.b16 %v332
    %v1145 = vunpack.c.h.b16 %v332
    %v1146 = vunpack.c.l.b16 %v333
    %v1147 = vunpack.c.h.b16 %v333
    %v1148 = vunpack.c.l.b16 %v334
    %v1149 = vunpack.c.h.b16 %v334
    %v1150 = vunpack.c.l.b16 %v335
    %v1151 = vunpack.c.h.b16 %v335
    %v1152 = vunpack.c.l.b16 %v336
    %v1153 = vunpack.c.h.b16 %v336
    %v1154 = vunpack.c.l.b16 %v337
    %v1155 = vunpack.c.h.b16 %v337
    %v1156 = vpack.c.b16 %v648, %v644
    %v1157 = vpack.c.b16 %v649, %v645
    %v1158 = vpack.c.b16 %v650, %v646
    %v1159 = vpack.c.b16 %v651, %v647
    %v1160 = vpack.c.b16 %v656, %v652
    %v1161 = vpack.c.b16 %v657, %v653
    %v1162 = vpack.c.b16 %v658, %v654
    %v1163 = vpack.c.b16 %v659, %v655
    %v1164 = vpack.c.b16 %v664, %v660
    %v1165 = vpack.c.b16 %v665, %v661
    %v1166 = vpack.c.b16 %v666, %v662
    %v1167 = vpack.c.b16 %v667, %v663
    %v1168 = vpack.c.b16 %v672, %v668
    %v1169 = vpack.c.b16 %v673, %v669
    %v1170 = vpack.c.b16 %v674, %v670
    %v1171 = vpack.c.b16 %v675, %v671
    %v1172 = vpack.c.b16 %v680, %v676
    %v1173 = vpack.c.b16 %v681, %v677
    %v1174 = vpack.c.b16 %v682, %v678
    %v1175 = vpack.c.b16 %v683, %v679
    %v1176 = vpack.c.b16 %v688, %v684
    %v1177 = vpack.c.b16 %v689, %v685
    %v1178 = vpack.c.b16 %v690, %v686
    %v1179 = vpack.c.b16 %v691, %v687
    %v1180 = vpack.c.b16 %v696, %v692
    %v1181 = vpack.c.b16 %v697, %v693
    %v1182 = vpack.c.b16 %v698, %v694
    %v1183 = vpack.c.b16 %v699, %v695
    %v1184 = vpack.c.b16 %v704, %v700
    %v1185 = vpack.c.b16 %v705, %v701
    %v1186 = vpack.c.b16 %v706, %v702
    %v1187 = vpack.c.b16 %v707, %v703
    %v1188 = vpack.c.b16 %v712, %v708
    %v1189 = vpack.c.b16 %v713, %v709
    %v1190 = vpack.c.b16 %v714, %v710
    %v1191 = vpack.c.b16 %v715, %v711
    %v1192 = vpack.c.b16 %v720, %v716
    %v1193 = vpack.c.b16 %v721, %v717
    %v1194 = vpack.c.b16 %v722, %v718
    %v1195 = vpack.c.b16 %v723, %v719
    %v1196 = vpack.c.b16 %v728, %v724
    %v1197 = vpack.c.b16 %v729, %v725
    %v1198 = vpack.c.b16 %v730, %v726
    %v1199 = vpack.c.b16 %v731, %v727
    %v1200 = vpack.c.b16 %v736, %v732
    %v1201 = vpack.c.b16 %v737, %v733
    %v1202 = vpack.c.b16 %v738, %v734
    %v1203 = vpack.c.b16 %v739, %v735
    %v1204 = vpack.c.b16 %v744, %v740
    %v1205 = vpack.c.b16 %v745, %v741
    %v1206 = vpack.c.b16 %v746, %v742
    %v1207 = vpack.c.b16 %v747, %v743
    %v1208 = vpack.c.b16 %v752, %v748
    %v1209 = vpack.c.b16 %v753, %v749
    %v1210 = vpack.c.b16 %v754, %v750
    %v1211 = vpack.c.b16 %v755, %v751
    %v1212 = vpack.c.b16 %v760, %v756
    %v1213 = vpack.c.b16 %v761, %v757
    %v1214 = vpack.c.b16 %v762, %v758
    %v1215 = vpack.c.b16 %v763, %v759
    %v1216 = vpack.c.b16 %v768, %v764
    %v1217 = vpack.c.b16 %v769, %v765
    %v1218 = vpack.c.b16 %v770, %v766
    %v1219 = vpack.c.b16 %v771, %v767
    %v1220 = vpack.c.b16 %v776, %v772
    %v1221 = vpack.c.b16 %v777, %v773
    %v1222 = vpack.c.b16 %v778, %v774
    %v1223 = vpack.c.b16 %v779, %v775
    %v1224 = vpack.c.b16 %v784, %v780
    %v1225 = vpack.c.b16 %v785, %v781
    %v1226 = vpack.c.b16 %v786, %v782
    %v1227 = vpack.c.b16 %v787, %v783
    %v1228 = vpack.c.b16 %v792, %v788
    %v1229 = vpack.c.b16 %v793, %v789
    %v1230 = vpack.c.b16 %v794, %v790
    %v1231 = vpack.c.b16 %v795, %v791
    %v1232 = vpack.c.b16 %v800, %v796
    %v1233 = vpack.c.b16 %v801, %v797
    %v1234 = vpack.c.b16 %v802, %v798
    %v1235 = vpack.c.b16 %v803, %v799
    %v1236 = vpack.c.b16 %v808, %v804
    %v1237 = vpack.c.b16 %v809, %v805
    %v1238 = vpack.c.b16 %v810, %v806
    %v1239 = vpack.c.b16 %v811, %v807
    %v1240 = vpack.c.b16 %v816, %v812
    %v1241 = vpack.c.b16 %v817, %v813
    %v1242 = vpack.c.b16 %v818, %v814
    %v1243 = vpack.c.b16 %v819, %v815
    %v1244 = vpack.c.b16 %v824, %v820
    %v1245 = vpack.c.b16 %v825, %v821
    %v1246 = vpack.c.b16 %v826, %v822
    %v1247 = vpack.c.b16 %v827, %v823
    %v1248 = vpack.c.b16 %v832, %v828
    %v1249 = vpack.c.b16 %v833, %v829
    %v1250 = vpack.c.b16 %v834, %v830
    %v1251 = vpack.c.b16 %v835, %v831
    %v1252 = vpack.c.b16 %v840, %v836
    %v1253 = vpack.c.b16 %v841, %v837
    %v1254 = vpack.c.b16 %v842, %v838
    %v1255 = vpack.c.b16 %v843, %v839
    %v1256 = vpack.c.b16 %v848, %v844
    %v1257 = vpack.c.b16 %v849, %v845
    %v1258 = vpack.c.b16 %v850, %v846
    %v1259 = vpack.c.b16 %v851, %v847
    %v1260 = vpack.c.b16 %v856, %v852
    %v1261 = vpack.c.b16 %v857, %v853
    %v1262 = vpack.c.b16 %v858, %v854
    %v1263 = vpack.c.b16 %v859, %v855
    %v1264 = vpack.c.b16 %v864, %v860
    %v1265 = vpack.c.b16 %v865, %v861
    %v1266 = vpack.c.b16 %v866, %v862
    %v1267 = vpack.c.b16 %v867, %v863
    %v1268 = vpack.c.b16 %v872, %v868
    %v1269 = vpack.c.b16 %v873, %v869
    %v1270 = vpack.c.b16 %v874, %v870
    %v1271 = vpack.c.b16 %v875, %v871
    %v1272 = vpack.c.b16 %v880, %v876
    %v1273 = vpack.c.b16 %v881, %v877
    %v1274 = vpack.c.b16 %v882, %v878
    %v1275 = vpack.c.b16 %v883, %v879
    %v1276 = vpack.c.b16 %v888, %v884
    %v1277 = vpack.c.b16 %v889, %v885
    %v1278 = vpack.c.b16 %v890, %v886
    %v1279 = vpack.c.b16 %v891, %v887
    %v1280 = vpack.c.b16 %v896, %v892
    %v1281 = vpack.c.b16 %v897, %v893
    %v1282 = vpack.c.b16 %v898, %v894
    %v1283 = vpack.c.b16 %v899, %v895
    %v1284 = vpack.c.b16 %v904, %v900
    %v1285 = vpack.c.b16 %v905, %v901
    %v1286 = vpack.c.b16 %v906, %v902
    %v1287 = vpack.c.b16 %v907, %v903
    %v1288 = vpack.c.b16 %v912, %v908
    %v1289 = vpack.c.b16 %v913, %v909
    %v1290 = vpack.c.b16 %v914, %v910
    %v1291 = vpack.c.b16 %v915, %v911
    %v1292 = vpack.c.b16 %v920, %v916
    %v1293 = vpack.c.b16 %v921, %v917
    %v1294 = vpack.c.b16 %v922, %v918
    %v1295 = vpack.c.b16 %v923, %v919
    %v1296 = vpack.c.b16 %v928, %v924
    %v1297 = vpack.c.b16 %v929, %v925
    %v1298 = vpack.c.b16 %v930, %v926
    %v1299 = vpack.c.b16 %v931, %v927
    %v1300 = vpack.c.b16 %v936, %v932
    %v1301 = vpack.c.b16 %v937, %v933
    %v1302 = vpack.c.b16 %v938, %v934
    %v1303 = vpack.c.b16 %v939, %v935
    %v1304 = vpack.c.b16 %v944, %v940
    %v1305 = vpack.c.b16 %v945, %v941
    %v1306 = vpack.c.b16 %v946, %v942
    %v1307 = vpack.c.b16 %v947, %v943
    %v1308 = vpack.c.b16 %v952, %v948
    %v1309 = vpack.c.b16 %v953, %v949
    %v1310 = vpack.c.b16 %v954, %v950
    %v1311 = vpack.c.b16 %v955, %v951
    %v1312 = vpack.c.b16 %v960, %v956
    %v1313 = vpack.c.b16 %v961, %v957
    %v1314 = vpack.c.b16 %v962, %v958
    %v1315 = vpack.c.b16 %v963, %v959
    %v1316 = vpack.c.b16 %v968, %v964
    %v1317 = vpack.c.b16 %v969, %v965
    %v1318 = vpack.c.b16 %v970, %v966
    %v1319 = vpack.c.b16 %v971, %v967
    %v1320 = vpack.c.b16 %v976, %v972
    %v1321 = vpack.c.b16 %v977, %v973
    %v1322 = vpack.c.b16 %v978, %v974
    %v1323 = vpack.c.b16 %v979, %v975
    %v1324 = vpack.c.b16 %v984, %v980
    %v1325 = vpack.c.b16 %v985, %v981
    %v1326 = vpack.c.b16 %v986, %v982
    %v1327 = vpack.c.b16 %v987, %v983
    %v1328 = vpack.c.b16 %v992, %v988
    %v1329 = vpack.c.b16 %v993, %v989
    %v1330 = vpack.c.b16 %v994, %v990
    %v1331 = vpack.c.b16 %v995, %v991
    %v1332 = vpack.c.b16 %v1000, %v996
    %v1333 = vpack.c.b16 %v1001, %v997
    %v1334 = vpack.c.b16 %v1002, %v998
    %v1335 = vpack.c.b16 %v1003, %v999
    %v1336 = vpack.c.b16 %v1008, %v1004
    %v1337 = vpack.c.b16 %v1009, %v1005
    %v1338 = vpack.c.b16 %v1010, %v1006
    %v1339 = vpack.c.b16 %v1011, %v1007
    %v1340 = vpack.c.b16 %v1016, %v1012
    %v1341 = vpack.c.b16 %v1017, %v1013
    %v1342 = vpack.c.b16 %v1018, %v1014
    %v1343 = vpack.c.b16 %v1019, %v1015
    %v1344 = vpack.c.b16 %v1024, %v1020
    %v1345 = vpack.c.b16 %v1025, %v1021
    %v1346 = vpack.c.b16 %v1026, %v1022
    %v1347 = vpack.c.b16 %v1027, %v1023
    %v1348 = vpack.c.b16 %v1032, %v1028
    %v1349 = vpack.c.b16 %v1033, %v1029
    %v1350 = vpack.c.b16 %v1034, %v1030
    %v1351 = vpack.c.b16 %v1035, %v1031
    %v1352 = vpack.c.b16 %v1040, %v1036
    %v1353 = vpack.c.b16 %v1041, %v1037
    %v1354 = vpack.c.b16 %v1042, %v1038
    %v1355 = vpack.c.b16 %v1043, %v1039
    %v1356 = vpack.c.b16 %v1048, %v1044
    %v1357 = vpack.c.b16 %v1049, %v1045
    %v1358 = vpack.c.b16 %v1050, %v1046
    %v1359 = vpack.c.b16 %v1051, %v1047
    %v1360 = vpack.c.b16 %v1056, %v1052
    %v1361 = vpack.c.b16 %v1057, %v1053
    %v1362 = vpack.c.b16 %v1058, %v1054
    %v1363 = vpack.c.b16 %v1059, %v1055
    %v1364 = vpack.c.b16 %v1064, %v1060
    %v1365 = vpack.c.b16 %v1065, %v1061
    %v1366 = vpack.c.b16 %v1066, %v1062
    %v1367 = vpack.c.b16 %v1067, %v1063
    %v1368 = vpack.c.b16 %v1072, %v1068
    %v1369 = vpack.c.b16 %v1073, %v1069
    %v1370 = vpack.c.b16 %v1074, %v1070
    %v1371 = vpack.c.b16 %v1075, %v1071
    %v1372 = vpack.c.b16 %v1080, %v1076
    %v1373 = vpack.c.b16 %v1081, %v1077
    %v1374 = vpack.c.b16 %v1082, %v1078
    %v1375 = vpack.c.b16 %v1083, %v1079
    %v1376 = vpack.c.b16 %v1088, %v1084
    %v1377 = vpack.c.b16 %v1089, %v1085
    %v1378 = vpack.c.b16 %v1090, %v1086
    %v1379 = vpack.c.b16 %v1091, %v1087
    %v1380 = vpack.c.b16 %v1096, %v1092
    %v1381 = vpack.c.b16 %v1097, %v1093
    %v1382 = vpack.c.b16 %v1098, %v1094
    %v1383 = vpack.c.b16 %v1099, %v1095
    %v1384 = vpack.c.b16 %v1104, %v1100
    %v1385 = vpack.c.b16 %v1105, %v1101
    %v1386 = vpack.c.b16 %v1106, %v1102
    %v1387 = vpack.c.b16 %v1107, %v1103
    %v1388 = vpack.c.b16 %v1112, %v1108
    %v1389 = vpack.c.b16 %v1113, %v1109
    %v1390 = vpack.c.b16 %v1114, %v1110
    %v1391 = vpack.c.b16 %v1115, %v1111
    %v1392 = vpack.c.b16 %v1120, %v1116
    %v1393 = vpack.c.b16 %v1121, %v1117
    %v1394 = vpack.c.b16 %v1122, %v1118
    %v1395 = vpack.c.b16 %v1123, %v1119
    %v1396 = vpack.c.b16 %v1128, %v1124
    %v1397 = vpack.c.b16 %v1129, %v1125
    %v1398 = vpack.c.b16 %v1130, %v1126
    %v1399 = vpack.c.b16 %v1131, %v1127
    %v1400 = vpack.c.b16 %v1136, %v1132
    %v1401 = vpack.c.b16 %v1137, %v1133
    %v1402 = vpack.c.b16 %v1138, %v1134
    %v1403 = vpack.c.b16 %v1139, %v1135
    %v1404 = vpack.c.b16 %v1144, %v1140
    %v1405 = vpack.c.b16 %v1145, %v1141
    %v1406 = vpack.c.b16 %v1146, %v1142
    %v1407 = vpack.c.b16 %v1147, %v1143
    %v1408 = vpack.c.b16 %v1152, %v1148
    %v1409 = vpack.c.b16 %v1153, %v1149
    %v1410 = vpack.c.b16 %v1154, %v1150
    %v1411 = vpack.c.b16 %v1155, %v1151
    %1668 = vmatpush.bf16.msra.mxu0 %v1184
    %1669 = vmatpush.bf16.msra.mxu0 %v1180
    %1670 = vmatpush.bf16.msra.mxu0 %v1176
    %1671 = vmatpush.bf16.msra.mxu0 %v1172
    %1672 = vmatpush.bf16.msra.mxu0 %v1168
    %1673 = vmatpush.bf16.msra.mxu0 %v1164
    %1674 = vmatpush.bf16.msra.mxu0 %v1160
    %1675 = vmatpush.bf16.msra.mxu0 %v1156
    %1676 = vmatmul.bf16.gmra.mxu0 %v372
    %v1677 = vpop.f32.mrf.mxu0
    %v1678 = vadd.f32 %v340, %v1677
    %v1679 = vpop.f32.mrf.mxu0
    %v1680 = vadd.f32 %v340, %v1679
    %1681 = vdwg.mxu0
    %1682 = vmatpush.bf16.msra.mxu0 %v1216
    %1683 = vmatpush.bf16.msra.mxu0 %v1212
    %1684 = vmatpush.bf16.msra.mxu0 %v1208
    %1685 = vmatpush.bf16.msra.mxu0 %v1204
    %1686 = vmatpush.bf16.msra.mxu0 %v1200
    %1687 = vmatpush.bf16.msra.mxu0 %v1196
    %1688 = vmatpush.bf16.msra.mxu0 %v1192
    %1689 = vmatpush.bf16.msra.mxu0 %v1188
    %1690 = vmatmul.bf16.gmra.mxu0 %v373
    %v1691 = vpop.f32.mrf.mxu0
    %v1692 = vadd.f32 %v1678, %v1691
    %v1693 = vpop.f32.mrf.mxu0
    %v1694 = vadd.f32 %v1680, %v1693
    %1695 = vdwg.mxu0
    %1696 = vmatpush.bf16.msra.mxu0 %v1248
    %1697 = vmatpush.bf16.msra.mxu0 %v1244
    %1698 = vmatpush.bf16.msra.mxu0 %v1240
    %1699 = vmatpush.bf16.msra.mxu0 %v1236
    %1700 = vmatpush.bf16.msra.mxu0 %v1232
    %1701 = vmatpush.bf16.msra.mxu0 %v1228
    %1702 = vmatpush.bf16.msra.mxu0 %v1224
    %1703 = vmatpush.bf16.msra.mxu0 %v1220
    %1704 = vmatmul.bf16.gmra.mxu0 %v374
    %v1705 = vpop.f32.mrf.mxu0
    %v1706 = vadd.f32 %v1692, %v1705
    %v1707 = vpop.f32.mrf.mxu0
    %v1708 = vadd.f32 %v1694, %v1707
    %1709 = vdwg.mxu0
    %1710 = vmatpush.bf16.msra.mxu0 %v1280
    %1711 = vmatpush.bf16.msra.mxu0 %v1276
    %1712 = vmatpush.bf16.msra.mxu0 %v1272
    %1713 = vmatpush.bf16.msra.mxu0 %v1268
    %1714 = vmatpush.bf16.msra.mxu0 %v1264
    %1715 = vmatpush.bf16.msra.mxu0 %v1260
    %1716 = vmatpush.bf16.msra.mxu0 %v1256
    %1717 = vmatpush.bf16.msra.mxu0 %v1252
    %1718 = vmatmul.bf16.gmra.mxu0 %v375
    %v1719 = vpop.f32.mrf.mxu0
    %v1720 = vadd.f32 %v1706, %v1719
    %v1721 = vpop.f32.mrf.mxu0
    %v1722 = vadd.f32 %v1708, %v1721
    %1723 = vdwg.mxu0
    %1724 = vmatpush.bf16.msra.mxu0 %v1312
    %1725 = vmatpush.bf16.msra.mxu0 %v1308
    %1726 = vmatpush.bf16.msra.mxu0 %v1304
    %1727 = vmatpush.bf16.msra.mxu0 %v1300
    %1728 = vmatpush.bf16.msra.mxu0 %v1296
    %1729 = vmatpush.bf16.msra.mxu0 %v1292
    %1730 = vmatpush.bf16.msra.mxu0 %v1288
    %1731 = vmatpush.bf16.msra.mxu0 %v1284
    %1732 = vmatmul.bf16.gmra.mxu0 %v376
    %v1733 = vpop.f32.mrf.mxu0
    %v1734 = vadd.f32 %v1720, %v1733
    %v1735 = vpop.f32.mrf.mxu0
    %v1736 = vadd.f32 %v1722, %v1735
    %1737 = vdwg.mxu0
    %1738 = vmatpush.bf16.msra.mxu0 %v1344
    %1739 = vmatpush.bf16.msra.mxu0 %v1340
    %1740 = vmatpush.bf16.msra.mxu0 %v1336
    %1741 = vmatpush.bf16.msra.mxu0 %v1332
    %1742 = vmatpush.bf16.msra.mxu0 %v1328
    %1743 = vmatpush.bf16.msra.mxu0 %v1324
    %1744 = vmatpush.bf16.msra.mxu0 %v1320
    %1745 = vmatpush.bf16.msra.mxu0 %v1316
    %1746 = vmatmul.bf16.gmra.mxu0 %v377
    %v1747 = vpop.f32.mrf.mxu0
    %v1748 = vadd.f32 %v1734, %v1747
    %v1749 = vpop.f32.mrf.mxu0
    %v1750 = vadd.f32 %v1736, %v1749
    %1751 = vdwg.mxu0
    %1752 = vmatpush.bf16.msra.mxu0 %v1376
    %1753 = vmatpush.bf16.msra.mxu0 %v1372
    %1754 = vmatpush.bf16.msra.mxu0 %v1368
    %1755 = vmatpush.bf16.msra.mxu0 %v1364
    %1756 = vmatpush.bf16.msra.mxu0 %v1360
    %1757 = vmatpush.bf16.msra.mxu0 %v1356
    %1758 = vmatpush.bf16.msra.mxu0 %v1352
    %1759 = vmatpush.bf16.msra.mxu0 %v1348
    %1760 = vmatmul.bf16.gmra.mxu0 %v378
    %v1761 = vpop.f32.mrf.mxu0
    %v1762 = vadd.f32 %v1748, %v1761
    %v1763 = vpop.f32.mrf.mxu0
    %v1764 = vadd.f32 %v1750, %v1763
    %1765 = vdwg.mxu0
    %1766 = vmatpush.bf16.msra.mxu0 %v1408
    %1767 = vmatpush.bf16.msra.mxu0 %v1404
    %1768 = vmatpush.bf16.msra.mxu0 %v1400
    %1769 = vmatpush.bf16.msra.mxu0 %v1396
    %1770 = vmatpush.bf16.msra.mxu0 %v1392
    %1771 = vmatpush.bf16.msra.mxu0 %v1388
    %1772 = vmatpush.bf16.msra.mxu0 %v1384
    %1773 = vmatpush.bf16.msra.mxu0 %v1380
    %1774 = vmatmul.bf16.gmra.mxu0 %v379
    %v1775 = vpop.f32.mrf.mxu0
    %v1776 = vadd.f32 %v1762, %v1775
    %v1777 = vpop.f32.mrf.mxu0
    %v1778 = vadd.f32 %v1764, %v1777
    %1779 = vdwg.mxu0
    %1780 = vmatpush.bf16.msra.mxu0 %v1185
    %1781 = vmatpush.bf16.msra.mxu0 %v1181
    %1782 = vmatpush.bf16.msra.mxu0 %v1177
    %1783 = vmatpush.bf16.msra.mxu0 %v1173
    %1784 = vmatpush.bf16.msra.mxu0 %v1169
    %1785 = vmatpush.bf16.msra.mxu0 %v1165
    %1786 = vmatpush.bf16.msra.mxu0 %v1161
    %1787 = vmatpush.bf16.msra.mxu0 %v1157
    %1788 = vmatmul.bf16.gmra.mxu0 %v372
    %v1789 = vpop.f32.mrf.mxu0
    %v1790 = vadd.f32 %v341, %v1789
    %v1791 = vpop.f32.mrf.mxu0
    %v1792 = vadd.f32 %v341, %v1791
    %1793 = vdwg.mxu0
    %1794 = vmatpush.bf16.msra.mxu0 %v1217
    %1795 = vmatpush.bf16.msra.mxu0 %v1213
    %1796 = vmatpush.bf16.msra.mxu0 %v1209
    %1797 = vmatpush.bf16.msra.mxu0 %v1205
    %1798 = vmatpush.bf16.msra.mxu0 %v1201
    %1799 = vmatpush.bf16.msra.mxu0 %v1197
    %1800 = vmatpush.bf16.msra.mxu0 %v1193
    %1801 = vmatpush.bf16.msra.mxu0 %v1189
    %1802 = vmatmul.bf16.gmra.mxu0 %v373
    %v1803 = vpop.f32.mrf.mxu0
    %v1804 = vadd.f32 %v1790, %v1803
    %v1805 = vpop.f32.mrf.mxu0
    %v1806 = vadd.f32 %v1792, %v1805
    %1807 = vdwg.mxu0
    %1808 = vmatpush.bf16.msra.mxu0 %v1249
    %1809 = vmatpush.bf16.msra.mxu0 %v1245
    %1810 = vmatpush.bf16.msra.mxu0 %v1241
    %1811 = vmatpush.bf16.msra.mxu0 %v1237
    %1812 = vmatpush.bf16.msra.mxu0 %v1233
    %1813 = vmatpush.bf16.msra.mxu0 %v1229
    %1814 = vmatpush.bf16.msra.mxu0 %v1225
    %1815 = vmatpush.bf16.msra.mxu0 %v1221
    %1816 = vmatmul.bf16.gmra.mxu0 %v374
    %v1817 = vpop.f32.mrf.mxu0
    %v1818 = vadd.f32 %v1804, %v1817
    %v1819 = vpop.f32.mrf.mxu0
    %v1820 = vadd.f32 %v1806, %v1819
    %1821 = vdwg.mxu0
    %1822 = vmatpush.bf16.msra.mxu0 %v1281
    %1823 = vmatpush.bf16.msra.mxu0 %v1277
    %1824 = vmatpush.bf16.msra.mxu0 %v1273
    %1825 = vmatpush.bf16.msra.mxu0 %v1269
    %1826 = vmatpush.bf16.msra.mxu0 %v1265
    %1827 = vmatpush.bf16.msra.mxu0 %v1261
    %1828 = vmatpush.bf16.msra.mxu0 %v1257
    %1829 = vmatpush.bf16.msra.mxu0 %v1253
    %1830 = vmatmul.bf16.gmra.mxu0 %v375
    %v1831 = vpop.f32.mrf.mxu0
    %v1832 = vadd.f32 %v1818, %v1831
    %v1833 = vpop.f32.mrf.mxu0
    %v1834 = vadd.f32 %v1820, %v1833
    %1835 = vdwg.mxu0
    %1836 = vmatpush.bf16.msra.mxu0 %v1313
    %1837 = vmatpush.bf16.msra.mxu0 %v1309
    %1838 = vmatpush.bf16.msra.mxu0 %v1305
    %1839 = vmatpush.bf16.msra.mxu0 %v1301
    %1840 = vmatpush.bf16.msra.mxu0 %v1297
    %1841 = vmatpush.bf16.msra.mxu0 %v1293
    %1842 = vmatpush.bf16.msra.mxu0 %v1289
    %1843 = vmatpush.bf16.msra.mxu0 %v1285
    %1844 = vmatmul.bf16.gmra.mxu0 %v376
    %v1845 = vpop.f32.mrf.mxu0
    %v1846 = vadd.f32 %v1832, %v1845
    %v1847 = vpop.f32.mrf.mxu0
    %v1848 = vadd.f32 %v1834, %v1847
    %1849 = vdwg.mxu0
    %1850 = vmatpush.bf16.msra.mxu0 %v1345
    %1851 = vmatpush.bf16.msra.mxu0 %v1341
    %1852 = vmatpush.bf16.msra.mxu0 %v1337
    %1853 = vmatpush.bf16.msra.mxu0 %v1333
    %1854 = vmatpush.bf16.msra.mxu0 %v1329
    %1855 = vmatpush.bf16.msra.mxu0 %v1325
    %1856 = vmatpush.bf16.msra.mxu0 %v1321
    %1857 = vmatpush.bf16.msra.mxu0 %v1317
    %1858 = vmatmul.bf16.gmra.mxu0 %v377
    %v1859 = vpop.f32.mrf.mxu0
    %v1860 = vadd.f32 %v1846, %v1859
    %v1861 = vpop.f32.mrf.mxu0
    %v1862 = vadd.f32 %v1848, %v1861
    %1863 = vdwg.mxu0
    %1864 = vmatpush.bf16.msra.mxu0 %v1377
    %1865 = vmatpush.bf16.msra.mxu0 %v1373
    %1866 = vmatpush.bf16.msra.mxu0 %v1369
    %1867 = vmatpush.bf16.msra.mxu0 %v1365
    %1868 = vmatpush.bf16.msra.mxu0 %v1361
    %1869 = vmatpush.bf16.msra.mxu0 %v1357
    %1870 = vmatpush.bf16.msra.mxu0 %v1353
    %1871 = vmatpush.bf16.msra.mxu0 %v1349
    %1872 = vmatmul.bf16.gmra.mxu0 %v378
    %v1873 = vpop.f32.mrf.mxu0
    %v1874 = vadd.f32 %v1860, %v1873
    %v1875 = vpop.f32.mrf.mxu0
    %v1876 = vadd.f32 %v1862, %v1875
    %1877 = vdwg.mxu0
    %1878 = vmatpush.bf16.msra.mxu0 %v1409
    %1879 = vmatpush.bf16.msra.mxu0 %v1405
    %1880 = vmatpush.bf16.msra.mxu0 %v1401
    %1881 = vmatpush.bf16.msra.mxu0 %v1397
    %1882 = vmatpush.bf16.msra.mxu0 %v1393
    %1883 = vmatpush.bf16.msra.mxu0 %v1389
    %1884 = vmatpush.bf16.msra.mxu0 %v1385
    %1885 = vmatpush.bf16.msra.mxu0 %v1381
    %1886 = vmatmul.bf16.gmra.mxu0 %v379
    %v1887 = vpop.f32.mrf.mxu0
    %v1888 = vadd.f32 %v1874, %v1887
    %v1889 = vpop.f32.mrf.mxu0
    %v1890 = vadd.f32 %v1876, %v1889
    %1891 = vdwg.mxu0
    %1892 = vmatpush.bf16.msra.mxu0 %v1186
    %1893 = vmatpush.bf16.msra.mxu0 %v1182
    %1894 = vmatpush.bf16.msra.mxu0 %v1178
    %1895 = vmatpush.bf16.msra.mxu0 %v1174
    %1896 = vmatpush.bf16.msra.mxu0 %v1170
    %1897 = vmatpush.bf16.msra.mxu0 %v1166
    %1898 = vmatpush.bf16.msra.mxu0 %v1162
    %1899 = vmatpush.bf16.msra.mxu0 %v1158
    %1900 = vmatmul.bf16.gmra.mxu0 %v372
    %v1901 = vpop.f32.mrf.mxu0
    %v1902 = vadd.f32 %v342, %v1901
    %v1903 = vpop.f32.mrf.mxu0
    %v1904 = vadd.f32 %v342, %v1903
    %1905 = vdwg.mxu0
    %1906 = vmatpush.bf16.msra.mxu0 %v1218
    %1907 = vmatpush.bf16.msra.mxu0 %v1214
    %1908 = vmatpush.bf16.msra.mxu0 %v1210
    %1909 = vmatpush.bf16.msra.mxu0 %v1206
    %1910 = vmatpush.bf16.msra.mxu0 %v1202
    %1911 = vmatpush.bf16.msra.mxu0 %v1198
    %1912 = vmatpush.bf16.msra.mxu0 %v1194
    %1913 = vmatpush.bf16.msra.mxu0 %v1190
    %1914 = vmatmul.bf16.gmra.mxu0 %v373
    %v1915 = vpop.f32.mrf.mxu0
    %v1916 = vadd.f32 %v1902, %v1915
    %v1917 = vpop.f32.mrf.mxu0
    %v1918 = vadd.f32 %v1904, %v1917
    %1919 = vdwg.mxu0
    %1920 = vmatpush.bf16.msra.mxu0 %v1250
    %1921 = vmatpush.bf16.msra.mxu0 %v1246
    %1922 = vmatpush.bf16.msra.mxu0 %v1242
    %1923 = vmatpush.bf16.msra.mxu0 %v1238
    %1924 = vmatpush.bf16.msra.mxu0 %v1234
    %1925 = vmatpush.bf16.msra.mxu0 %v1230
    %1926 = vmatpush.bf16.msra.mxu0 %v1226
    %1927 = vmatpush.bf16.msra.mxu0 %v1222
    %1928 = vmatmul.bf16.gmra.mxu0 %v374
    %v1929 = vpop.f32.mrf.mxu0
    %v1930 = vadd.f32 %v1916, %v1929
    %v1931 = vpop.f32.mrf.mxu0
    %v1932 = vadd.f32 %v1918, %v1931
    %1933 = vdwg.mxu0
    %1934 = vmatpush.bf16.msra.mxu0 %v1282
    %1935 = vmatpush.bf16.msra.mxu0 %v1278
    %1936 = vmatpush.bf16.msra.mxu0 %v1274
    %1937 = vmatpush.bf16.msra.mxu0 %v1270
    %1938 = vmatpush.bf16.msra.mxu0 %v1266
    %1939 = vmatpush.bf16.msra.mxu0 %v1262
    %1940 = vmatpush.bf16.msra.mxu0 %v1258
    %1941 = vmatpush.bf16.msra.mxu0 %v1254
    %1942 = vmatmul.bf16.gmra.mxu0 %v375
    %v1943 = vpop.f32.mrf.mxu0
    %v1944 = vadd.f32 %v1930, %v1943
    %v1945 = vpop.f32.mrf.mxu0
    %v1946 = vadd.f32 %v1932, %v1945
    %1947 = vdwg.mxu0
    %1948 = vmatpush.bf16.msra.mxu0 %v1314
    %1949 = vmatpush.bf16.msra.mxu0 %v1310
    %1950 = vmatpush.bf16.msra.mxu0 %v1306
    %1951 = vmatpush.bf16.msra.mxu0 %v1302
    %1952 = vmatpush.bf16.msra.mxu0 %v1298
    %1953 = vmatpush.bf16.msra.mxu0 %v1294
    %1954 = vmatpush.bf16.msra.mxu0 %v1290
    %1955 = vmatpush.bf16.msra.mxu0 %v1286
    %1956 = vmatmul.bf16.gmra.mxu0 %v376
    %v1957 = vpop.f32.mrf.mxu0
    %v1958 = vadd.f32 %v1944, %v1957
    %v1959 = vpop.f32.mrf.mxu0
    %v1960 = vadd.f32 %v1946, %v1959
    %1961 = vdwg.mxu0
    %1962 = vmatpush.bf16.msra.mxu0 %v1346
    %1963 = vmatpush.bf16.msra.mxu0 %v1342
    %1964 = vmatpush.bf16.msra.mxu0 %v1338
    %1965 = vmatpush.bf16.msra.mxu0 %v1334
    %1966 = vmatpush.bf16.msra.mxu0 %v1330
    %1967 = vmatpush.bf16.msra.mxu0 %v1326
    %1968 = vmatpush.bf16.msra.mxu0 %v1322
    %1969 = vmatpush.bf16.msra.mxu0 %v1318
    %1970 = vmatmul.bf16.gmra.mxu0 %v377
    %v1971 = vpop.f32.mrf.mxu0
    %v1972 = vadd.f32 %v1958, %v1971
    %v1973 = vpop.f32.mrf.mxu0
    %v1974 = vadd.f32 %v1960, %v1973
    %1975 = vdwg.mxu0
    %1976 = vmatpush.bf16.msra.mxu0 %v1378
    %1977 = vmatpush.bf16.msra.mxu0 %v1374
    %1978 = vmatpush.bf16.msra.mxu0 %v1370
    %1979 = vmatpush.bf16.msra.mxu0 %v1366
    %1980 = vmatpush.bf16.msra.mxu0 %v1362
    %1981 = vmatpush.bf16.msra.mxu0 %v1358
    %1982 = vmatpush.bf16.msra.mxu0 %v1354
    %1983 = vmatpush.bf16.msra.mxu0 %v1350
    %1984 = vmatmul.bf16.gmra.mxu0 %v378
    %v1985 = vpop.f32.mrf.mxu0
    %v1986 = vadd.f32 %v1972, %v1985
    %v1987 = vpop.f32.mrf.mxu0
    %v1988 = vadd.f32 %v1974, %v1987
    %1989 = vdwg.mxu0
    %1990 = vmatpush.bf16.msra.mxu0 %v1410
    %1991 = vmatpush.bf16.msra.mxu0 %v1406
    %1992 = vmatpush.bf16.msra.mxu0 %v1402
    %1993 = vmatpush.bf16.msra.mxu0 %v1398
    %1994 = vmatpush.bf16.msra.mxu0 %v1394
    %1995 = vmatpush.bf16.msra.mxu0 %v1390
    %1996 = vmatpush.bf16.msra.mxu0 %v1386
    %1997 = vmatpush.bf16.msra.mxu0 %v1382
    %1998 = vmatmul.bf16.gmra.mxu0 %v379
    %v1999 = vpop.f32.mrf.mxu0
    %v2000 = vadd.f32 %v1986, %v1999
    %v2001 = vpop.f32.mrf.mxu0
    %v2002 = vadd.f32 %v1988, %v2001
    %2003 = vdwg.mxu0
    %2004 = vmatpush.bf16.msra.mxu0 %v1187
    %2005 = vmatpush.bf16.msra.mxu0 %v1183
    %2006 = vmatpush.bf16.msra.mxu0 %v1179
    %2007 = vmatpush.bf16.msra.mxu0 %v1175
    %2008 = vmatpush.bf16.msra.mxu0 %v1171
    %2009 = vmatpush.bf16.msra.mxu0 %v1167
    %2010 = vmatpush.bf16.msra.mxu0 %v1163
    %2011 = vmatpush.bf16.msra.mxu0 %v1159
    %2012 = vmatmul.bf16.gmra.mxu0 %v372
    %v2013 = vpop.f32.mrf.mxu0
    %v2014 = vadd.f32 %v343, %v2013
    %v2015 = vpop.f32.mrf.mxu0
    %v2016 = vadd.f32 %v343, %v2015
    %2017 = vdwg.mxu0
    %2018 = vmatpush.bf16.msra.mxu0 %v1219
    %2019 = vmatpush.bf16.msra.mxu0 %v1215
    %2020 = vmatpush.bf16.msra.mxu0 %v1211
    %2021 = vmatpush.bf16.msra.mxu0 %v1207
    %2022 = vmatpush.bf16.msra.mxu0 %v1203
    %2023 = vmatpush.bf16.msra.mxu0 %v1199
    %2024 = vmatpush.bf16.msra.mxu0 %v1195
    %2025 = vmatpush.bf16.msra.mxu0 %v1191
    %2026 = vmatmul.bf16.gmra.mxu0 %v373
    %v2027 = vpop.f32.mrf.mxu0
    %v2028 = vadd.f32 %v2014, %v2027
    %v2029 = vpop.f32.mrf.mxu0
    %v2030 = vadd.f32 %v2016, %v2029
    %2031 = vdwg.mxu0
    %2032 = vmatpush.bf16.msra.mxu0 %v1251
    %2033 = vmatpush.bf16.msra.mxu0 %v1247
    %2034 = vmatpush.bf16.msra.mxu0 %v1243
    %2035 = vmatpush.bf16.msra.mxu0 %v1239
    %2036 = vmatpush.bf16.msra.mxu0 %v1235
    %2037 = vmatpush.bf16.msra.mxu0 %v1231
    %2038 = vmatpush.bf16.msra.mxu0 %v1227
    %2039 = vmatpush.bf16.msra.mxu0 %v1223
    %2040 = vmatmul.bf16.gmra.mxu0 %v374
    %v2041 = vpop.f32.mrf.mxu0
    %v2042 = vadd.f32 %v2028, %v2041
    %v2043 = vpop.f32.mrf.mxu0
    %v2044 = vadd.f32 %v2030, %v2043
    %2045 = vdwg.mxu0
    %2046 = vmatpush.bf16.msra.mxu0 %v1283
    %2047 = vmatpush.bf16.msra.mxu0 %v1279
    %2048 = vmatpush.bf16.msra.mxu0 %v1275
    %2049 = vmatpush.bf16.msra.mxu0 %v1271
    %2050 = vmatpush.bf16.msra.mxu0 %v1267
    %2051 = vmatpush.bf16.msra.mxu0 %v1263
    %2052 = vmatpush.bf16.msra.mxu0 %v1259
    %2053 = vmatpush.bf16.msra.mxu0 %v1255
    %2054 = vmatmul.bf16.gmra.mxu0 %v375
    %v2055 = vpop.f32.mrf.mxu0
    %v2056 = vadd.f32 %v2042, %v2055
    %v2057 = vpop.f32.mrf.mxu0
    %v2058 = vadd.f32 %v2044, %v2057
    %2059 = vdwg.mxu0
    %2060 = vmatpush.bf16.msra.mxu0 %v1315
    %2061 = vmatpush.bf16.msra.mxu0 %v1311
    %2062 = vmatpush.bf16.msra.mxu0 %v1307
    %2063 = vmatpush.bf16.msra.mxu0 %v1303
    %2064 = vmatpush.bf16.msra.mxu0 %v1299
    %2065 = vmatpush.bf16.msra.mxu0 %v1295
    %2066 = vmatpush.bf16.msra.mxu0 %v1291
    %2067 = vmatpush.bf16.msra.mxu0 %v1287
    %2068 = vmatmul.bf16.gmra.mxu0 %v376
    %v2069 = vpop.f32.mrf.mxu0
    %v2070 = vadd.f32 %v2056, %v2069
    %v2071 = vpop.f32.mrf.mxu0
    %v2072 = vadd.f32 %v2058, %v2071
    %2073 = vdwg.mxu0
    %2074 = vmatpush.bf16.msra.mxu0 %v1347
    %2075 = vmatpush.bf16.msra.mxu0 %v1343
    %2076 = vmatpush.bf16.msra.mxu0 %v1339
    %2077 = vmatpush.bf16.msra.mxu0 %v1335
    %2078 = vmatpush.bf16.msra.mxu0 %v1331
    %2079 = vmatpush.bf16.msra.mxu0 %v1327
    %2080 = vmatpush.bf16.msra.mxu0 %v1323
    %2081 = vmatpush.bf16.msra.mxu0 %v1319
    %2082 = vmatmul.bf16.gmra.mxu0 %v377
    %v2083 = vpop.f32.mrf.mxu0
    %v2084 = vadd.f32 %v2070, %v2083
    %v2085 = vpop.f32.mrf.mxu0
    %v2086 = vadd.f32 %v2072, %v2085
    %2087 = vdwg.mxu0
    %2088 = vmatpush.bf16.msra.mxu0 %v1379
    %2089 = vmatpush.bf16.msra.mxu0 %v1375
    %2090 = vmatpush.bf16.msra.mxu0 %v1371
    %2091 = vmatpush.bf16.msra.mxu0 %v1367
    %2092 = vmatpush.bf16.msra.mxu0 %v1363
    %2093 = vmatpush.bf16.msra.mxu0 %v1359
    %2094 = vmatpush.bf16.msra.mxu0 %v1355
    %2095 = vmatpush.bf16.msra.mxu0 %v1351
    %2096 = vmatmul.bf16.gmra.mxu0 %v378
    %v2097 = vpop.f32.mrf.mxu0
    %v2098 = vadd.f32 %v2084, %v2097
    %v2099 = vpop.f32.mrf.mxu0
    %v2100 = vadd.f32 %v2086, %v2099
    %2101 = vdwg.mxu0
    %2102 = vmatpush.bf16.msra.mxu0 %v1411
    %2103 = vmatpush.bf16.msra.mxu0 %v1407
    %2104 = vmatpush.bf16.msra.mxu0 %v1403
    %2105 = vmatpush.bf16.msra.mxu0 %v1399
    %2106 = vmatpush.bf16.msra.mxu0 %v1395
    %2107 = vmatpush.bf16.msra.mxu0 %v1391
    %2108 = vmatpush.bf16.msra.mxu0 %v1387
    %2109 = vmatpush.bf16.msra.mxu0 %v1383
    %2110 = vmatmul.bf16.gmra.mxu0 %v379
    %v2111 = vpop.f32.mrf.mxu0
    %v2112 = vadd.f32 %v2098, %v2111
    %v2113 = vpop.f32.mrf.mxu0
    %v2114 = vadd.f32 %v2100, %v2113
    %2115 = vdwg.mxu0
    %v2116 = vpack.c.bf16 %v1776, %v1776
    %v2117 = vpack.c.bf16 %v1888, %v1888
    %v2118 = vpack.c.bf16 %v2000, %v2000
    %v2119 = vpack.c.bf16 %v2112, %v2112
    %v2120 = vpack.c.bf16 %v1778, %v1778
    %v2121 = vpack.c.bf16 %v1890, %v1890
    %v2122 = vpack.c.bf16 %v2002, %v2002
    %v2123 = vpack.c.bf16 %v2114, %v2114
    %v2124 = vld [vmem:[#allocation4] sm:$0xff]
    %v2125 = vld [vmem:[#allocation4 + $0x8] sm:$0xff]
    %v2126 = vld [vmem:[#allocation4 + $0x10] sm:$0xff]
    %v2127 = vld [vmem:[#allocation4 + $0x18] sm:$0xff]
    %v2128 = vld [vmem:[#allocation4 + $0x20] sm:$0xff]
    %v2129 = vld [vmem:[#allocation4 + $0x28] sm:$0xff]
    %v2130 = vld [vmem:[#allocation4 + $0x30] sm:$0xff]
    %v2131 = vld [vmem:[#allocation4 + $0x38] sm:$0xff]
    %v2132 = vld [vmem:[#allocation4 + $0x40] sm:$0xff]
    %v2133 = vld [vmem:[#allocation4 + $0x48] sm:$0xff]
    %v2134 = vld [vmem:[#allocation4 + $0x50] sm:$0xff]
    %v2135 = vld [vmem:[#allocation4 + $0x58] sm:$0xff]
    %v2136 = vld [vmem:[#allocation4 + $0x60] sm:$0xff]
    %v2137 = vld [vmem:[#allocation4 + $0x68] sm:$0xff]
    %v2138 = vld [vmem:[#allocation4 + $0x70] sm:$0xff]
    %v2139 = vld [vmem:[#allocation4 + $0x78] sm:$0xff]
    %v2140 = vld [vmem:[#allocation4 + $0x80] sm:$0xff]
    %v2141 = vld [vmem:[#allocation4 + $0x88] sm:$0xff]
    %v2142 = vld [vmem:[#allocation4 + $0x90] sm:$0xff]
    %v2143 = vld [vmem:[#allocation4 + $0x98] sm:$0xff]
    %v2144 = vld [vmem:[#allocation4 + $0xa0] sm:$0xff]
    %v2145 = vld [vmem:[#allocation4 + $0xa8] sm:$0xff]
    %v2146 = vld [vmem:[#allocation4 + $0xb0] sm:$0xff]
    %v2147 = vld [vmem:[#allocation4 + $0xb8] sm:$0xff]
    %v2148 = vld [vmem:[#allocation4 + $0xc0] sm:$0xff]
    %v2149 = vld [vmem:[#allocation4 + $0xc8] sm:$0xff]
    %v2150 = vld [vmem:[#allocation4 + $0xd0] sm:$0xff]
    %v2151 = vld [vmem:[#allocation4 + $0xd8] sm:$0xff]
    %v2152 = vld [vmem:[#allocation4 + $0xe0] sm:$0xff]
    %v2153 = vld [vmem:[#allocation4 + $0xe8] sm:$0xff]
    %v2154 = vld [vmem:[#allocation4 + $0xf0] sm:$0xff]
    %v2155 = vld [vmem:[#allocation4 + $0xf8] sm:$0xff]
    %v2156 = vld [vmem:[#allocation4 + $0x100] sm:$0xff]
    %v2157 = vld [vmem:[#allocation4 + $0x108] sm:$0xff]
    %v2158 = vld [vmem:[#allocation4 + $0x110] sm:$0xff]
    %v2159 = vld [vmem:[#allocation4 + $0x118] sm:$0xff]
    %v2160 = vld [vmem:[#allocation4 + $0x120] sm:$0xff]
    %v2161 = vld [vmem:[#allocation4 + $0x128] sm:$0xff]
    %v2162 = vld [vmem:[#allocation4 + $0x130] sm:$0xff]
    %v2163 = vld [vmem:[#allocation4 + $0x138] sm:$0xff]
    %v2164 = vld [vmem:[#allocation4 + $0x140] sm:$0xff]
    %v2165 = vld [vmem:[#allocation4 + $0x148] sm:$0xff]
    %v2166 = vld [vmem:[#allocation4 + $0x150] sm:$0xff]
    %v2167 = vld [vmem:[#allocation4 + $0x158] sm:$0xff]
    %v2168 = vld [vmem:[#allocation4 + $0x160] sm:$0xff]
    %v2169 = vld [vmem:[#allocation4 + $0x168] sm:$0xff]
    %v2170 = vld [vmem:[#allocation4 + $0x170] sm:$0xff]
    %v2171 = vld [vmem:[#allocation4 + $0x178] sm:$0xff]
    %v2172 = vld [vmem:[#allocation4 + $0x180] sm:$0xff]
    %v2173 = vld [vmem:[#allocation4 + $0x188] sm:$0xff]
    %v2174 = vld [vmem:[#allocation4 + $0x190] sm:$0xff]
    %v2175 = vld [vmem:[#allocation4 + $0x198] sm:$0xff]
    %v2176 = vld [vmem:[#allocation4 + $0x1a0] sm:$0xff]
    %v2177 = vld [vmem:[#allocation4 + $0x1a8] sm:$0xff]
    %v2178 = vld [vmem:[#allocation4 + $0x1b0] sm:$0xff]
    %v2179 = vld [vmem:[#allocation4 + $0x1b8] sm:$0xff]
    %v2180 = vld [vmem:[#allocation4 + $0x1c0] sm:$0xff]
    %v2181 = vld [vmem:[#allocation4 + $0x1c8] sm:$0xff]
    %v2182 = vld [vmem:[#allocation4 + $0x1d0] sm:$0xff]
    %v2183 = vld [vmem:[#allocation4 + $0x1d8] sm:$0xff]
    %v2184 = vld [vmem:[#allocation4 + $0x1e0] sm:$0xff]
    %v2185 = vld [vmem:[#allocation4 + $0x1e8] sm:$0xff]
    %v2186 = vld [vmem:[#allocation4 + $0x1f0] sm:$0xff]
    %v2187 = vld [vmem:[#allocation4 + $0x1f8] sm:$0xff]
    %v2188 = vld [vmem:[#allocation4 + $0x200] sm:$0xff]
    %v2189 = vld [vmem:[#allocation4 + $0x208] sm:$0xff]
    %v2190 = vld [vmem:[#allocation4 + $0x210] sm:$0xff]
    %v2191 = vld [vmem:[#allocation4 + $0x218] sm:$0xff]
    %v2192 = vld [vmem:[#allocation4 + $0x220] sm:$0xff]
    %v2193 = vld [vmem:[#allocation4 + $0x228] sm:$0xff]
    %v2194 = vld [vmem:[#allocation4 + $0x230] sm:$0xff]
    %v2195 = vld [vmem:[#allocation4 + $0x238] sm:$0xff]
    %v2196 = vld [vmem:[#allocation4 + $0x240] sm:$0xff]
    %v2197 = vld [vmem:[#allocation4 + $0x248] sm:$0xff]
    %v2198 = vld [vmem:[#allocation4 + $0x250] sm:$0xff]
    %v2199 = vld [vmem:[#allocation4 + $0x258] sm:$0xff]
    %v2200 = vld [vmem:[#allocation4 + $0x260] sm:$0xff]
    %v2201 = vld [vmem:[#allocation4 + $0x268] sm:$0xff]
    %v2202 = vld [vmem:[#allocation4 + $0x270] sm:$0xff]
    %v2203 = vld [vmem:[#allocation4 + $0x278] sm:$0xff]
    %v2204 = vld [vmem:[#allocation4 + $0x280] sm:$0xff]
    %v2205 = vld [vmem:[#allocation4 + $0x288] sm:$0xff]
    %v2206 = vld [vmem:[#allocation4 + $0x290] sm:$0xff]
    %v2207 = vld [vmem:[#allocation4 + $0x298] sm:$0xff]
    %v2208 = vld [vmem:[#allocation4 + $0x2a0] sm:$0xff]
    %v2209 = vld [vmem:[#allocation4 + $0x2a8] sm:$0xff]
    %v2210 = vld [vmem:[#allocation4 + $0x2b0] sm:$0xff]
    %v2211 = vld [vmem:[#allocation4 + $0x2b8] sm:$0xff]
    %v2212 = vld [vmem:[#allocation4 + $0x2c0] sm:$0xff]
    %v2213 = vld [vmem:[#allocation4 + $0x2c8] sm:$0xff]
    %v2214 = vld [vmem:[#allocation4 + $0x2d0] sm:$0xff]
    %v2215 = vld [vmem:[#allocation4 + $0x2d8] sm:$0xff]
    %v2216 = vld [vmem:[#allocation4 + $0x2e0] sm:$0xff]
    %v2217 = vld [vmem:[#allocation4 + $0x2e8] sm:$0xff]
    %v2218 = vld [vmem:[#allocation4 + $0x2f0] sm:$0xff]
    %v2219 = vld [vmem:[#allocation4 + $0x2f8] sm:$0xff]
    %v2220 = vld [vmem:[#allocation4 + $0x300] sm:$0xff]
    %v2221 = vld [vmem:[#allocation4 + $0x308] sm:$0xff]
    %v2222 = vld [vmem:[#allocation4 + $0x310] sm:$0xff]
    %v2223 = vld [vmem:[#allocation4 + $0x318] sm:$0xff]
    %v2224 = vld [vmem:[#allocation4 + $0x320] sm:$0xff]
    %v2225 = vld [vmem:[#allocation4 + $0x328] sm:$0xff]
    %v2226 = vld [vmem:[#allocation4 + $0x330] sm:$0xff]
    %v2227 = vld [vmem:[#allocation4 + $0x338] sm:$0xff]
    %v2228 = vld [vmem:[#allocation4 + $0x340] sm:$0xff]
    %v2229 = vld [vmem:[#allocation4 + $0x348] sm:$0xff]
    %v2230 = vld [vmem:[#allocation4 + $0x350] sm:$0xff]
    %v2231 = vld [vmem:[#allocation4 + $0x358] sm:$0xff]
    %v2232 = vld [vmem:[#allocation4 + $0x360] sm:$0xff]
    %v2233 = vld [vmem:[#allocation4 + $0x368] sm:$0xff]
    %v2234 = vld [vmem:[#allocation4 + $0x370] sm:$0xff]
    %v2235 = vld [vmem:[#allocation4 + $0x378] sm:$0xff]
    %v2236 = vld [vmem:[#allocation4 + $0x380] sm:$0xff]
    %v2237 = vld [vmem:[#allocation4 + $0x388] sm:$0xff]
    %v2238 = vld [vmem:[#allocation4 + $0x390] sm:$0xff]
    %v2239 = vld [vmem:[#allocation4 + $0x398] sm:$0xff]
    %v2240 = vld [vmem:[#allocation4 + $0x3a0] sm:$0xff]
    %v2241 = vld [vmem:[#allocation4 + $0x3a8] sm:$0xff]
    %v2242 = vld [vmem:[#allocation4 + $0x3b0] sm:$0xff]
    %v2243 = vld [vmem:[#allocation4 + $0x3b8] sm:$0xff]
    %v2244 = vld [vmem:[#allocation4 + $0x3c0] sm:$0xff]
    %v2245 = vld [vmem:[#allocation4 + $0x3c8] sm:$0xff]
    %v2246 = vld [vmem:[#allocation4 + $0x3d0] sm:$0xff]
    %v2247 = vld [vmem:[#allocation4 + $0x3d8] sm:$0xff]
    %v2248 = vld [vmem:[#allocation4 + $0x3e0] sm:$0xff]
    %v2249 = vld [vmem:[#allocation4 + $0x3e8] sm:$0xff]
    %v2250 = vld [vmem:[#allocation4 + $0x3f0] sm:$0xff]
    %v2251 = vld [vmem:[#allocation4 + $0x3f8] sm:$0xff]
    %v2252 = vld [vmem:[#allocation6] sm:$0xff]
    %v2253 = vld [vmem:[#allocation6 + $0x8] sm:$0xff]
    %v2254 = vld [vmem:[#allocation6 + $0x10] sm:$0xff]
    %v2255 = vld [vmem:[#allocation6 + $0x18] sm:$0xff]
    %v2256 = vld [vmem:[#allocation6 + $0x20] sm:$0xff]
    %v2257 = vld [vmem:[#allocation6 + $0x28] sm:$0xff]
    %v2258 = vld [vmem:[#allocation6 + $0x30] sm:$0xff]
    %v2259 = vld [vmem:[#allocation6 + $0x38] sm:$0xff]
    %v2260 = vld [vmem:[#allocation6 + $0x40] sm:$0xff]
    %v2261 = vld [vmem:[#allocation6 + $0x48] sm:$0xff]
    %v2262 = vld [vmem:[#allocation6 + $0x50] sm:$0xff]
    %v2263 = vld [vmem:[#allocation6 + $0x58] sm:$0xff]
    %v2264 = vld [vmem:[#allocation6 + $0x60] sm:$0xff]
    %v2265 = vld [vmem:[#allocation6 + $0x68] sm:$0xff]
    %v2266 = vld [vmem:[#allocation6 + $0x70] sm:$0xff]
    %v2267 = vld [vmem:[#allocation6 + $0x78] sm:$0xff]
    %v2268 = vld [vmem:[#allocation6 + $0x80] sm:$0xff]
    %v2269 = vld [vmem:[#allocation6 + $0x88] sm:$0xff]
    %v2270 = vld [vmem:[#allocation6 + $0x90] sm:$0xff]
    %v2271 = vld [vmem:[#allocation6 + $0x98] sm:$0xff]
    %v2272 = vld [vmem:[#allocation6 + $0xa0] sm:$0xff]
    %v2273 = vld [vmem:[#allocation6 + $0xa8] sm:$0xff]
    %v2274 = vld [vmem:[#allocation6 + $0xb0] sm:$0xff]
    %v2275 = vld [vmem:[#allocation6 + $0xb8] sm:$0xff]
    %v2276 = vld [vmem:[#allocation6 + $0xc0] sm:$0xff]
    %v2277 = vld [vmem:[#allocation6 + $0xc8] sm:$0xff]
    %v2278 = vld [vmem:[#allocation6 + $0xd0] sm:$0xff]
    %v2279 = vld [vmem:[#allocation6 + $0xd8] sm:$0xff]
    %v2280 = vld [vmem:[#allocation6 + $0xe0] sm:$0xff]
    %v2281 = vld [vmem:[#allocation6 + $0xe8] sm:$0xff]
    %v2282 = vld [vmem:[#allocation6 + $0xf0] sm:$0xff]
    %v2283 = vld [vmem:[#allocation6 + $0xf8] sm:$0xff]
    %v2284 = vld [vmem:[#allocation6 + $0x100] sm:$0xff]
    %v2285 = vld [vmem:[#allocation6 + $0x108] sm:$0xff]
    %v2286 = vld [vmem:[#allocation6 + $0x110] sm:$0xff]
    %v2287 = vld [vmem:[#allocation6 + $0x118] sm:$0xff]
    %v2288 = vld [vmem:[#allocation6 + $0x120] sm:$0xff]
    %v2289 = vld [vmem:[#allocation6 + $0x128] sm:$0xff]
    %v2290 = vld [vmem:[#allocation6 + $0x130] sm:$0xff]
    %v2291 = vld [vmem:[#allocation6 + $0x138] sm:$0xff]
    %v2292 = vld [vmem:[#allocation6 + $0x140] sm:$0xff]
    %v2293 = vld [vmem:[#allocation6 + $0x148] sm:$0xff]
    %v2294 = vld [vmem:[#allocation6 + $0x150] sm:$0xff]
    %v2295 = vld [vmem:[#allocation6 + $0x158] sm:$0xff]
    %v2296 = vld [vmem:[#allocation6 + $0x160] sm:$0xff]
    %v2297 = vld [vmem:[#allocation6 + $0x168] sm:$0xff]
    %v2298 = vld [vmem:[#allocation6 + $0x170] sm:$0xff]
    %v2299 = vld [vmem:[#allocation6 + $0x178] sm:$0xff]
    %v2300 = vld [vmem:[#allocation6 + $0x180] sm:$0xff]
    %v2301 = vld [vmem:[#allocation6 + $0x188] sm:$0xff]
    %v2302 = vld [vmem:[#allocation6 + $0x190] sm:$0xff]
    %v2303 = vld [vmem:[#allocation6 + $0x198] sm:$0xff]
    %v2304 = vld [vmem:[#allocation6 + $0x1a0] sm:$0xff]
    %v2305 = vld [vmem:[#allocation6 + $0x1a8] sm:$0xff]
    %v2306 = vld [vmem:[#allocation6 + $0x1b0] sm:$0xff]
    %v2307 = vld [vmem:[#allocation6 + $0x1b8] sm:$0xff]
    %v2308 = vld [vmem:[#allocation6 + $0x1c0] sm:$0xff]
    %v2309 = vld [vmem:[#allocation6 + $0x1c8] sm:$0xff]
    %v2310 = vld [vmem:[#allocation6 + $0x1d0] sm:$0xff]
    %v2311 = vld [vmem:[#allocation6 + $0x1d8] sm:$0xff]
    %v2312 = vld [vmem:[#allocation6 + $0x1e0] sm:$0xff]
    %v2313 = vld [vmem:[#allocation6 + $0x1e8] sm:$0xff]
    %v2314 = vld [vmem:[#allocation6 + $0x1f0] sm:$0xff]
    %v2315 = vld [vmem:[#allocation6 + $0x1f8] sm:$0xff]
    %v2316 = vld [vmem:[#allocation6 + $0x200] sm:$0xff]
    %v2317 = vld [vmem:[#allocation6 + $0x208] sm:$0xff]
    %v2318 = vld [vmem:[#allocation6 + $0x210] sm:$0xff]
    %v2319 = vld [vmem:[#allocation6 + $0x218] sm:$0xff]
    %v2320 = vld [vmem:[#allocation6 + $0x220] sm:$0xff]
    %v2321 = vld [vmem:[#allocation6 + $0x228] sm:$0xff]
    %v2322 = vld [vmem:[#allocation6 + $0x230] sm:$0xff]
    %v2323 = vld [vmem:[#allocation6 + $0x238] sm:$0xff]
    %v2324 = vld [vmem:[#allocation6 + $0x240] sm:$0xff]
    %v2325 = vld [vmem:[#allocation6 + $0x248] sm:$0xff]
    %v2326 = vld [vmem:[#allocation6 + $0x250] sm:$0xff]
    %v2327 = vld [vmem:[#allocation6 + $0x258] sm:$0xff]
    %v2328 = vld [vmem:[#allocation6 + $0x260] sm:$0xff]
    %v2329 = vld [vmem:[#allocation6 + $0x268] sm:$0xff]
    %v2330 = vld [vmem:[#allocation6 + $0x270] sm:$0xff]
    %v2331 = vld [vmem:[#allocation6 + $0x278] sm:$0xff]
    %v2332 = vld [vmem:[#allocation6 + $0x280] sm:$0xff]
    %v2333 = vld [vmem:[#allocation6 + $0x288] sm:$0xff]
    %v2334 = vld [vmem:[#allocation6 + $0x290] sm:$0xff]
    %v2335 = vld [vmem:[#allocation6 + $0x298] sm:$0xff]
    %v2336 = vld [vmem:[#allocation6 + $0x2a0] sm:$0xff]
    %v2337 = vld [vmem:[#allocation6 + $0x2a8] sm:$0xff]
    %v2338 = vld [vmem:[#allocation6 + $0x2b0] sm:$0xff]
    %v2339 = vld [vmem:[#allocation6 + $0x2b8] sm:$0xff]
    %v2340 = vld [vmem:[#allocation6 + $0x2c0] sm:$0xff]
    %v2341 = vld [vmem:[#allocation6 + $0x2c8] sm:$0xff]
    %v2342 = vld [vmem:[#allocation6 + $0x2d0] sm:$0xff]
    %v2343 = vld [vmem:[#allocation6 + $0x2d8] sm:$0xff]
    %v2344 = vld [vmem:[#allocation6 + $0x2e0] sm:$0xff]
    %v2345 = vld [vmem:[#allocation6 + $0x2e8] sm:$0xff]
    %v2346 = vld [vmem:[#allocation6 + $0x2f0] sm:$0xff]
    %v2347 = vld [vmem:[#allocation6 + $0x2f8] sm:$0xff]
    %v2348 = vld [vmem:[#allocation6 + $0x300] sm:$0xff]
    %v2349 = vld [vmem:[#allocation6 + $0x308] sm:$0xff]
    %v2350 = vld [vmem:[#allocation6 + $0x310] sm:$0xff]
    %v2351 = vld [vmem:[#allocation6 + $0x318] sm:$0xff]
    %v2352 = vld [vmem:[#allocation6 + $0x320] sm:$0xff]
    %v2353 = vld [vmem:[#allocation6 + $0x328] sm:$0xff]
    %v2354 = vld [vmem:[#allocation6 + $0x330] sm:$0xff]
    %v2355 = vld [vmem:[#allocation6 + $0x338] sm:$0xff]
    %v2356 = vld [vmem:[#allocation6 + $0x340] sm:$0xff]
    %v2357 = vld [vmem:[#allocation6 + $0x348] sm:$0xff]
    %v2358 = vld [vmem:[#allocation6 + $0x350] sm:$0xff]
    %v2359 = vld [vmem:[#allocation6 + $0x358] sm:$0xff]
    %v2360 = vld [vmem:[#allocation6 + $0x360] sm:$0xff]
    %v2361 = vld [vmem:[#allocation6 + $0x368] sm:$0xff]
    %v2362 = vld [vmem:[#allocation6 + $0x370] sm:$0xff]
    %v2363 = vld [vmem:[#allocation6 + $0x378] sm:$0xff]
    %v2364 = vld [vmem:[#allocation6 + $0x380] sm:$0xff]
    %v2365 = vld [vmem:[#allocation6 + $0x388] sm:$0xff]
    %v2366 = vld [vmem:[#allocation6 + $0x390] sm:$0xff]
    %v2367 = vld [vmem:[#allocation6 + $0x398] sm:$0xff]
    %v2368 = vld [vmem:[#allocation6 + $0x3a0] sm:$0xff]
    %v2369 = vld [vmem:[#allocation6 + $0x3a8] sm:$0xff]
    %v2370 = vld [vmem:[#allocation6 + $0x3b0] sm:$0xff]
    %v2371 = vld [vmem:[#allocation6 + $0x3b8] sm:$0xff]
    %v2372 = vld [vmem:[#allocation6 + $0x3c0] sm:$0xff]
    %v2373 = vld [vmem:[#allocation6 + $0x3c8] sm:$0xff]
    %v2374 = vld [vmem:[#allocation6 + $0x3d0] sm:$0xff]
    %v2375 = vld [vmem:[#allocation6 + $0x3d8] sm:$0xff]
    %v2376 = vld [vmem:[#allocation6 + $0x3e0] sm:$0xff]
    %v2377 = vld [vmem:[#allocation6 + $0x3e8] sm:$0xff]
    %v2378 = vld [vmem:[#allocation6 + $0x3f0] sm:$0xff]
    %v2379 = vld [vmem:[#allocation6 + $0x3f8] sm:$0xff]
    %v2508 = vunpack.c.l.b16 %v2252
    %v2509 = vunpack.c.h.b16 %v2252
    %v2510 = vunpack.c.l.b16 %v2253
    %v2511 = vunpack.c.h.b16 %v2253
    %v2512 = vunpack.c.l.b16 %v2254
    %v2513 = vunpack.c.h.b16 %v2254
    %v2514 = vunpack.c.l.b16 %v2255
    %v2515 = vunpack.c.h.b16 %v2255
    %v2516 = vunpack.c.l.b16 %v2256
    %v2517 = vunpack.c.h.b16 %v2256
    %v2518 = vunpack.c.l.b16 %v2257
    %v2519 = vunpack.c.h.b16 %v2257
    %v2520 = vunpack.c.l.b16 %v2258
    %v2521 = vunpack.c.h.b16 %v2258
    %v2522 = vunpack.c.l.b16 %v2259
    %v2523 = vunpack.c.h.b16 %v2259
    %v2524 = vunpack.c.l.b16 %v2260
    %v2525 = vunpack.c.h.b16 %v2260
    %v2526 = vunpack.c.l.b16 %v2261
    %v2527 = vunpack.c.h.b16 %v2261
    %v2528 = vunpack.c.l.b16 %v2262
    %v2529 = vunpack.c.h.b16 %v2262
    %v2530 = vunpack.c.l.b16 %v2263
    %v2531 = vunpack.c.h.b16 %v2263
    %v2532 = vunpack.c.l.b16 %v2264
    %v2533 = vunpack.c.h.b16 %v2264
    %v2534 = vunpack.c.l.b16 %v2265
    %v2535 = vunpack.c.h.b16 %v2265
    %v2536 = vunpack.c.l.b16 %v2266
    %v2537 = vunpack.c.h.b16 %v2266
    %v2538 = vunpack.c.l.b16 %v2267
    %v2539 = vunpack.c.h.b16 %v2267
    %v2540 = vunpack.c.l.b16 %v2268
    %v2541 = vunpack.c.h.b16 %v2268
    %v2542 = vunpack.c.l.b16 %v2269
    %v2543 = vunpack.c.h.b16 %v2269
    %v2544 = vunpack.c.l.b16 %v2270
    %v2545 = vunpack.c.h.b16 %v2270
    %v2546 = vunpack.c.l.b16 %v2271
    %v2547 = vunpack.c.h.b16 %v2271
    %v2548 = vunpack.c.l.b16 %v2272
    %v2549 = vunpack.c.h.b16 %v2272
    %v2550 = vunpack.c.l.b16 %v2273
    %v2551 = vunpack.c.h.b16 %v2273
    %v2552 = vunpack.c.l.b16 %v2274
    %v2553 = vunpack.c.h.b16 %v2274
    %v2554 = vunpack.c.l.b16 %v2275
    %v2555 = vunpack.c.h.b16 %v2275
    %v2556 = vunpack.c.l.b16 %v2276
    %v2557 = vunpack.c.h.b16 %v2276
    %v2558 = vunpack.c.l.b16 %v2277
    %v2559 = vunpack.c.h.b16 %v2277
    %v2560 = vunpack.c.l.b16 %v2278
    %v2561 = vunpack.c.h.b16 %v2278
    %v2562 = vunpack.c.l.b16 %v2279
    %v2563 = vunpack.c.h.b16 %v2279
    %v2564 = vunpack.c.l.b16 %v2280
    %v2565 = vunpack.c.h.b16 %v2280
    %v2566 = vunpack.c.l.b16 %v2281
    %v2567 = vunpack.c.h.b16 %v2281
    %v2568 = vunpack.c.l.b16 %v2282
    %v2569 = vunpack.c.h.b16 %v2282
    %v2570 = vunpack.c.l.b16 %v2283
    %v2571 = vunpack.c.h.b16 %v2283
    %v2572 = vunpack.c.l.b16 %v2284
    %v2573 = vunpack.c.h.b16 %v2284
    %v2574 = vunpack.c.l.b16 %v2285
    %v2575 = vunpack.c.h.b16 %v2285
    %v2576 = vunpack.c.l.b16 %v2286
    %v2577 = vunpack.c.h.b16 %v2286
    %v2578 = vunpack.c.l.b16 %v2287
    %v2579 = vunpack.c.h.b16 %v2287
    %v2580 = vunpack.c.l.b16 %v2288
    %v2581 = vunpack.c.h.b16 %v2288
    %v2582 = vunpack.c.l.b16 %v2289
    %v2583 = vunpack.c.h.b16 %v2289
    %v2584 = vunpack.c.l.b16 %v2290
    %v2585 = vunpack.c.h.b16 %v2290
    %v2586 = vunpack.c.l.b16 %v2291
    %v2587 = vunpack.c.h.b16 %v2291
    %v2588 = vunpack.c.l.b16 %v2292
    %v2589 = vunpack.c.h.b16 %v2292
    %v2590 = vunpack.c.l.b16 %v2293
    %v2591 = vunpack.c.h.b16 %v2293
    %v2592 = vunpack.c.l.b16 %v2294
    %v2593 = vunpack.c.h.b16 %v2294
    %v2594 = vunpack.c.l.b16 %v2295
    %v2595 = vunpack.c.h.b16 %v2295
    %v2596 = vunpack.c.l.b16 %v2296
    %v2597 = vunpack.c.h.b16 %v2296
    %v2598 = vunpack.c.l.b16 %v2297
    %v2599 = vunpack.c.h.b16 %v2297
    %v2600 = vunpack.c.l.b16 %v2298
    %v2601 = vunpack.c.h.b16 %v2298
    %v2602 = vunpack.c.l.b16 %v2299
    %v2603 = vunpack.c.h.b16 %v2299
    %v2604 = vunpack.c.l.b16 %v2300
    %v2605 = vunpack.c.h.b16 %v2300
    %v2606 = vunpack.c.l.b16 %v2301
    %v2607 = vunpack.c.h.b16 %v2301
    %v2608 = vunpack.c.l.b16 %v2302
    %v2609 = vunpack.c.h.b16 %v2302
    %v2610 = vunpack.c.l.b16 %v2303
    %v2611 = vunpack.c.h.b16 %v2303
    %v2612 = vunpack.c.l.b16 %v2304
    %v2613 = vunpack.c.h.b16 %v2304
    %v2614 = vunpack.c.l.b16 %v2305
    %v2615 = vunpack.c.h.b16 %v2305
    %v2616 = vunpack.c.l.b16 %v2306
    %v2617 = vunpack.c.h.b16 %v2306
    %v2618 = vunpack.c.l.b16 %v2307
    %v2619 = vunpack.c.h.b16 %v2307
    %v2620 = vunpack.c.l.b16 %v2308
    %v2621 = vunpack.c.h.b16 %v2308
    %v2622 = vunpack.c.l.b16 %v2309
    %v2623 = vunpack.c.h.b16 %v2309
    %v2624 = vunpack.c.l.b16 %v2310
    %v2625 = vunpack.c.h.b16 %v2310
    %v2626 = vunpack.c.l.b16 %v2311
    %v2627 = vunpack.c.h.b16 %v2311
    %v2628 = vunpack.c.l.b16 %v2312
    %v2629 = vunpack.c.h.b16 %v2312
    %v2630 = vunpack.c.l.b16 %v2313
    %v2631 = vunpack.c.h.b16 %v2313
    %v2632 = vunpack.c.l.b16 %v2314
    %v2633 = vunpack.c.h.b16 %v2314
    %v2634 = vunpack.c.l.b16 %v2315
    %v2635 = vunpack.c.h.b16 %v2315
    %v2636 = vunpack.c.l.b16 %v2316
    %v2637 = vunpack.c.h.b16 %v2316
    %v2638 = vunpack.c.l.b16 %v2317
    %v2639 = vunpack.c.h.b16 %v2317
    %v2640 = vunpack.c.l.b16 %v2318
    %v2641 = vunpack.c.h.b16 %v2318
    %v2642 = vunpack.c.l.b16 %v2319
    %v2643 = vunpack.c.h.b16 %v2319
    %v2644 = vunpack.c.l.b16 %v2320
    %v2645 = vunpack.c.h.b16 %v2320
    %v2646 = vunpack.c.l.b16 %v2321
    %v2647 = vunpack.c.h.b16 %v2321
    %v2648 = vunpack.c.l.b16 %v2322
    %v2649 = vunpack.c.h.b16 %v2322
    %v2650 = vunpack.c.l.b16 %v2323
    %v2651 = vunpack.c.h.b16 %v2323
    %v2652 = vunpack.c.l.b16 %v2324
    %v2653 = vunpack.c.h.b16 %v2324
    %v2654 = vunpack.c.l.b16 %v2325
    %v2655 = vunpack.c.h.b16 %v2325
    %v2656 = vunpack.c.l.b16 %v2326
    %v2657 = vunpack.c.h.b16 %v2326
    %v2658 = vunpack.c.l.b16 %v2327
    %v2659 = vunpack.c.h.b16 %v2327
    %v2660 = vunpack.c.l.b16 %v2328
    %v2661 = vunpack.c.h.b16 %v2328
    %v2662 = vunpack.c.l.b16 %v2329
    %v2663 = vunpack.c.h.b16 %v2329
    %v2664 = vunpack.c.l.b16 %v2330
    %v2665 = vunpack.c.h.b16 %v2330
    %v2666 = vunpack.c.l.b16 %v2331
    %v2667 = vunpack.c.h.b16 %v2331
    %v2668 = vunpack.c.l.b16 %v2332
    %v2669 = vunpack.c.h.b16 %v2332
    %v2670 = vunpack.c.l.b16 %v2333
    %v2671 = vunpack.c.h.b16 %v2333
    %v2672 = vunpack.c.l.b16 %v2334
    %v2673 = vunpack.c.h.b16 %v2334
    %v2674 = vunpack.c.l.b16 %v2335
    %v2675 = vunpack.c.h.b16 %v2335
    %v2676 = vunpack.c.l.b16 %v2336
    %v2677 = vunpack.c.h.b16 %v2336
    %v2678 = vunpack.c.l.b16 %v2337
    %v2679 = vunpack.c.h.b16 %v2337
    %v2680 = vunpack.c.l.b16 %v2338
    %v2681 = vunpack.c.h.b16 %v2338
    %v2682 = vunpack.c.l.b16 %v2339
    %v2683 = vunpack.c.h.b16 %v2339
    %v2684 = vunpack.c.l.b16 %v2340
    %v2685 = vunpack.c.h.b16 %v2340
    %v2686 = vunpack.c.l.b16 %v2341
    %v2687 = vunpack.c.h.b16 %v2341
    %v2688 = vunpack.c.l.b16 %v2342
    %v2689 = vunpack.c.h.b16 %v2342
    %v2690 = vunpack.c.l.b16 %v2343
    %v2691 = vunpack.c.h.b16 %v2343
    %v2692 = vunpack.c.l.b16 %v2344
    %v2693 = vunpack.c.h.b16 %v2344
    %v2694 = vunpack.c.l.b16 %v2345
    %v2695 = vunpack.c.h.b16 %v2345
    %v2696 = vunpack.c.l.b16 %v2346
    %v2697 = vunpack.c.h.b16 %v2346
    %v2698 = vunpack.c.l.b16 %v2347
    %v2699 = vunpack.c.h.b16 %v2347
    %v2700 = vunpack.c.l.b16 %v2348
    %v2701 = vunpack.c.h.b16 %v2348
    %v2702 = vunpack.c.l.b16 %v2349
    %v2703 = vunpack.c.h.b16 %v2349
    %v2704 = vunpack.c.l.b16 %v2350
    %v2705 = vunpack.c.h.b16 %v2350
    %v2706 = vunpack.c.l.b16 %v2351
    %v2707 = vunpack.c.h.b16 %v2351
    %v2708 = vunpack.c.l.b16 %v2352
    %v2709 = vunpack.c.h.b16 %v2352
    %v2710 = vunpack.c.l.b16 %v2353
    %v2711 = vunpack.c.h.b16 %v2353
    %v2712 = vunpack.c.l.b16 %v2354
    %v2713 = vunpack.c.h.b16 %v2354
    %v2714 = vunpack.c.l.b16 %v2355
    %v2715 = vunpack.c.h.b16 %v2355
    %v2716 = vunpack.c.l.b16 %v2356
    %v2717 = vunpack.c.h.b16 %v2356
    %v2718 = vunpack.c.l.b16 %v2357
    %v2719 = vunpack.c.h.b16 %v2357
    %v2720 = vunpack.c.l.b16 %v2358
    %v2721 = vunpack.c.h.b16 %v2358
    %v2722 = vunpack.c.l.b16 %v2359
    %v2723 = vunpack.c.h.b16 %v2359
    %v2724 = vunpack.c.l.b16 %v2360
    %v2725 = vunpack.c.h.b16 %v2360
    %v2726 = vunpack.c.l.b16 %v2361
    %v2727 = vunpack.c.h.b16 %v2361
    %v2728 = vunpack.c.l.b16 %v2362
    %v2729 = vunpack.c.h.b16 %v2362
    %v2730 = vunpack.c.l.b16 %v2363
    %v2731 = vunpack.c.h.b16 %v2363
    %v2732 = vunpack.c.l.b16 %v2364
    %v2733 = vunpack.c.h.b16 %v2364
    %v2734 = vunpack.c.l.b16 %v2365
    %v2735 = vunpack.c.h.b16 %v2365
    %v2736 = vunpack.c.l.b16 %v2366
    %v2737 = vunpack.c.h.b16 %v2366
    %v2738 = vunpack.c.l.b16 %v2367
    %v2739 = vunpack.c.h.b16 %v2367
    %v2740 = vunpack.c.l.b16 %v2368
    %v2741 = vunpack.c.h.b16 %v2368
    %v2742 = vunpack.c.l.b16 %v2369
    %v2743 = vunpack.c.h.b16 %v2369
    %v2744 = vunpack.c.l.b16 %v2370
    %v2745 = vunpack.c.h.b16 %v2370
    %v2746 = vunpack.c.l.b16 %v2371
    %v2747 = vunpack.c.h.b16 %v2371
    %v2748 = vunpack.c.l.b16 %v2372
    %v2749 = vunpack.c.h.b16 %v2372
    %v2750 = vunpack.c.l.b16 %v2373
    %v2751 = vunpack.c.h.b16 %v2373
    %v2752 = vunpack.c.l.b16 %v2374
    %v2753 = vunpack.c.h.b16 %v2374
    %v2754 = vunpack.c.l.b16 %v2375
    %v2755 = vunpack.c.h.b16 %v2375
    %v2756 = vunpack.c.l.b16 %v2376
    %v2757 = vunpack.c.h.b16 %v2376
    %v2758 = vunpack.c.l.b16 %v2377
    %v2759 = vunpack.c.h.b16 %v2377
    %v2760 = vunpack.c.l.b16 %v2378
    %v2761 = vunpack.c.h.b16 %v2378
    %v2762 = vunpack.c.l.b16 %v2379
    %v2763 = vunpack.c.h.b16 %v2379
    %v2764 = vpack.c.b16 %v2512, %v2508
    %v2765 = vpack.c.b16 %v2513, %v2509
    %v2766 = vpack.c.b16 %v2514, %v2510
    %v2767 = vpack.c.b16 %v2515, %v2511
    %v2768 = vpack.c.b16 %v2520, %v2516
    %v2769 = vpack.c.b16 %v2521, %v2517
    %v2770 = vpack.c.b16 %v2522, %v2518
    %v2771 = vpack.c.b16 %v2523, %v2519
    %v2772 = vpack.c.b16 %v2528, %v2524
    %v2773 = vpack.c.b16 %v2529, %v2525
    %v2774 = vpack.c.b16 %v2530, %v2526
    %v2775 = vpack.c.b16 %v2531, %v2527
    %v2776 = vpack.c.b16 %v2536, %v2532
    %v2777 = vpack.c.b16 %v2537, %v2533
    %v2778 = vpack.c.b16 %v2538, %v2534
    %v2779 = vpack.c.b16 %v2539, %v2535
    %v2780 = vpack.c.b16 %v2544, %v2540
    %v2781 = vpack.c.b16 %v2545, %v2541
    %v2782 = vpack.c.b16 %v2546, %v2542
    %v2783 = vpack.c.b16 %v2547, %v2543
    %v2784 = vpack.c.b16 %v2552, %v2548
    %v2785 = vpack.c.b16 %v2553, %v2549
    %v2786 = vpack.c.b16 %v2554, %v2550
    %v2787 = vpack.c.b16 %v2555, %v2551
    %v2788 = vpack.c.b16 %v2560, %v2556
    %v2789 = vpack.c.b16 %v2561, %v2557
    %v2790 = vpack.c.b16 %v2562, %v2558
    %v2791 = vpack.c.b16 %v2563, %v2559
    %v2792 = vpack.c.b16 %v2568, %v2564
    %v2793 = vpack.c.b16 %v2569, %v2565
    %v2794 = vpack.c.b16 %v2570, %v2566
    %v2795 = vpack.c.b16 %v2571, %v2567
    %v2796 = vpack.c.b16 %v2576, %v2572
    %v2797 = vpack.c.b16 %v2577, %v2573
    %v2798 = vpack.c.b16 %v2578, %v2574
    %v2799 = vpack.c.b16 %v2579, %v2575
    %v2800 = vpack.c.b16 %v2584, %v2580
    %v2801 = vpack.c.b16 %v2585, %v2581
    %v2802 = vpack.c.b16 %v2586, %v2582
    %v2803 = vpack.c.b16 %v2587, %v2583
    %v2804 = vpack.c.b16 %v2592, %v2588
    %v2805 = vpack.c.b16 %v2593, %v2589
    %v2806 = vpack.c.b16 %v2594, %v2590
    %v2807 = vpack.c.b16 %v2595, %v2591
    %v2808 = vpack.c.b16 %v2600, %v2596
    %v2809 = vpack.c.b16 %v2601, %v2597
    %v2810 = vpack.c.b16 %v2602, %v2598
    %v2811 = vpack.c.b16 %v2603, %v2599
    %v2812 = vpack.c.b16 %v2608, %v2604
    %v2813 = vpack.c.b16 %v2609, %v2605
    %v2814 = vpack.c.b16 %v2610, %v2606
    %v2815 = vpack.c.b16 %v2611, %v2607
    %v2816 = vpack.c.b16 %v2616, %v2612
    %v2817 = vpack.c.b16 %v2617, %v2613
    %v2818 = vpack.c.b16 %v2618, %v2614
    %v2819 = vpack.c.b16 %v2619, %v2615
    %v2820 = vpack.c.b16 %v2624, %v2620
    %v2821 = vpack.c.b16 %v2625, %v2621
    %v2822 = vpack.c.b16 %v2626, %v2622
    %v2823 = vpack.c.b16 %v2627, %v2623
    %v2824 = vpack.c.b16 %v2632, %v2628
    %v2825 = vpack.c.b16 %v2633, %v2629
    %v2826 = vpack.c.b16 %v2634, %v2630
    %v2827 = vpack.c.b16 %v2635, %v2631
    %v2828 = vpack.c.b16 %v2640, %v2636
    %v2829 = vpack.c.b16 %v2641, %v2637
    %v2830 = vpack.c.b16 %v2642, %v2638
    %v2831 = vpack.c.b16 %v2643, %v2639
    %v2832 = vpack.c.b16 %v2648, %v2644
    %v2833 = vpack.c.b16 %v2649, %v2645
    %v2834 = vpack.c.b16 %v2650, %v2646
    %v2835 = vpack.c.b16 %v2651, %v2647
    %v2836 = vpack.c.b16 %v2656, %v2652
    %v2837 = vpack.c.b16 %v2657, %v2653
    %v2838 = vpack.c.b16 %v2658, %v2654
    %v2839 = vpack.c.b16 %v2659, %v2655
    %v2840 = vpack.c.b16 %v2664, %v2660
    %v2841 = vpack.c.b16 %v2665, %v2661
    %v2842 = vpack.c.b16 %v2666, %v2662
    %v2843 = vpack.c.b16 %v2667, %v2663
    %v2844 = vpack.c.b16 %v2672, %v2668
    %v2845 = vpack.c.b16 %v2673, %v2669
    %v2846 = vpack.c.b16 %v2674, %v2670
    %v2847 = vpack.c.b16 %v2675, %v2671
    %v2848 = vpack.c.b16 %v2680, %v2676
    %v2849 = vpack.c.b16 %v2681, %v2677
    %v2850 = vpack.c.b16 %v2682, %v2678
    %v2851 = vpack.c.b16 %v2683, %v2679
    %v2852 = vpack.c.b16 %v2688, %v2684
    %v2853 = vpack.c.b16 %v2689, %v2685
    %v2854 = vpack.c.b16 %v2690, %v2686
    %v2855 = vpack.c.b16 %v2691, %v2687
    %v2856 = vpack.c.b16 %v2696, %v2692
    %v2857 = vpack.c.b16 %v2697, %v2693
    %v2858 = vpack.c.b16 %v2698, %v2694
    %v2859 = vpack.c.b16 %v2699, %v2695
    %v2860 = vpack.c.b16 %v2704, %v2700
    %v2861 = vpack.c.b16 %v2705, %v2701
    %v2862 = vpack.c.b16 %v2706, %v2702
    %v2863 = vpack.c.b16 %v2707, %v2703
    %v2864 = vpack.c.b16 %v2712, %v2708
    %v2865 = vpack.c.b16 %v2713, %v2709
    %v2866 = vpack.c.b16 %v2714, %v2710
    %v2867 = vpack.c.b16 %v2715, %v2711
    %v2868 = vpack.c.b16 %v2720, %v2716
    %v2869 = vpack.c.b16 %v2721, %v2717
    %v2870 = vpack.c.b16 %v2722, %v2718
    %v2871 = vpack.c.b16 %v2723, %v2719
    %v2872 = vpack.c.b16 %v2728, %v2724
    %v2873 = vpack.c.b16 %v2729, %v2725
    %v2874 = vpack.c.b16 %v2730, %v2726
    %v2875 = vpack.c.b16 %v2731, %v2727
    %v2876 = vpack.c.b16 %v2736, %v2732
    %v2877 = vpack.c.b16 %v2737, %v2733
    %v2878 = vpack.c.b16 %v2738, %v2734
    %v2879 = vpack.c.b16 %v2739, %v2735
    %v2880 = vpack.c.b16 %v2744, %v2740
    %v2881 = vpack.c.b16 %v2745, %v2741
    %v2882 = vpack.c.b16 %v2746, %v2742
    %v2883 = vpack.c.b16 %v2747, %v2743
    %v2884 = vpack.c.b16 %v2752, %v2748
    %v2885 = vpack.c.b16 %v2753, %v2749
    %v2886 = vpack.c.b16 %v2754, %v2750
    %v2887 = vpack.c.b16 %v2755, %v2751
    %v2888 = vpack.c.b16 %v2760, %v2756
    %v2889 = vpack.c.b16 %v2761, %v2757
    %v2890 = vpack.c.b16 %v2762, %v2758
    %v2891 = vpack.c.b16 %v2763, %v2759
    %3020 = vmatpush.bf16.msra.mxu0 %v2792
    %3021 = vmatpush.bf16.msra.mxu0 %v2788
    %3022 = vmatpush.bf16.msra.mxu0 %v2784
    %3023 = vmatpush.bf16.msra.mxu0 %v2780
    %3024 = vmatpush.bf16.msra.mxu0 %v2776
    %3025 = vmatpush.bf16.msra.mxu0 %v2772
    %3026 = vmatpush.bf16.msra.mxu0 %v2768
    %3027 = vmatpush.bf16.msra.mxu0 %v2764
    %3028 = vmatmul.bf16.gmra.mxu0 %v2120
    %v3029 = vpop.f32.mrf.mxu0
    %v3030 = vadd.f32 0.0, %v3029
    %v3031 = vpop.f32.mrf.mxu0
    %3032 = vdwg.mxu0
    %3033 = vmatpush.bf16.msra.mxu0 %v2824
    %3034 = vmatpush.bf16.msra.mxu0 %v2820
    %3035 = vmatpush.bf16.msra.mxu0 %v2816
    %3036 = vmatpush.bf16.msra.mxu0 %v2812
    %3037 = vmatpush.bf16.msra.mxu0 %v2808
    %3038 = vmatpush.bf16.msra.mxu0 %v2804
    %3039 = vmatpush.bf16.msra.mxu0 %v2800
    %3040 = vmatpush.bf16.msra.mxu0 %v2796
    %3041 = vmatmul.bf16.gmra.mxu0 %v2121
    %v3042 = vpop.f32.mrf.mxu0
    %v3043 = vadd.f32 %v3030, %v3042
    %v3044 = vpop.f32.mrf.mxu0
    %3045 = vdwg.mxu0
    %3046 = vmatpush.bf16.msra.mxu0 %v2856
    %3047 = vmatpush.bf16.msra.mxu0 %v2852
    %3048 = vmatpush.bf16.msra.mxu0 %v2848
    %3049 = vmatpush.bf16.msra.mxu0 %v2844
    %3050 = vmatpush.bf16.msra.mxu0 %v2840
    %3051 = vmatpush.bf16.msra.mxu0 %v2836
    %3052 = vmatpush.bf16.msra.mxu0 %v2832
    %3053 = vmatpush.bf16.msra.mxu0 %v2828
    %3054 = vmatmul.bf16.gmra.mxu0 %v2122
    %v3055 = vpop.f32.mrf.mxu0
    %v3056 = vadd.f32 %v3043, %v3055
    %v3057 = vpop.f32.mrf.mxu0
    %3058 = vdwg.mxu0
    %3059 = vmatpush.bf16.msra.mxu0 %v2888
    %3060 = vmatpush.bf16.msra.mxu0 %v2884
    %3061 = vmatpush.bf16.msra.mxu0 %v2880
    %3062 = vmatpush.bf16.msra.mxu0 %v2876
    %3063 = vmatpush.bf16.msra.mxu0 %v2872
    %3064 = vmatpush.bf16.msra.mxu0 %v2868
    %3065 = vmatpush.bf16.msra.mxu0 %v2864
    %3066 = vmatpush.bf16.msra.mxu0 %v2860
    %3067 = vmatmul.bf16.gmra.mxu0 %v2123
    %v3068 = vpop.f32.mrf.mxu0
    %v3069 = vadd.f32 %v3056, %v3068
    %v3070 = vpop.f32.mrf.mxu0
    %3071 = vdwg.mxu0
    %3072 = vmatpush.bf16.msra.mxu0 %v2793
    %3073 = vmatpush.bf16.msra.mxu0 %v2789
    %3074 = vmatpush.bf16.msra.mxu0 %v2785
    %3075 = vmatpush.bf16.msra.mxu0 %v2781
    %3076 = vmatpush.bf16.msra.mxu0 %v2777
    %3077 = vmatpush.bf16.msra.mxu0 %v2773
    %3078 = vmatpush.bf16.msra.mxu0 %v2769
    %3079 = vmatpush.bf16.msra.mxu0 %v2765
    %3080 = vmatmul.bf16.gmra.mxu0 %v2120
    %v3081 = vpop.f32.mrf.mxu0
    %v3082 = vadd.f32 0.0, %v3081
    %v3083 = vpop.f32.mrf.mxu0
    %3084 = vdwg.mxu0
    %3085 = vmatpush.bf16.msra.mxu0 %v2825
    %3086 = vmatpush.bf16.msra.mxu0 %v2821
    %3087 = vmatpush.bf16.msra.mxu0 %v2817
    %3088 = vmatpush.bf16.msra.mxu0 %v2813
    %3089 = vmatpush.bf16.msra.mxu0 %v2809
    %3090 = vmatpush.bf16.msra.mxu0 %v2805
    %3091 = vmatpush.bf16.msra.mxu0 %v2801
    %3092 = vmatpush.bf16.msra.mxu0 %v2797
    %3093 = vmatmul.bf16.gmra.mxu0 %v2121
    %v3094 = vpop.f32.mrf.mxu0
    %v3095 = vadd.f32 %v3082, %v3094
    %v3096 = vpop.f32.mrf.mxu0
    %3097 = vdwg.mxu0
    %3098 = vmatpush.bf16.msra.mxu0 %v2857
    %3099 = vmatpush.bf16.msra.mxu0 %v2853
    %3100 = vmatpush.bf16.msra.mxu0 %v2849
    %3101 = vmatpush.bf16.msra.mxu0 %v2845
    %3102 = vmatpush.bf16.msra.mxu0 %v2841
    %3103 = vmatpush.bf16.msra.mxu0 %v2837
    %3104 = vmatpush.bf16.msra.mxu0 %v2833
    %3105 = vmatpush.bf16.msra.mxu0 %v2829
    %3106 = vmatmul.bf16.gmra.mxu0 %v2122
    %v3107 = vpop.f32.mrf.mxu0
    %v3108 = vadd.f32 %v3095, %v3107
    %v3109 = vpop.f32.mrf.mxu0
    %3110 = vdwg.mxu0
    %3111 = vmatpush.bf16.msra.mxu0 %v2889
    %3112 = vmatpush.bf16.msra.mxu0 %v2885
    %3113 = vmatpush.bf16.msra.mxu0 %v2881
    %3114 = vmatpush.bf16.msra.mxu0 %v2877
    %3115 = vmatpush.bf16.msra.mxu0 %v2873
    %3116 = vmatpush.bf16.msra.mxu0 %v2869
    %3117 = vmatpush.bf16.msra.mxu0 %v2865
    %3118 = vmatpush.bf16.msra.mxu0 %v2861
    %3119 = vmatmul.bf16.gmra.mxu0 %v2123
    %v3120 = vpop.f32.mrf.mxu0
    %v3121 = vadd.f32 %v3108, %v3120
    %v3122 = vpop.f32.mrf.mxu0
    %3123 = vdwg.mxu0
    %3124 = vmatpush.bf16.msra.mxu0 %v2794
    %3125 = vmatpush.bf16.msra.mxu0 %v2790
    %3126 = vmatpush.bf16.msra.mxu0 %v2786
    %3127 = vmatpush.bf16.msra.mxu0 %v2782
    %3128 = vmatpush.bf16.msra.mxu0 %v2778
    %3129 = vmatpush.bf16.msra.mxu0 %v2774
    %3130 = vmatpush.bf16.msra.mxu0 %v2770
    %3131 = vmatpush.bf16.msra.mxu0 %v2766
    %3132 = vmatmul.bf16.gmra.mxu0 %v2120
    %v3133 = vpop.f32.mrf.mxu0
    %v3134 = vadd.f32 0.0, %v3133
    %v3135 = vpop.f32.mrf.mxu0
    %3136 = vdwg.mxu0
    %3137 = vmatpush.bf16.msra.mxu0 %v2826
    %3138 = vmatpush.bf16.msra.mxu0 %v2822
    %3139 = vmatpush.bf16.msra.mxu0 %v2818
    %3140 = vmatpush.bf16.msra.mxu0 %v2814
    %3141 = vmatpush.bf16.msra.mxu0 %v2810
    %3142 = vmatpush.bf16.msra.mxu0 %v2806
    %3143 = vmatpush.bf16.msra.mxu0 %v2802
    %3144 = vmatpush.bf16.msra.mxu0 %v2798
    %3145 = vmatmul.bf16.gmra.mxu0 %v2121
    %v3146 = vpop.f32.mrf.mxu0
    %v3147 = vadd.f32 %v3134, %v3146
    %v3148 = vpop.f32.mrf.mxu0
    %3149 = vdwg.mxu0
    %3150 = vmatpush.bf16.msra.mxu0 %v2858
    %3151 = vmatpush.bf16.msra.mxu0 %v2854
    %3152 = vmatpush.bf16.msra.mxu0 %v2850
    %3153 = vmatpush.bf16.msra.mxu0 %v2846
    %3154 = vmatpush.bf16.msra.mxu0 %v2842
    %3155 = vmatpush.bf16.msra.mxu0 %v2838
    %3156 = vmatpush.bf16.msra.mxu0 %v2834
    %3157 = vmatpush.bf16.msra.mxu0 %v2830
    %3158 = vmatmul.bf16.gmra.mxu0 %v2122
    %v3159 = vpop.f32.mrf.mxu0
    %v3160 = vadd.f32 %v3147, %v3159
    %v3161 = vpop.f32.mrf.mxu0
    %3162 = vdwg.mxu0
    %3163 = vmatpush.bf16.msra.mxu0 %v2890
    %3164 = vmatpush.bf16.msra.mxu0 %v2886
    %3165 = vmatpush.bf16.msra.mxu0 %v2882
    %3166 = vmatpush.bf16.msra.mxu0 %v2878
    %3167 = vmatpush.bf16.msra.mxu0 %v2874
    %3168 = vmatpush.bf16.msra.mxu0 %v2870
    %3169 = vmatpush.bf16.msra.mxu0 %v2866
    %3170 = vmatpush.bf16.msra.mxu0 %v2862
    %3171 = vmatmul.bf16.gmra.mxu0 %v2123
    %v3172 = vpop.f32.mrf.mxu0
    %v3173 = vadd.f32 %v3160, %v3172
    %v3174 = vpop.f32.mrf.mxu0
    %3175 = vdwg.mxu0
    %3176 = vmatpush.bf16.msra.mxu0 %v2795
    %3177 = vmatpush.bf16.msra.mxu0 %v2791
    %3178 = vmatpush.bf16.msra.mxu0 %v2787
    %3179 = vmatpush.bf16.msra.mxu0 %v2783
    %3180 = vmatpush.bf16.msra.mxu0 %v2779
    %3181 = vmatpush.bf16.msra.mxu0 %v2775
    %3182 = vmatpush.bf16.msra.mxu0 %v2771
    %3183 = vmatpush.bf16.msra.mxu0 %v2767
    %3184 = vmatmul.bf16.gmra.mxu0 %v2120
    %v3185 = vpop.f32.mrf.mxu0
    %v3186 = vadd.f32 0.0, %v3185
    %v3187 = vpop.f32.mrf.mxu0
    %3188 = vdwg.mxu0
    %3189 = vmatpush.bf16.msra.mxu0 %v2827
    %3190 = vmatpush.bf16.msra.mxu0 %v2823
    %3191 = vmatpush.bf16.msra.mxu0 %v2819
    %3192 = vmatpush.bf16.msra.mxu0 %v2815
    %3193 = vmatpush.bf16.msra.mxu0 %v2811
    %3194 = vmatpush.bf16.msra.mxu0 %v2807
    %3195 = vmatpush.bf16.msra.mxu0 %v2803
    %3196 = vmatpush.bf16.msra.mxu0 %v2799
    %3197 = vmatmul.bf16.gmra.mxu0 %v2121
    %v3198 = vpop.f32.mrf.mxu0
    %v3199 = vadd.f32 %v3186, %v3198
    %v3200 = vpop.f32.mrf.mxu0
    %3201 = vdwg.mxu0
    %3202 = vmatpush.bf16.msra.mxu0 %v2859
    %3203 = vmatpush.bf16.msra.mxu0 %v2855
    %3204 = vmatpush.bf16.msra.mxu0 %v2851
    %3205 = vmatpush.bf16.msra.mxu0 %v2847
    %3206 = vmatpush.bf16.msra.mxu0 %v2843
    %3207 = vmatpush.bf16.msra.mxu0 %v2839
    %3208 = vmatpush.bf16.msra.mxu0 %v2835
    %3209 = vmatpush.bf16.msra.mxu0 %v2831
    %3210 = vmatmul.bf16.gmra.mxu0 %v2122
    %v3211 = vpop.f32.mrf.mxu0
    %v3212 = vadd.f32 %v3199, %v3211
    %v3213 = vpop.f32.mrf.mxu0
    %3214 = vdwg.mxu0
    %3215 = vmatpush.bf16.msra.mxu0 %v2891
    %3216 = vmatpush.bf16.msra.mxu0 %v2887
    %3217 = vmatpush.bf16.msra.mxu0 %v2883
    %3218 = vmatpush.bf16.msra.mxu0 %v2879
    %3219 = vmatpush.bf16.msra.mxu0 %v2875
    %3220 = vmatpush.bf16.msra.mxu0 %v2871
    %3221 = vmatpush.bf16.msra.mxu0 %v2867
    %3222 = vmatpush.bf16.msra.mxu0 %v2863
    %3223 = vmatmul.bf16.gmra.mxu0 %v2123
    %v3224 = vpop.f32.mrf.mxu0
    %v3225 = vadd.f32 %v3212, %v3224
    %v3226 = vpop.f32.mrf.mxu0
    %3227 = vdwg.mxu0
    %v3356 = vunpack.c.l.b16 %v2124
    %v3357 = vunpack.c.h.b16 %v2124
    %v3358 = vunpack.c.l.b16 %v2125
    %v3359 = vunpack.c.h.b16 %v2125
    %v3360 = vunpack.c.l.b16 %v2126
    %v3361 = vunpack.c.h.b16 %v2126
    %v3362 = vunpack.c.l.b16 %v2127
    %v3363 = vunpack.c.h.b16 %v2127
    %v3364 = vunpack.c.l.b16 %v2128
    %v3365 = vunpack.c.h.b16 %v2128
    %v3366 = vunpack.c.l.b16 %v2129
    %v3367 = vunpack.c.h.b16 %v2129
    %v3368 = vunpack.c.l.b16 %v2130
    %v3369 = vunpack.c.h.b16 %v2130
    %v3370 = vunpack.c.l.b16 %v2131
    %v3371 = vunpack.c.h.b16 %v2131
    %v3372 = vunpack.c.l.b16 %v2132
    %v3373 = vunpack.c.h.b16 %v2132
    %v3374 = vunpack.c.l.b16 %v2133
    %v3375 = vunpack.c.h.b16 %v2133
    %v3376 = vunpack.c.l.b16 %v2134
    %v3377 = vunpack.c.h.b16 %v2134
    %v3378 = vunpack.c.l.b16 %v2135
    %v3379 = vunpack.c.h.b16 %v2135
    %v3380 = vunpack.c.l.b16 %v2136
    %v3381 = vunpack.c.h.b16 %v2136
    %v3382 = vunpack.c.l.b16 %v2137
    %v3383 = vunpack.c.h.b16 %v2137
    %v3384 = vunpack.c.l.b16 %v2138
    %v3385 = vunpack.c.h.b16 %v2138
    %v3386 = vunpack.c.l.b16 %v2139
    %v3387 = vunpack.c.h.b16 %v2139
    %v3388 = vunpack.c.l.b16 %v2140
    %v3389 = vunpack.c.h.b16 %v2140
    %v3390 = vunpack.c.l.b16 %v2141
    %v3391 = vunpack.c.h.b16 %v2141
    %v3392 = vunpack.c.l.b16 %v2142
    %v3393 = vunpack.c.h.b16 %v2142
    %v3394 = vunpack.c.l.b16 %v2143
    %v3395 = vunpack.c.h.b16 %v2143
    %v3396 = vunpack.c.l.b16 %v2144
    %v3397 = vunpack.c.h.b16 %v2144
    %v3398 = vunpack.c.l.b16 %v2145
    %v3399 = vunpack.c.h.b16 %v2145
    %v3400 = vunpack.c.l.b16 %v2146
    %v3401 = vunpack.c.h.b16 %v2146
    %v3402 = vunpack.c.l.b16 %v2147
    %v3403 = vunpack.c.h.b16 %v2147
    %v3404 = vunpack.c.l.b16 %v2148
    %v3405 = vunpack.c.h.b16 %v2148
    %v3406 = vunpack.c.l.b16 %v2149
    %v3407 = vunpack.c.h.b16 %v2149
    %v3408 = vunpack.c.l.b16 %v2150
    %v3409 = vunpack.c.h.b16 %v2150
    %v3410 = vunpack.c.l.b16 %v2151
    %v3411 = vunpack.c.h.b16 %v2151
    %v3412 = vunpack.c.l.b16 %v2152
    %v3413 = vunpack.c.h.b16 %v2152
    %v3414 = vunpack.c.l.b16 %v2153
    %v3415 = vunpack.c.h.b16 %v2153
    %v3416 = vunpack.c.l.b16 %v2154
    %v3417 = vunpack.c.h.b16 %v2154
    %v3418 = vunpack.c.l.b16 %v2155
    %v3419 = vunpack.c.h.b16 %v2155
    %v3420 = vunpack.c.l.b16 %v2156
    %v3421 = vunpack.c.h.b16 %v2156
    %v3422 = vunpack.c.l.b16 %v2157
    %v3423 = vunpack.c.h.b16 %v2157
    %v3424 = vunpack.c.l.b16 %v2158
    %v3425 = vunpack.c.h.b16 %v2158
    %v3426 = vunpack.c.l.b16 %v2159
    %v3427 = vunpack.c.h.b16 %v2159
    %v3428 = vunpack.c.l.b16 %v2160
    %v3429 = vunpack.c.h.b16 %v2160
    %v3430 = vunpack.c.l.b16 %v2161
    %v3431 = vunpack.c.h.b16 %v2161
    %v3432 = vunpack.c.l.b16 %v2162
    %v3433 = vunpack.c.h.b16 %v2162
    %v3434 = vunpack.c.l.b16 %v2163
    %v3435 = vunpack.c.h.b16 %v2163
    %v3436 = vunpack.c.l.b16 %v2164
    %v3437 = vunpack.c.h.b16 %v2164
    %v3438 = vunpack.c.l.b16 %v2165
    %v3439 = vunpack.c.h.b16 %v2165
    %v3440 = vunpack.c.l.b16 %v2166
    %v3441 = vunpack.c.h.b16 %v2166
    %v3442 = vunpack.c.l.b16 %v2167
    %v3443 = vunpack.c.h.b16 %v2167
    %v3444 = vunpack.c.l.b16 %v2168
    %v3445 = vunpack.c.h.b16 %v2168
    %v3446 = vunpack.c.l.b16 %v2169
    %v3447 = vunpack.c.h.b16 %v2169
    %v3448 = vunpack.c.l.b16 %v2170
    %v3449 = vunpack.c.h.b16 %v2170
    %v3450 = vunpack.c.l.b16 %v2171
    %v3451 = vunpack.c.h.b16 %v2171
    %v3452 = vunpack.c.l.b16 %v2172
    %v3453 = vunpack.c.h.b16 %v2172
    %v3454 = vunpack.c.l.b16 %v2173
    %v3455 = vunpack.c.h.b16 %v2173
    %v3456 = vunpack.c.l.b16 %v2174
    %v3457 = vunpack.c.h.b16 %v2174
    %v3458 = vunpack.c.l.b16 %v2175
    %v3459 = vunpack.c.h.b16 %v2175
    %v3460 = vunpack.c.l.b16 %v2176
    %v3461 = vunpack.c.h.b16 %v2176
    %v3462 = vunpack.c.l.b16 %v2177
    %v3463 = vunpack.c.h.b16 %v2177
    %v3464 = vunpack.c.l.b16 %v2178
    %v3465 = vunpack.c.h.b16 %v2178
    %v3466 = vunpack.c.l.b16 %v2179
    %v3467 = vunpack.c.h.b16 %v2179
    %v3468 = vunpack.c.l.b16 %v2180
    %v3469 = vunpack.c.h.b16 %v2180
    %v3470 = vunpack.c.l.b16 %v2181
    %v3471 = vunpack.c.h.b16 %v2181
    %v3472 = vunpack.c.l.b16 %v2182
    %v3473 = vunpack.c.h.b16 %v2182
    %v3474 = vunpack.c.l.b16 %v2183
    %v3475 = vunpack.c.h.b16 %v2183
    %v3476 = vunpack.c.l.b16 %v2184
    %v3477 = vunpack.c.h.b16 %v2184
    %v3478 = vunpack.c.l.b16 %v2185
    %v3479 = vunpack.c.h.b16 %v2185
    %v3480 = vunpack.c.l.b16 %v2186
    %v3481 = vunpack.c.h.b16 %v2186
    %v3482 = vunpack.c.l.b16 %v2187
    %v3483 = vunpack.c.h.b16 %v2187
    %v3484 = vunpack.c.l.b16 %v2188
    %v3485 = vunpack.c.h.b16 %v2188
    %v3486 = vunpack.c.l.b16 %v2189
    %v3487 = vunpack.c.h.b16 %v2189
    %v3488 = vunpack.c.l.b16 %v2190
    %v3489 = vunpack.c.h.b16 %v2190
    %v3490 = vunpack.c.l.b16 %v2191
    %v3491 = vunpack.c.h.b16 %v2191
    %v3492 = vunpack.c.l.b16 %v2192
    %v3493 = vunpack.c.h.b16 %v2192
    %v3494 = vunpack.c.l.b16 %v2193
    %v3495 = vunpack.c.h.b16 %v2193
    %v3496 = vunpack.c.l.b16 %v2194
    %v3497 = vunpack.c.h.b16 %v2194
    %v3498 = vunpack.c.l.b16 %v2195
    %v3499 = vunpack.c.h.b16 %v2195
    %v3500 = vunpack.c.l.b16 %v2196
    %v3501 = vunpack.c.h.b16 %v2196
    %v3502 = vunpack.c.l.b16 %v2197
    %v3503 = vunpack.c.h.b16 %v2197
    %v3504 = vunpack.c.l.b16 %v2198
    %v3505 = vunpack.c.h.b16 %v2198
    %v3506 = vunpack.c.l.b16 %v2199
    %v3507 = vunpack.c.h.b16 %v2199
    %v3508 = vunpack.c.l.b16 %v2200
    %v3509 = vunpack.c.h.b16 %v2200
    %v3510 = vunpack.c.l.b16 %v2201
    %v3511 = vunpack.c.h.b16 %v2201
    %v3512 = vunpack.c.l.b16 %v2202
    %v3513 = vunpack.c.h.b16 %v2202
    %v3514 = vunpack.c.l.b16 %v2203
    %v3515 = vunpack.c.h.b16 %v2203
    %v3516 = vunpack.c.l.b16 %v2204
    %v3517 = vunpack.c.h.b16 %v2204
    %v3518 = vunpack.c.l.b16 %v2205
    %v3519 = vunpack.c.h.b16 %v2205
    %v3520 = vunpack.c.l.b16 %v2206
    %v3521 = vunpack.c.h.b16 %v2206
    %v3522 = vunpack.c.l.b16 %v2207
    %v3523 = vunpack.c.h.b16 %v2207
    %v3524 = vunpack.c.l.b16 %v2208
    %v3525 = vunpack.c.h.b16 %v2208
    %v3526 = vunpack.c.l.b16 %v2209
    %v3527 = vunpack.c.h.b16 %v2209
    %v3528 = vunpack.c.l.b16 %v2210
    %v3529 = vunpack.c.h.b16 %v2210
    %v3530 = vunpack.c.l.b16 %v2211
    %v3531 = vunpack.c.h.b16 %v2211
    %v3532 = vunpack.c.l.b16 %v2212
    %v3533 = vunpack.c.h.b16 %v2212
    %v3534 = vunpack.c.l.b16 %v2213
    %v3535 = vunpack.c.h.b16 %v2213
    %v3536 = vunpack.c.l.b16 %v2214
    %v3537 = vunpack.c.h.b16 %v2214
    %v3538 = vunpack.c.l.b16 %v2215
    %v3539 = vunpack.c.h.b16 %v2215
    %v3540 = vunpack.c.l.b16 %v2216
    %v3541 = vunpack.c.h.b16 %v2216
    %v3542 = vunpack.c.l.b16 %v2217
    %v3543 = vunpack.c.h.b16 %v2217
    %v3544 = vunpack.c.l.b16 %v2218
    %v3545 = vunpack.c.h.b16 %v2218
    %v3546 = vunpack.c.l.b16 %v2219
    %v3547 = vunpack.c.h.b16 %v2219
    %v3548 = vunpack.c.l.b16 %v2220
    %v3549 = vunpack.c.h.b16 %v2220
    %v3550 = vunpack.c.l.b16 %v2221
    %v3551 = vunpack.c.h.b16 %v2221
    %v3552 = vunpack.c.l.b16 %v2222
    %v3553 = vunpack.c.h.b16 %v2222
    %v3554 = vunpack.c.l.b16 %v2223
    %v3555 = vunpack.c.h.b16 %v2223
    %v3556 = vunpack.c.l.b16 %v2224
    %v3557 = vunpack.c.h.b16 %v2224
    %v3558 = vunpack.c.l.b16 %v2225
    %v3559 = vunpack.c.h.b16 %v2225
    %v3560 = vunpack.c.l.b16 %v2226
    %v3561 = vunpack.c.h.b16 %v2226
    %v3562 = vunpack.c.l.b16 %v2227
    %v3563 = vunpack.c.h.b16 %v2227
    %v3564 = vunpack.c.l.b16 %v2228
    %v3565 = vunpack.c.h.b16 %v2228
    %v3566 = vunpack.c.l.b16 %v2229
    %v3567 = vunpack.c.h.b16 %v2229
    %v3568 = vunpack.c.l.b16 %v2230
    %v3569 = vunpack.c.h.b16 %v2230
    %v3570 = vunpack.c.l.b16 %v2231
    %v3571 = vunpack.c.h.b16 %v2231
    %v3572 = vunpack.c.l.b16 %v2232
    %v3573 = vunpack.c.h.b16 %v2232
    %v3574 = vunpack.c.l.b16 %v2233
    %v3575 = vunpack.c.h.b16 %v2233
    %v3576 = vunpack.c.l.b16 %v2234
    %v3577 = vunpack.c.h.b16 %v2234
    %v3578 = vunpack.c.l.b16 %v2235
    %v3579 = vunpack.c.h.b16 %v2235
    %v3580 = vunpack.c.l.b16 %v2236
    %v3581 = vunpack.c.h.b16 %v2236
    %v3582 = vunpack.c.l.b16 %v2237
    %v3583 = vunpack.c.h.b16 %v2237
    %v3584 = vunpack.c.l.b16 %v2238
    %v3585 = vunpack.c.h.b16 %v2238
    %v3586 = vunpack.c.l.b16 %v2239
    %v3587 = vunpack.c.h.b16 %v2239
    %v3588 = vunpack.c.l.b16 %v2240
    %v3589 = vunpack.c.h.b16 %v2240
    %v3590 = vunpack.c.l.b16 %v2241
    %v3591 = vunpack.c.h.b16 %v2241
    %v3592 = vunpack.c.l.b16 %v2242
    %v3593 = vunpack.c.h.b16 %v2242
    %v3594 = vunpack.c.l.b16 %v2243
    %v3595 = vunpack.c.h.b16 %v2243
    %v3596 = vunpack.c.l.b16 %v2244
    %v3597 = vunpack.c.h.b16 %v2244
    %v3598 = vunpack.c.l.b16 %v2245
    %v3599 = vunpack.c.h.b16 %v2245
    %v3600 = vunpack.c.l.b16 %v2246
    %v3601 = vunpack.c.h.b16 %v2246
    %v3602 = vunpack.c.l.b16 %v2247
    %v3603 = vunpack.c.h.b16 %v2247
    %v3604 = vunpack.c.l.b16 %v2248
    %v3605 = vunpack.c.h.b16 %v2248
    %v3606 = vunpack.c.l.b16 %v2249
    %v3607 = vunpack.c.h.b16 %v2249
    %v3608 = vunpack.c.l.b16 %v2250
    %v3609 = vunpack.c.h.b16 %v2250
    %v3610 = vunpack.c.l.b16 %v2251
    %v3611 = vunpack.c.h.b16 %v2251
    %v3612 = vpack.c.b16 %v3360, %v3356
    %v3613 = vpack.c.b16 %v3361, %v3357
    %v3614 = vpack.c.b16 %v3362, %v3358
    %v3615 = vpack.c.b16 %v3363, %v3359
    %v3616 = vpack.c.b16 %v3368, %v3364
    %v3617 = vpack.c.b16 %v3369, %v3365
    %v3618 = vpack.c.b16 %v3370, %v3366
    %v3619 = vpack.c.b16 %v3371, %v3367
    %v3620 = vpack.c.b16 %v3376, %v3372
    %v3621 = vpack.c.b16 %v3377, %v3373
    %v3622 = vpack.c.b16 %v3378, %v3374
    %v3623 = vpack.c.b16 %v3379, %v3375
    %v3624 = vpack.c.b16 %v3384, %v3380
    %v3625 = vpack.c.b16 %v3385, %v3381
    %v3626 = vpack.c.b16 %v3386, %v3382
    %v3627 = vpack.c.b16 %v3387, %v3383
    %v3628 = vpack.c.b16 %v3392, %v3388
    %v3629 = vpack.c.b16 %v3393, %v3389
    %v3630 = vpack.c.b16 %v3394, %v3390
    %v3631 = vpack.c.b16 %v3395, %v3391
    %v3632 = vpack.c.b16 %v3400, %v3396
    %v3633 = vpack.c.b16 %v3401, %v3397
    %v3634 = vpack.c.b16 %v3402, %v3398
    %v3635 = vpack.c.b16 %v3403, %v3399
    %v3636 = vpack.c.b16 %v3408, %v3404
    %v3637 = vpack.c.b16 %v3409, %v3405
    %v3638 = vpack.c.b16 %v3410, %v3406
    %v3639 = vpack.c.b16 %v3411, %v3407
    %v3640 = vpack.c.b16 %v3416, %v3412
    %v3641 = vpack.c.b16 %v3417, %v3413
    %v3642 = vpack.c.b16 %v3418, %v3414
    %v3643 = vpack.c.b16 %v3419, %v3415
    %v3644 = vpack.c.b16 %v3424, %v3420
    %v3645 = vpack.c.b16 %v3425, %v3421
    %v3646 = vpack.c.b16 %v3426, %v3422
    %v3647 = vpack.c.b16 %v3427, %v3423
    %v3648 = vpack.c.b16 %v3432, %v3428
    %v3649 = vpack.c.b16 %v3433, %v3429
    %v3650 = vpack.c.b16 %v3434, %v3430
    %v3651 = vpack.c.b16 %v3435, %v3431
    %v3652 = vpack.c.b16 %v3440, %v3436
    %v3653 = vpack.c.b16 %v3441, %v3437
    %v3654 = vpack.c.b16 %v3442, %v3438
    %v3655 = vpack.c.b16 %v3443, %v3439
    %v3656 = vpack.c.b16 %v3448, %v3444
    %v3657 = vpack.c.b16 %v3449, %v3445
    %v3658 = vpack.c.b16 %v3450, %v3446
    %v3659 = vpack.c.b16 %v3451, %v3447
    %v3660 = vpack.c.b16 %v3456, %v3452
    %v3661 = vpack.c.b16 %v3457, %v3453
    %v3662 = vpack.c.b16 %v3458, %v3454
    %v3663 = vpack.c.b16 %v3459, %v3455
    %v3664 = vpack.c.b16 %v3464, %v3460
    %v3665 = vpack.c.b16 %v3465, %v3461
    %v3666 = vpack.c.b16 %v3466, %v3462
    %v3667 = vpack.c.b16 %v3467, %v3463
    %v3668 = vpack.c.b16 %v3472, %v3468
    %v3669 = vpack.c.b16 %v3473, %v3469
    %v3670 = vpack.c.b16 %v3474, %v3470
    %v3671 = vpack.c.b16 %v3475, %v3471
    %v3672 = vpack.c.b16 %v3480, %v3476
    %v3673 = vpack.c.b16 %v3481, %v3477
    %v3674 = vpack.c.b16 %v3482, %v3478
    %v3675 = vpack.c.b16 %v3483, %v3479
    %v3676 = vpack.c.b16 %v3488, %v3484
    %v3677 = vpack.c.b16 %v3489, %v3485
    %v3678 = vpack.c.b16 %v3490, %v3486
    %v3679 = vpack.c.b16 %v3491, %v3487
    %v3680 = vpack.c.b16 %v3496, %v3492
    %v3681 = vpack.c.b16 %v3497, %v3493
    %v3682 = vpack.c.b16 %v3498, %v3494
    %v3683 = vpack.c.b16 %v3499, %v3495
    %v3684 = vpack.c.b16 %v3504, %v3500
    %v3685 = vpack.c.b16 %v3505, %v3501
    %v3686 = vpack.c.b16 %v3506, %v3502
    %v3687 = vpack.c.b16 %v3507, %v3503
    %v3688 = vpack.c.b16 %v3512, %v3508
    %v3689 = vpack.c.b16 %v3513, %v3509
    %v3690 = vpack.c.b16 %v3514, %v3510
    %v3691 = vpack.c.b16 %v3515, %v3511
    %v3692 = vpack.c.b16 %v3520, %v3516
    %v3693 = vpack.c.b16 %v3521, %v3517
    %v3694 = vpack.c.b16 %v3522, %v3518
    %v3695 = vpack.c.b16 %v3523, %v3519
    %v3696 = vpack.c.b16 %v3528, %v3524
    %v3697 = vpack.c.b16 %v3529, %v3525
    %v3698 = vpack.c.b16 %v3530, %v3526
    %v3699 = vpack.c.b16 %v3531, %v3527
    %v3700 = vpack.c.b16 %v3536, %v3532
    %v3701 = vpack.c.b16 %v3537, %v3533
    %v3702 = vpack.c.b16 %v3538, %v3534
    %v3703 = vpack.c.b16 %v3539, %v3535
    %v3704 = vpack.c.b16 %v3544, %v3540
    %v3705 = vpack.c.b16 %v3545, %v3541
    %v3706 = vpack.c.b16 %v3546, %v3542
    %v3707 = vpack.c.b16 %v3547, %v3543
    %v3708 = vpack.c.b16 %v3552, %v3548
    %v3709 = vpack.c.b16 %v3553, %v3549
    %v3710 = vpack.c.b16 %v3554, %v3550
    %v3711 = vpack.c.b16 %v3555, %v3551
    %v3712 = vpack.c.b16 %v3560, %v3556
    %v3713 = vpack.c.b16 %v3561, %v3557
    %v3714 = vpack.c.b16 %v3562, %v3558
    %v3715 = vpack.c.b16 %v3563, %v3559
    %v3716 = vpack.c.b16 %v3568, %v3564
    %v3717 = vpack.c.b16 %v3569, %v3565
    %v3718 = vpack.c.b16 %v3570, %v3566
    %v3719 = vpack.c.b16 %v3571, %v3567
    %v3720 = vpack.c.b16 %v3576, %v3572
    %v3721 = vpack.c.b16 %v3577, %v3573
    %v3722 = vpack.c.b16 %v3578, %v3574
    %v3723 = vpack.c.b16 %v3579, %v3575
    %v3724 = vpack.c.b16 %v3584, %v3580
    %v3725 = vpack.c.b16 %v3585, %v3581
    %v3726 = vpack.c.b16 %v3586, %v3582
    %v3727 = vpack.c.b16 %v3587, %v3583
    %v3728 = vpack.c.b16 %v3592, %v3588
    %v3729 = vpack.c.b16 %v3593, %v3589
    %v3730 = vpack.c.b16 %v3594, %v3590
    %v3731 = vpack.c.b16 %v3595, %v3591
    %v3732 = vpack.c.b16 %v3600, %v3596
    %v3733 = vpack.c.b16 %v3601, %v3597
    %v3734 = vpack.c.b16 %v3602, %v3598
    %v3735 = vpack.c.b16 %v3603, %v3599
    %v3736 = vpack.c.b16 %v3608, %v3604
    %v3737 = vpack.c.b16 %v3609, %v3605
    %v3738 = vpack.c.b16 %v3610, %v3606
    %v3739 = vpack.c.b16 %v3611, %v3607
    %3868 = vmatpush.bf16.msra.mxu0 %v3640
    %3869 = vmatpush.bf16.msra.mxu0 %v3636
    %3870 = vmatpush.bf16.msra.mxu0 %v3632
    %3871 = vmatpush.bf16.msra.mxu0 %v3628
    %3872 = vmatpush.bf16.msra.mxu0 %v3624
    %3873 = vmatpush.bf16.msra.mxu0 %v3620
    %3874 = vmatpush.bf16.msra.mxu0 %v3616
    %3875 = vmatpush.bf16.msra.mxu0 %v3612
    %3876 = vmatmul.bf16.gmra.mxu0 %v2116
    %v3877 = vpop.f32.mrf.mxu0
    %v3878 = vadd.f32 %v3069, %v3877
    %v3879 = vpop.f32.mrf.mxu0
    %3880 = vdwg.mxu0
    %3881 = vmatpush.bf16.msra.mxu0 %v3672
    %3882 = vmatpush.bf16.msra.mxu0 %v3668
    %3883 = vmatpush.bf16.msra.mxu0 %v3664
    %3884 = vmatpush.bf16.msra.mxu0 %v3660
    %3885 = vmatpush.bf16.msra.mxu0 %v3656
    %3886 = vmatpush.bf16.msra.mxu0 %v3652
    %3887 = vmatpush.bf16.msra.mxu0 %v3648
    %3888 = vmatpush.bf16.msra.mxu0 %v3644
    %3889 = vmatmul.bf16.gmra.mxu0 %v2117
    %v3890 = vpop.f32.mrf.mxu0
    %v3891 = vadd.f32 %v3878, %v3890
    %v3892 = vpop.f32.mrf.mxu0
    %3893 = vdwg.mxu0
    %3894 = vmatpush.bf16.msra.mxu0 %v3704
    %3895 = vmatpush.bf16.msra.mxu0 %v3700
    %3896 = vmatpush.bf16.msra.mxu0 %v3696
    %3897 = vmatpush.bf16.msra.mxu0 %v3692
    %3898 = vmatpush.bf16.msra.mxu0 %v3688
    %3899 = vmatpush.bf16.msra.mxu0 %v3684
    %3900 = vmatpush.bf16.msra.mxu0 %v3680
    %3901 = vmatpush.bf16.msra.mxu0 %v3676
    %3902 = vmatmul.bf16.gmra.mxu0 %v2118
    %v3903 = vpop.f32.mrf.mxu0
    %v3904 = vadd.f32 %v3891, %v3903
    %v3905 = vpop.f32.mrf.mxu0
    %3906 = vdwg.mxu0
    %3907 = vmatpush.bf16.msra.mxu0 %v3736
    %3908 = vmatpush.bf16.msra.mxu0 %v3732
    %3909 = vmatpush.bf16.msra.mxu0 %v3728
    %3910 = vmatpush.bf16.msra.mxu0 %v3724
    %3911 = vmatpush.bf16.msra.mxu0 %v3720
    %3912 = vmatpush.bf16.msra.mxu0 %v3716
    %3913 = vmatpush.bf16.msra.mxu0 %v3712
    %3914 = vmatpush.bf16.msra.mxu0 %v3708
    %3915 = vmatmul.bf16.gmra.mxu0 %v2119
    %v3916 = vpop.f32.mrf.mxu0
    %v3917 = vadd.f32 %v3904, %v3916
    %v3918 = vpop.f32.mrf.mxu0
    %3919 = vdwg.mxu0
    %3920 = vmatpush.bf16.msra.mxu0 %v3641
    %3921 = vmatpush.bf16.msra.mxu0 %v3637
    %3922 = vmatpush.bf16.msra.mxu0 %v3633
    %3923 = vmatpush.bf16.msra.mxu0 %v3629
    %3924 = vmatpush.bf16.msra.mxu0 %v3625
    %3925 = vmatpush.bf16.msra.mxu0 %v3621
    %3926 = vmatpush.bf16.msra.mxu0 %v3617
    %3927 = vmatpush.bf16.msra.mxu0 %v3613
    %3928 = vmatmul.bf16.gmra.mxu0 %v2116
    %v3929 = vpop.f32.mrf.mxu0
    %v3930 = vadd.f32 %v3121, %v3929
    %v3931 = vpop.f32.mrf.mxu0
    %3932 = vdwg.mxu0
    %3933 = vmatpush.bf16.msra.mxu0 %v3673
    %3934 = vmatpush.bf16.msra.mxu0 %v3669
    %3935 = vmatpush.bf16.msra.mxu0 %v3665
    %3936 = vmatpush.bf16.msra.mxu0 %v3661
    %3937 = vmatpush.bf16.msra.mxu0 %v3657
    %3938 = vmatpush.bf16.msra.mxu0 %v3653
    %3939 = vmatpush.bf16.msra.mxu0 %v3649
    %3940 = vmatpush.bf16.msra.mxu0 %v3645
    %3941 = vmatmul.bf16.gmra.mxu0 %v2117
    %v3942 = vpop.f32.mrf.mxu0
    %v3943 = vadd.f32 %v3930, %v3942
    %v3944 = vpop.f32.mrf.mxu0
    %3945 = vdwg.mxu0
    %3946 = vmatpush.bf16.msra.mxu0 %v3705
    %3947 = vmatpush.bf16.msra.mxu0 %v3701
    %3948 = vmatpush.bf16.msra.mxu0 %v3697
    %3949 = vmatpush.bf16.msra.mxu0 %v3693
    %3950 = vmatpush.bf16.msra.mxu0 %v3689
    %3951 = vmatpush.bf16.msra.mxu0 %v3685
    %3952 = vmatpush.bf16.msra.mxu0 %v3681
    %3953 = vmatpush.bf16.msra.mxu0 %v3677
    %3954 = vmatmul.bf16.gmra.mxu0 %v2118
    %v3955 = vpop.f32.mrf.mxu0
    %v3956 = vadd.f32 %v3943, %v3955
    %v3957 = vpop.f32.mrf.mxu0
    %3958 = vdwg.mxu0
    %3959 = vmatpush.bf16.msra.mxu0 %v3737
    %3960 = vmatpush.bf16.msra.mxu0 %v3733
    %3961 = vmatpush.bf16.msra.mxu0 %v3729
    %3962 = vmatpush.bf16.msra.mxu0 %v3725
    %3963 = vmatpush.bf16.msra.mxu0 %v3721
    %3964 = vmatpush.bf16.msra.mxu0 %v3717
    %3965 = vmatpush.bf16.msra.mxu0 %v3713
    %3966 = vmatpush.bf16.msra.mxu0 %v3709
    %3967 = vmatmul.bf16.gmra.mxu0 %v2119
    %v3968 = vpop.f32.mrf.mxu0
    %v3969 = vadd.f32 %v3956, %v3968
    %v3970 = vpop.f32.mrf.mxu0
    %3971 = vdwg.mxu0
    %3972 = vmatpush.bf16.msra.mxu0 %v3642
    %3973 = vmatpush.bf16.msra.mxu0 %v3638
    %3974 = vmatpush.bf16.msra.mxu0 %v3634
    %3975 = vmatpush.bf16.msra.mxu0 %v3630
    %3976 = vmatpush.bf16.msra.mxu0 %v3626
    %3977 = vmatpush.bf16.msra.mxu0 %v3622
    %3978 = vmatpush.bf16.msra.mxu0 %v3618
    %3979 = vmatpush.bf16.msra.mxu0 %v3614
    %3980 = vmatmul.bf16.gmra.mxu0 %v2116
    %v3981 = vpop.f32.mrf.mxu0
    %v3982 = vadd.f32 %v3173, %v3981
    %v3983 = vpop.f32.mrf.mxu0
    %3984 = vdwg.mxu0
    %3985 = vmatpush.bf16.msra.mxu0 %v3674
    %3986 = vmatpush.bf16.msra.mxu0 %v3670
    %3987 = vmatpush.bf16.msra.mxu0 %v3666
    %3988 = vmatpush.bf16.msra.mxu0 %v3662
    %3989 = vmatpush.bf16.msra.mxu0 %v3658
    %3990 = vmatpush.bf16.msra.mxu0 %v3654
    %3991 = vmatpush.bf16.msra.mxu0 %v3650
    %3992 = vmatpush.bf16.msra.mxu0 %v3646
    %3993 = vmatmul.bf16.gmra.mxu0 %v2117
    %v3994 = vpop.f32.mrf.mxu0
    %v3995 = vadd.f32 %v3982, %v3994
    %v3996 = vpop.f32.mrf.mxu0
    %3997 = vdwg.mxu0
    %3998 = vmatpush.bf16.msra.mxu0 %v3706
    %3999 = vmatpush.bf16.msra.mxu0 %v3702
    %4000 = vmatpush.bf16.msra.mxu0 %v3698
    %4001 = vmatpush.bf16.msra.mxu0 %v3694
    %4002 = vmatpush.bf16.msra.mxu0 %v3690
    %4003 = vmatpush.bf16.msra.mxu0 %v3686
    %4004 = vmatpush.bf16.msra.mxu0 %v3682
    %4005 = vmatpush.bf16.msra.mxu0 %v3678
    %4006 = vmatmul.bf16.gmra.mxu0 %v2118
    %v4007 = vpop.f32.mrf.mxu0
    %v4008 = vadd.f32 %v3995, %v4007
    %v4009 = vpop.f32.mrf.mxu0
    %4010 = vdwg.mxu0
    %4011 = vmatpush.bf16.msra.mxu0 %v3738
    %4012 = vmatpush.bf16.msra.mxu0 %v3734
    %4013 = vmatpush.bf16.msra.mxu0 %v3730
    %4014 = vmatpush.bf16.msra.mxu0 %v3726
    %4015 = vmatpush.bf16.msra.mxu0 %v3722
    %4016 = vmatpush.bf16.msra.mxu0 %v3718
    %4017 = vmatpush.bf16.msra.mxu0 %v3714
    %4018 = vmatpush.bf16.msra.mxu0 %v3710
    %4019 = vmatmul.bf16.gmra.mxu0 %v2119
    %v4020 = vpop.f32.mrf.mxu0
    %v4021 = vadd.f32 %v4008, %v4020
    %v4022 = vpop.f32.mrf.mxu0
    %4023 = vdwg.mxu0
    %4024 = vmatpush.bf16.msra.mxu0 %v3643
    %4025 = vmatpush.bf16.msra.mxu0 %v3639
    %4026 = vmatpush.bf16.msra.mxu0 %v3635
    %4027 = vmatpush.bf16.msra.mxu0 %v3631
    %4028 = vmatpush.bf16.msra.mxu0 %v3627
    %4029 = vmatpush.bf16.msra.mxu0 %v3623
    %4030 = vmatpush.bf16.msra.mxu0 %v3619
    %4031 = vmatpush.bf16.msra.mxu0 %v3615
    %4032 = vmatmul.bf16.gmra.mxu0 %v2116
    %v4033 = vpop.f32.mrf.mxu0
    %v4034 = vadd.f32 %v3225, %v4033
    %v4035 = vpop.f32.mrf.mxu0
    %4036 = vdwg.mxu0
    %4037 = vmatpush.bf16.msra.mxu0 %v3675
    %4038 = vmatpush.bf16.msra.mxu0 %v3671
    %4039 = vmatpush.bf16.msra.mxu0 %v3667
    %4040 = vmatpush.bf16.msra.mxu0 %v3663
    %4041 = vmatpush.bf16.msra.mxu0 %v3659
    %4042 = vmatpush.bf16.msra.mxu0 %v3655
    %4043 = vmatpush.bf16.msra.mxu0 %v3651
    %4044 = vmatpush.bf16.msra.mxu0 %v3647
    %4045 = vmatmul.bf16.gmra.mxu0 %v2117
    %v4046 = vpop.f32.mrf.mxu0
    %v4047 = vadd.f32 %v4034, %v4046
    %v4048 = vpop.f32.mrf.mxu0
    %4049 = vdwg.mxu0
    %4050 = vmatpush.bf16.msra.mxu0 %v3707
    %4051 = vmatpush.bf16.msra.mxu0 %v3703
    %4052 = vmatpush.bf16.msra.mxu0 %v3699
    %4053 = vmatpush.bf16.msra.mxu0 %v3695
    %4054 = vmatpush.bf16.msra.mxu0 %v3691
    %4055 = vmatpush.bf16.msra.mxu0 %v3687
    %4056 = vmatpush.bf16.msra.mxu0 %v3683
    %4057 = vmatpush.bf16.msra.mxu0 %v3679
    %4058 = vmatmul.bf16.gmra.mxu0 %v2118
    %v4059 = vpop.f32.mrf.mxu0
    %v4060 = vadd.f32 %v4047, %v4059
    %v4061 = vpop.f32.mrf.mxu0
    %4062 = vdwg.mxu0
    %4063 = vmatpush.bf16.msra.mxu0 %v3739
    %4064 = vmatpush.bf16.msra.mxu0 %v3735
    %4065 = vmatpush.bf16.msra.mxu0 %v3731
    %4066 = vmatpush.bf16.msra.mxu0 %v3727
    %4067 = vmatpush.bf16.msra.mxu0 %v3723
    %4068 = vmatpush.bf16.msra.mxu0 %v3719
    %4069 = vmatpush.bf16.msra.mxu0 %v3715
    %4070 = vmatpush.bf16.msra.mxu0 %v3711
    %4071 = vmatmul.bf16.gmra.mxu0 %v2119
    %v4072 = vpop.f32.mrf.mxu0
    %v4073 = vadd.f32 %v4060, %v4072
    %v4074 = vpop.f32.mrf.mxu0
    %4075 = vdwg.mxu0
    %v4076 = vld [vmem:[%s6 + $0x4] sm:$0xf]
    %v4078 = vperm.slane %v4076, 0
    %v4079 = vperm.slane %v4076, 1
    %v4080 = vperm.slane %v4076, 2
    %v4081 = vperm.slane %v4076, 3
    %v4086 = vadd.f32 %v3917, %v4078
    %v4087 = vadd.f32 %v3969, %v4079
    %v4088 = vadd.f32 %v4021, %v4080
    %v4089 = vadd.f32 %v4073, %v4081
    %v4090 = vmax.f32 %v4086, 0.0
    %v4091 = vmax.f32 %v4087, 0.0
    %v4092 = vmax.f32 %v4088, 0.0
    %v4093 = vmax.f32 %v4089, 0.0
    %v4094 = vpack.c.bf16 %v4090, %v4090
    %v4095 = vpack.c.bf16 %v4091, %v4091
    %v4096 = vpack.c.bf16 %v4092, %v4092
    %v4097 = vpack.c.bf16 %v4093, %v4093
    %v4098 = vld [vmem:[%s4] sm:$0xf]
    %v4099 = vld [vmem:[%s4 + $0x4] sm:$0xf]
    %v4100 = vld [vmem:[%s4 + $0x8] sm:$0xf]
    %v4101 = vld [vmem:[%s4 + $0xc] sm:$0xf]
    %v4102 = vld [vmem:[%s4 + $0x10] sm:$0xf]
    %v4103 = vld [vmem:[%s4 + $0x14] sm:$0xf]
    %v4104 = vld [vmem:[%s4 + $0x18] sm:$0xf]
    %v4105 = vld [vmem:[%s4 + $0x1c] sm:$0xf]
    %v4106 = vld [vmem:[%s4 + $0x20] sm:$0xf]
    %v4107 = vld [vmem:[%s4 + $0x24] sm:$0xf]
    %v4108 = vld [vmem:[%s4 + $0x28] sm:$0xf]
    %v4109 = vld [vmem:[%s4 + $0x2c] sm:$0xf]
    %v4110 = vld [vmem:[%s4 + $0x30] sm:$0xf]
    %v4111 = vld [vmem:[%s4 + $0x34] sm:$0xf]
    %v4112 = vld [vmem:[%s4 + $0x38] sm:$0xf]
    %v4113 = vld [vmem:[%s4 + $0x3c] sm:$0xf]
    %v4114 = vld [vmem:[%s4 + $0x40] sm:$0xf]
    %v4115 = vld [vmem:[%s4 + $0x44] sm:$0xf]
    %v4116 = vld [vmem:[%s4 + $0x48] sm:$0xf]
    %v4117 = vld [vmem:[%s4 + $0x4c] sm:$0xf]
    %v4118 = vld [vmem:[%s4 + $0x50] sm:$0xf]
    %v4119 = vld [vmem:[%s4 + $0x54] sm:$0xf]
    %v4120 = vld [vmem:[%s4 + $0x58] sm:$0xf]
    %v4121 = vld [vmem:[%s4 + $0x5c] sm:$0xf]
    %v4122 = vld [vmem:[%s4 + $0x60] sm:$0xf]
    %v4123 = vld [vmem:[%s4 + $0x64] sm:$0xf]
    %v4124 = vld [vmem:[%s4 + $0x68] sm:$0xf]
    %v4125 = vld [vmem:[%s4 + $0x6c] sm:$0xf]
    %v4126 = vld [vmem:[%s4 + $0x70] sm:$0xf]
    %v4127 = vld [vmem:[%s4 + $0x74] sm:$0xf]
    %v4128 = vld [vmem:[%s4 + $0x78] sm:$0xf]
    %v4129 = vld [vmem:[%s4 + $0x7c] sm:$0xf]
    %v4130 = vld [vmem:[%s4 + $0x80] sm:$0xf]
    %v4131 = vld [vmem:[%s4 + $0x84] sm:$0xf]
    %v4132 = vld [vmem:[%s4 + $0x88] sm:$0xf]
    %v4133 = vld [vmem:[%s4 + $0x8c] sm:$0xf]
    %v4134 = vld [vmem:[%s4 + $0x90] sm:$0xf]
    %v4135 = vld [vmem:[%s4 + $0x94] sm:$0xf]
    %v4136 = vld [vmem:[%s4 + $0x98] sm:$0xf]
    %v4137 = vld [vmem:[%s4 + $0x9c] sm:$0xf]
    %v4138 = vld [vmem:[%s4 + $0xa0] sm:$0xf]
    %v4139 = vld [vmem:[%s4 + $0xa4] sm:$0xf]
    %v4140 = vld [vmem:[%s4 + $0xa8] sm:$0xf]
    %v4141 = vld [vmem:[%s4 + $0xac] sm:$0xf]
    %v4142 = vld [vmem:[%s4 + $0xb0] sm:$0xf]
    %v4143 = vld [vmem:[%s4 + $0xb4] sm:$0xf]
    %v4144 = vld [vmem:[%s4 + $0xb8] sm:$0xf]
    %v4145 = vld [vmem:[%s4 + $0xbc] sm:$0xf]
    %v4146 = vld [vmem:[%s4 + $0xc0] sm:$0xf]
    %v4147 = vld [vmem:[%s4 + $0xc4] sm:$0xf]
    %v4148 = vld [vmem:[%s4 + $0xc8] sm:$0xf]
    %v4149 = vld [vmem:[%s4 + $0xcc] sm:$0xf]
    %v4150 = vld [vmem:[%s4 + $0xd0] sm:$0xf]
    %v4151 = vld [vmem:[%s4 + $0xd4] sm:$0xf]
    %v4152 = vld [vmem:[%s4 + $0xd8] sm:$0xf]
    %v4153 = vld [vmem:[%s4 + $0xdc] sm:$0xf]
    %v4154 = vld [vmem:[%s4 + $0xe0] sm:$0xf]
    %v4155 = vld [vmem:[%s4 + $0xe4] sm:$0xf]
    %v4156 = vld [vmem:[%s4 + $0xe8] sm:$0xf]
    %v4157 = vld [vmem:[%s4 + $0xec] sm:$0xf]
    %v4158 = vld [vmem:[%s4 + $0xf0] sm:$0xf]
    %v4159 = vld [vmem:[%s4 + $0xf4] sm:$0xf]
    %v4160 = vld [vmem:[%s4 + $0xf8] sm:$0xf]
    %v4161 = vld [vmem:[%s4 + $0xfc] sm:$0xf]
    %v4162 = vld [vmem:[%s6 + $0x8] sm:$0x1]
    %v4164 = vperm.slane %v4162, 0
    %v4230 = vunpack.c.l.b16 %v4098
    %v4231 = vunpack.c.l.b16 %v4099
    %v4232 = vunpack.c.l.b16 %v4100
    %v4233 = vunpack.c.l.b16 %v4101
    %v4234 = vunpack.c.l.b16 %v4102
    %v4235 = vunpack.c.l.b16 %v4103
    %v4236 = vunpack.c.l.b16 %v4104
    %v4237 = vunpack.c.l.b16 %v4105
    %v4238 = vunpack.c.l.b16 %v4106
    %v4239 = vunpack.c.l.b16 %v4107
    %v4240 = vunpack.c.l.b16 %v4108
    %v4241 = vunpack.c.l.b16 %v4109
    %v4242 = vunpack.c.l.b16 %v4110
    %v4243 = vunpack.c.l.b16 %v4111
    %v4244 = vunpack.c.l.b16 %v4112
    %v4245 = vunpack.c.l.b16 %v4113
    %v4246 = vunpack.c.l.b16 %v4114
    %v4247 = vunpack.c.l.b16 %v4115
    %v4248 = vunpack.c.l.b16 %v4116
    %v4249 = vunpack.c.l.b16 %v4117
    %v4250 = vunpack.c.l.b16 %v4118
    %v4251 = vunpack.c.l.b16 %v4119
    %v4252 = vunpack.c.l.b16 %v4120
    %v4253 = vunpack.c.l.b16 %v4121
    %v4254 = vunpack.c.l.b16 %v4122
    %v4255 = vunpack.c.l.b16 %v4123
    %v4256 = vunpack.c.l.b16 %v4124
    %v4257 = vunpack.c.l.b16 %v4125
    %v4258 = vunpack.c.l.b16 %v4126
    %v4259 = vunpack.c.l.b16 %v4127
    %v4260 = vunpack.c.l.b16 %v4128
    %v4261 = vunpack.c.l.b16 %v4129
    %v4262 = vunpack.c.l.b16 %v4130
    %v4263 = vunpack.c.l.b16 %v4131
    %v4264 = vunpack.c.l.b16 %v4132
    %v4265 = vunpack.c.l.b16 %v4133
    %v4266 = vunpack.c.l.b16 %v4134
    %v4267 = vunpack.c.l.b16 %v4135
    %v4268 = vunpack.c.l.b16 %v4136
    %v4269 = vunpack.c.l.b16 %v4137
    %v4270 = vunpack.c.l.b16 %v4138
    %v4271 = vunpack.c.l.b16 %v4139
    %v4272 = vunpack.c.l.b16 %v4140
    %v4273 = vunpack.c.l.b16 %v4141
    %v4274 = vunpack.c.l.b16 %v4142
    %v4275 = vunpack.c.l.b16 %v4143
    %v4276 = vunpack.c.l.b16 %v4144
    %v4277 = vunpack.c.l.b16 %v4145
    %v4278 = vunpack.c.l.b16 %v4146
    %v4279 = vunpack.c.l.b16 %v4147
    %v4280 = vunpack.c.l.b16 %v4148
    %v4281 = vunpack.c.l.b16 %v4149
    %v4282 = vunpack.c.l.b16 %v4150
    %v4283 = vunpack.c.l.b16 %v4151
    %v4284 = vunpack.c.l.b16 %v4152
    %v4285 = vunpack.c.l.b16 %v4153
    %v4286 = vunpack.c.l.b16 %v4154
    %v4287 = vunpack.c.l.b16 %v4155
    %v4288 = vunpack.c.l.b16 %v4156
    %v4289 = vunpack.c.l.b16 %v4157
    %v4290 = vunpack.c.l.b16 %v4158
    %v4291 = vunpack.c.l.b16 %v4159
    %v4292 = vunpack.c.l.b16 %v4160
    %v4293 = vunpack.c.l.b16 %v4161
    %v4294 = vpack.c.b16 %v4231, %v4230
    %v4295 = vpack.c.b16 %v4233, %v4232
    %v4296 = vpack.c.b16 %v4235, %v4234
    %v4297 = vpack.c.b16 %v4237, %v4236
    %v4298 = vpack.c.b16 %v4239, %v4238
    %v4299 = vpack.c.b16 %v4241, %v4240
    %v4300 = vpack.c.b16 %v4243, %v4242
    %v4301 = vpack.c.b16 %v4245, %v4244
    %v4302 = vpack.c.b16 %v4247, %v4246
    %v4303 = vpack.c.b16 %v4249, %v4248
    %v4304 = vpack.c.b16 %v4251, %v4250
    %v4305 = vpack.c.b16 %v4253, %v4252
    %v4306 = vpack.c.b16 %v4255, %v4254
    %v4307 = vpack.c.b16 %v4257, %v4256
    %v4308 = vpack.c.b16 %v4259, %v4258
    %v4309 = vpack.c.b16 %v4261, %v4260
    %v4310 = vpack.c.b16 %v4263, %v4262
    %v4311 = vpack.c.b16 %v4265, %v4264
    %v4312 = vpack.c.b16 %v4267, %v4266
    %v4313 = vpack.c.b16 %v4269, %v4268
    %v4314 = vpack.c.b16 %v4271, %v4270
    %v4315 = vpack.c.b16 %v4273, %v4272
    %v4316 = vpack.c.b16 %v4275, %v4274
    %v4317 = vpack.c.b16 %v4277, %v4276
    %v4318 = vpack.c.b16 %v4279, %v4278
    %v4319 = vpack.c.b16 %v4281, %v4280
    %v4320 = vpack.c.b16 %v4283, %v4282
    %v4321 = vpack.c.b16 %v4285, %v4284
    %v4322 = vpack.c.b16 %v4287, %v4286
    %v4323 = vpack.c.b16 %v4289, %v4288
    %v4324 = vpack.c.b16 %v4291, %v4290
    %v4325 = vpack.c.b16 %v4293, %v4292
    %4358 = vmatpush.bf16.msra.mxu0 %v4301
    %4359 = vmatpush.bf16.msra.mxu0 %v4300
    %4360 = vmatpush.bf16.msra.mxu0 %v4299
    %4361 = vmatpush.bf16.msra.mxu0 %v4298
    %4362 = vmatpush.bf16.msra.mxu0 %v4297
    %4363 = vmatpush.bf16.msra.mxu0 %v4296
    %4364 = vmatpush.bf16.msra.mxu0 %v4295
    %4365 = vmatpush.bf16.msra.mxu0 %v4294
    %4366 = vmatmul.bf16.gmra.mxu0 %v4094
    %v4367 = vpop.f32.mrf.mxu0
    %v4368 = vadd.f32 %v4164, %v4367
    %v4369 = vpop.f32.mrf.mxu0
    %4370 = vdwg.mxu0
    %4371 = vmatpush.bf16.msra.mxu0 %v4309
    %4372 = vmatpush.bf16.msra.mxu0 %v4308
    %4373 = vmatpush.bf16.msra.mxu0 %v4307
    %4374 = vmatpush.bf16.msra.mxu0 %v4306
    %4375 = vmatpush.bf16.msra.mxu0 %v4305
    %4376 = vmatpush.bf16.msra.mxu0 %v4304
    %4377 = vmatpush.bf16.msra.mxu0 %v4303
    %4378 = vmatpush.bf16.msra.mxu0 %v4302
    %4379 = vmatmul.bf16.gmra.mxu0 %v4095
    %v4380 = vpop.f32.mrf.mxu0
    %v4381 = vadd.f32 %v4368, %v4380
    %v4382 = vpop.f32.mrf.mxu0
    %4383 = vdwg.mxu0
    %4384 = vmatpush.bf16.msra.mxu0 %v4317
    %4385 = vmatpush.bf16.msra.mxu0 %v4316
    %4386 = vmatpush.bf16.msra.mxu0 %v4315
    %4387 = vmatpush.bf16.msra.mxu0 %v4314
    %4388 = vmatpush.bf16.msra.mxu0 %v4313
    %4389 = vmatpush.bf16.msra.mxu0 %v4312
    %4390 = vmatpush.bf16.msra.mxu0 %v4311
    %4391 = vmatpush.bf16.msra.mxu0 %v4310
    %4392 = vmatmul.bf16.gmra.mxu0 %v4096
    %v4393 = vpop.f32.mrf.mxu0
    %v4394 = vadd.f32 %v4381, %v4393
    %v4395 = vpop.f32.mrf.mxu0
    %4396 = vdwg.mxu0
    %4397 = vmatpush.bf16.msra.mxu0 %v4325
    %4398 = vmatpush.bf16.msra.mxu0 %v4324
    %4399 = vmatpush.bf16.msra.mxu0 %v4323
    %4400 = vmatpush.bf16.msra.mxu0 %v4322
    %4401 = vmatpush.bf16.msra.mxu0 %v4321
    %4402 = vmatpush.bf16.msra.mxu0 %v4320
    %4403 = vmatpush.bf16.msra.mxu0 %v4319
    %4404 = vmatpush.bf16.msra.mxu0 %v4318
    %4405 = vmatmul.bf16.gmra.mxu0 %v4097
    %v4406 = vpop.f32.mrf.mxu0
    %v4407 = vadd.f32 %v4394, %v4406
    %v4408 = vpop.f32.mrf.mxu0
    %4409 = vdwg.mxu0
    %v4410 = vmax.f32 %v4407, 0.0
    %v4411 = vpack.c.bf16 %v4410, %v4410
    %v4412 = vld [vmem:[%s5] sm:$0xf]
    %v4413 = vld [vmem:[%s5 + $0x4] sm:$0xf]
    %v4414 = vld [vmem:[%s5 + $0x8] sm:$0xf]
    %v4415 = vld [vmem:[%s5 + $0xc] sm:$0xf]
    %v4416 = vld [vmem:[%s5 + $0x10] sm:$0xf]
    %v4417 = vld [vmem:[%s5 + $0x14] sm:$0xf]
    %v4418 = vld [vmem:[%s5 + $0x18] sm:$0xf]
    %v4419 = vld [vmem:[%s5 + $0x1c] sm:$0xf]
    %v4420 = vld [vmem:[%s6 + $0x9] sm:$0x1]
    %v4422 = vperm.slane %v4420, 0
    %v4432 = vunpack.c.l.b16 %v4412
    %v4433 = vunpack.c.l.b16 %v4413
    %v4434 = vunpack.c.l.b16 %v4414
    %v4435 = vunpack.c.l.b16 %v4415
    %v4436 = vunpack.c.l.b16 %v4416
    %v4437 = vunpack.c.l.b16 %v4417
    %v4438 = vunpack.c.l.b16 %v4418
    %v4439 = vunpack.c.l.b16 %v4419
    %v4440 = vpack.c.b16 %v4433, %v4432
    %v4441 = vpack.c.b16 %v4435, %v4434
    %v4442 = vpack.c.b16 %v4437, %v4436
    %v4443 = vpack.c.b16 %v4439, %v4438
    %vm4448 = vcmask 523264
    %v4450 = vsel %vm4448, %v4411, 0
    %4452 = vmatpush.bf16.msra.mxu0 0
    %4453 = vmatpush.bf16.msra.mxu0 0
    %4454 = vmatpush.bf16.msra.mxu0 0
    %4455 = vmatpush.bf16.msra.mxu0 0
    %4456 = vmatpush.bf16.msra.mxu0 %v4443
    %4457 = vmatpush.bf16.msra.mxu0 %v4442
    %4458 = vmatpush.bf16.msra.mxu0 %v4441
    %4459 = vmatpush.bf16.msra.mxu0 %v4440
    %4460 = vmatmul.bf16.gmra.mxu0 %v4450
    %v4461 = vpop.f32.mrf.mxu0
    %v4462 = vadd.f32 %v4422, %v4461
    %v4463 = vpop.f32.mrf.mxu0
    %4464 = vdwg.mxu0
    %vm4465 = vcmask 15360
    %v4466 = vsel %vm4465, %v4462, -inf
    %4467 = vmax.xlane.f32.xlu0 %v4466
    %v4468 = vpop.xlane.xlu0 %4467
    %v4469 = vsub.f32 %v4462, %v4468
    %v4470 = vmul.f32 %v4469, 1.442695
    %v4471 = vpow.pop %v4470
    %v4472 = vsel %vm4465, %v4471, 0.0
    %4473 = vadd.xlane.f32.xlu0 %v4472
    %v4474 = vpop.xlane.xlu0 %4473
    %v4475 = vrcp.pop %v4474
    %v4476 = vmul.f32 %v4474, %v4475
    %v4477 = vsub.f32 1.0, %v4476
    %v4478 = vmul.f32 %v4475, %v4477
    %v4479 = vadd.f32 %v4475, %v4478
    %vm4480 = vweird.f32 %v4474
    %vm4481 = vweird.f32 %v4475
    %vm4482 = vmor %vm4480, %vm4481
    %v4483 = vsel %vm4482, %v4475, %v4479
    %v4484 = vand.u32 2147483647, %v4474
    %vm4485 = vcmp.eq.f32.partialorder %v4484, 8.507059e+37
    %v4486 = vand.u32 %v4474, 2147483648
    %v4487 = vor.u32 1.1754944e-38, %v4486
    %v4488 = vsel %vm4485, %v4487, %v4483
    %v4489 = vmul.f32 %v4471, %v4488
    %4490 = vst.msk [vmem:[%s7] sm:$0xff] %vm4465, %v4489
    // Predicated region
    $region42: #{tpu_custom_call.1} parent=1 // pred_check
      _
    $region43: #{tpu_custom_call.1} parent=1 // pred_check_branch
      %4492 = sbr.rel (0) target = $region45
    $region44: #{tpu_custom_call.1} parent=1 // pred_region
      _
    $region45: #{tpu_custom_call.1} parent=1 // pred_fallthru
      _
    // Predicated region
    $region46: #{tpu_custom_call.1} parent=1 // pred_check
      _
    $region47: #{tpu_custom_call.1} parent=1 // pred_check_branch
      %4494 = sbr.rel (0) target = $region49
    $region48: #{tpu_custom_call.1} parent=1 // pred_region
      _
    $region49: #{tpu_custom_call.1} parent=1 // pred_fallthru
      _
    %4495 = vsyncpa [#allocation3], 1
    %4496 = vsyncpa [#allocation5], 1

</llo_original>
